<compile_context>
chip_gen: v7x
topology: tpu7x:2x2x1
jax: 0.10.0
libtpu: 0.0.40
codegen_flags: <defaults>
</compile_context>

<pallas_src>
import functools
import math

import jax
import jax.numpy as jnp
from jax.experimental import pallas as pl
from jax.experimental.pallas import tpu as pltpu

# ----------------------------- tiny-BERT config ------------------------------
VOCAB = 128
HIDDEN = 32
N_HEADS = 2
D_HEAD = HIDDEN // N_HEADS
INTERMEDIATE = 64
N_LAYERS = 2
MAX_POS = 16
N_CLASSES = 2
OUT_PAD = 128          # lane-dense padded logits width (sliced to N_CLASSES outside)
LN_EPS = 1e-12


# ------------------------------ parameter init --------------------------------
def _normal(key, shape, std=0.02):
    return (std * jax.random.normal(key, shape)).astype(jnp.float32)


def init_params(key):
    """Deterministic tiny-BERT init.  Per-layer weights are stacked on a leading
    N_LAYERS axis; matmul weights are stored in bf16, biases/LN params in f32."""
    kw, kp, kt, kqkv, kao, ki, kfo, kpool, kcls = jax.random.split(key, 9)

    cls_w_core = _normal(kcls, (HIDDEN, N_CLASSES))
    cls_w = jnp.zeros((HIDDEN, OUT_PAD), jnp.float32).at[:, :N_CLASSES].set(cls_w_core)

    return {
        # embeddings (f32; gather stays in the JAX wrapper)
        "word_emb": _normal(kw, (VOCAB, HIDDEN)),
        "pos_emb": _normal(kp, (MAX_POS, HIDDEN)),
        "type_emb": _normal(kt, (2, HIDDEN)),
        "emb_ln_g": jnp.ones((1, HIDDEN), jnp.float32),
        "emb_ln_b": jnp.zeros((1, HIDDEN), jnp.float32),
        # encoder layers (stacked, fused QKV)
        "qkv_w": _normal(kqkv, (N_LAYERS, HIDDEN, 3 * HIDDEN)).astype(jnp.bfloat16),
        "qkv_b": jnp.zeros((N_LAYERS, 1, 3 * HIDDEN), jnp.float32),
        "ao_w": _normal(kao, (N_LAYERS, HIDDEN, HIDDEN)).astype(jnp.bfloat16),
        "ao_b": jnp.zeros((N_LAYERS, 1, HIDDEN), jnp.float32),
        "ln1_g": jnp.ones((N_LAYERS, 1, HIDDEN), jnp.float32),
        "ln1_b": jnp.zeros((N_LAYERS, 1, HIDDEN), jnp.float32),
        "i_w": _normal(ki, (N_LAYERS, HIDDEN, INTERMEDIATE)).astype(jnp.bfloat16),
        "i_b": jnp.zeros((N_LAYERS, 1, INTERMEDIATE), jnp.float32),
        "fo_w": _normal(kfo, (N_LAYERS, INTERMEDIATE, HIDDEN)).astype(jnp.bfloat16),
        "fo_b": jnp.zeros((N_LAYERS, 1, HIDDEN), jnp.float32),
        "ln2_g": jnp.ones((N_LAYERS, 1, HIDDEN), jnp.float32),
        "ln2_b": jnp.zeros((N_LAYERS, 1, HIDDEN), jnp.float32),
        # pooler + classifier head (classifier weight lane-padded to OUT_PAD)
        "pool_w": _normal(kpool, (HIDDEN, HIDDEN)).astype(jnp.bfloat16),
        "pool_b": jnp.zeros((1, HIDDEN), jnp.float32),
        "cls_w": cls_w.astype(jnp.bfloat16),
        "cls_b": jnp.zeros((1, OUT_PAD), jnp.float32),
    }


# ------------------------------ fused model kernel -----------------------------
def _fused_model_kernel(
    emb_ref, mask_ref,
    emb_ln_g_ref, emb_ln_b_ref,
    qkv_w_ref, qkv_b_ref,
    ao_w_ref, ao_b_ref,
    ln1_g_ref, ln1_b_ref,
    i_w_ref, i_b_ref,
    fo_w_ref, fo_b_ref,
    ln2_g_ref, ln2_b_ref,
    pool_w_ref, pool_b_ref,
    cls_w_ref, cls_b_ref,
    out_ref,
    *, batch, seq,
):
    def mm(x_f32, w_bf16):
        # bf16 MXU matmul with f32 accumulation.
        return jnp.dot(x_f32.astype(w_bf16.dtype), w_bf16,
                       preferred_element_type=jnp.float32)

    def layernorm(x, g, b):
        mean = jnp.mean(x, axis=-1, keepdims=True)
        xc = x - mean
        var = jnp.mean(xc * xc, axis=-1, keepdims=True)
        return xc * jax.lax.rsqrt(var + LN_EPS) * g + b

    def gelu(x):
        # tanh-approximated GELU (HF BERT default is erf-GELU; numerically close).
        c = math.sqrt(2.0 / math.pi)
        return 0.5 * x * (1.0 + jnp.tanh(c * (x + 0.044715 * x * x * x)))

    scale = 1.0 / math.sqrt(D_HEAD)

    # --- embedding LayerNorm (f32) ---
    x = layernorm(emb_ref[...].astype(jnp.float32), emb_ln_g_ref[...], emb_ln_b_ref[...])
    add_mask = mask_ref[...]                                     # (B, S) additive mask

    # --- encoder layers (fully unrolled: N_LAYERS=2, B=2, NH=2) ---
    for l in range(N_LAYERS):
        qkv = mm(x, qkv_w_ref[l]) + qkv_b_ref[l]                 # (B*S, 3H) f32

        ctx_rows = []
        for b in range(batch):
            r0, r1 = b * seq, (b + 1) * seq
            m_b = add_mask[b:b + 1, :]                           # (1, S)
            heads = []
            for h in range(N_HEADS):
                c0 = h * D_HEAD
                q = qkv[r0:r1, c0:c0 + D_HEAD]                                   # (S, D)
                k = qkv[r0:r1, HIDDEN + c0:HIDDEN + c0 + D_HEAD]                 # (S, D)
                v = qkv[r0:r1, 2 * HIDDEN + c0:2 * HIDDEN + c0 + D_HEAD]         # (S, D)
                # scores = q @ k^T (contract head dim, no explicit transpose)
                s = jax.lax.dot_general(q, k, (((1,), (1,)), ((), ())),
                                        preferred_element_type=jnp.float32)
                s = s * scale + m_b
                s = s - jnp.max(s, axis=-1, keepdims=True)
                p = jnp.exp(s)
                p = p * pl.reciprocal(jnp.sum(p, axis=-1, keepdims=True), approx=True)
                heads.append(jnp.dot(p, v, preferred_element_type=jnp.float32))  # (S, D)
            ctx_rows.append(jnp.concatenate(heads, axis=-1))     # (S, H)
        ctx = jnp.concatenate(ctx_rows, axis=0)                  # (B*S, H)

        # attention output projection + fused residual + LayerNorm
        attn_out = mm(ctx, ao_w_ref[l]) + ao_b_ref[l]
        x = layernorm(attn_out + x, ln1_g_ref[l], ln1_b_ref[l])

        # FFN + fused residual + LayerNorm
        inter = gelu(mm(x, i_w_ref[l]) + i_b_ref[l])
        ffn_out = mm(inter, fo_w_ref[l]) + fo_b_ref[l]
        x = layernorm(ffn_out + x, ln2_g_ref[l], ln2_b_ref[l])

    # --- pooler: tanh(Linear(h[:, 0])) on the [CLS] rows (row b*seq per batch) ---
    cls_rows = jnp.concatenate(
        [x[b * seq:b * seq + 1, :] for b in range(batch)], axis=0)   # (B, H)
    pooled = jnp.tanh(mm(cls_rows, pool_w_ref[...]) + pool_b_ref[...])

    # nn.Dropout(p=0.3): identity in eval mode (deterministic forward).
    # TODO(synk): training-mode dropout via pltpu.prng_random_bits if needed.

    # classifier head: lane-dense (B, OUT_PAD) slab; wrapper slices the real logits.
    out_ref[...] = mm(pooled, cls_w_ref[...]) + cls_b_ref[...]


# ------------------------------ forward pass ----------------------------------
def _full_block(shape):
    zeros = (0,) * len(shape)
    return pl.BlockSpec(shape, lambda i, _z=zeros: _z)


def phishing_classifier_forward(params, input_ids, attention_mask):
    """Equivalent of PhishingClassifier.forward(input_ids, attention_mask)."""
    B, S = input_ids.shape

    # --- embedding gather + sum (plain-JAX glue; everything else is one kernel) ---
    word = jnp.take(params["word_emb"], input_ids, axis=0)            # (B, S, H)
    pos = params["pos_emb"][:S][None, :, :]                           # (1, S, H)
    tok = params["type_emb"][0][None, None, :]                        # (1, 1, H)
    emb2d = (word + pos + tok).reshape(B * S, HIDDEN)                 # (B*S, H)

    # additive attention mask: 0 for keep, -1e4 for masked (HF-BERT convention)
    add_mask = (1.0 - attention_mask.astype(jnp.float32)) * -10000.0  # (B, S)

    inputs = (
        emb2d, add_mask,
        params["emb_ln_g"], params["emb_ln_b"],
        params["qkv_w"], params["qkv_b"],
        params["ao_w"], params["ao_b"],
        params["ln1_g"], params["ln1_b"],
        params["i_w"], params["i_b"],
        params["fo_w"], params["fo_b"],
        params["ln2_g"], params["ln2_b"],
        params["pool_w"], params["pool_b"],
        params["cls_w"], params["cls_b"],
    )

    kernel = functools.partial(_fused_model_kernel, batch=B, seq=S)
    logits_padded = pl.pallas_call(
        kernel,
        out_shape=jax.ShapeDtypeStruct((B, OUT_PAD), jnp.float32),
        grid=(1,),
        in_specs=[_full_block(a.shape) for a in inputs],
        out_specs=_full_block((B, OUT_PAD)),
        compiler_params=pltpu.CompilerParams(
            dimension_semantics=("arbitrary",)),
    )(*inputs)

    return logits_padded[:, :N_CLASSES]                               # (B, n_classes)


# ----------------------------------- main --------------------------------------
if __name__ == "__main__":
    key = jax.random.PRNGKey(0)
    k_ids, k_params = jax.random.split(key)

    B, S = 2, 8
    input_ids = jax.random.randint(k_ids, (B, S), 0, VOCAB, dtype=jnp.int32)
    attention_mask = jnp.array(
        [[1, 1, 1, 1, 1, 1, 1, 1],
         [1, 1, 1, 1, 1, 1, 0, 0]], dtype=jnp.float32)

    params = init_params(k_params)

    fwd = jax.jit(phishing_classifier_forward)
    logits = fwd(params, input_ids, attention_mask)
    jax.block_until_ready(logits)
    assert logits.shape == (B, N_CLASSES)
    print("KERNEL_OK")
</pallas_src>

<mosaic_0001>
module attributes {stable_mosaic.version = 11 : i64} {
  func.func @_fused_model_kernel(%arg0: i32, %arg1: memref<16x32xf32, #tpu.memory_space<vmem>>, %arg2: memref<2x8xf32, #tpu.memory_space<vmem>>, %arg3: memref<1x32xf32, #tpu.memory_space<vmem>>, %arg4: memref<1x32xf32, #tpu.memory_space<vmem>>, %arg5: memref<2x32x96xbf16, #tpu.memory_space<vmem>>, %arg6: memref<2x1x96xf32, #tpu.memory_space<vmem>>, %arg7: memref<2x32x32xbf16, #tpu.memory_space<vmem>>, %arg8: memref<2x1x32xf32, #tpu.memory_space<vmem>>, %arg9: memref<2x1x32xf32, #tpu.memory_space<vmem>>, %arg10: memref<2x1x32xf32, #tpu.memory_space<vmem>>, %arg11: memref<2x32x64xbf16, #tpu.memory_space<vmem>>, %arg12: memref<2x1x64xf32, #tpu.memory_space<vmem>>, %arg13: memref<2x64x32xbf16, #tpu.memory_space<vmem>>, %arg14: memref<2x1x32xf32, #tpu.memory_space<vmem>>, %arg15: memref<2x1x32xf32, #tpu.memory_space<vmem>>, %arg16: memref<2x1x32xf32, #tpu.memory_space<vmem>>, %arg17: memref<32x32xbf16, #tpu.memory_space<vmem>>, %arg18: memref<1x32xf32, #tpu.memory_space<vmem>>, %arg19: memref<32x128xbf16, #tpu.memory_space<vmem>>, %arg20: memref<1x128xf32, #tpu.memory_space<vmem>>, %arg21: memref<2x128xf32, #tpu.memory_space<vmem>>) attributes {dimension_semantics = [#tpu.dimension_semantics<arbitrary>], iteration_bounds = array<i64: 1>, scalar_prefetch = 0 : i64, scratch_operands = 0 : i64, tpu.core_type = #tpu.core_type<tc>, window_params = [{pipeline_mode = #tpu.pipeline_mode<synchronous>, transform_indices = @transform_0, window_bounds = array<i64: 16, 32>}, {pipeline_mode = #tpu.pipeline_mode<synchronous>, transform_indices = @transform_1, window_bounds = array<i64: 2, 8>}, {pipeline_mode = #tpu.pipeline_mode<synchronous>, transform_indices = @transform_2, window_bounds = array<i64: 1, 32>}, {pipeline_mode = #tpu.pipeline_mode<synchronous>, transform_indices = @transform_3, window_bounds = array<i64: 1, 32>}, {pipeline_mode = #tpu.pipeline_mode<synchronous>, transform_indices = @transform_4, window_bounds = array<i64: 2, 32, 96>}, {pipeline_mode = #tpu.pipeline_mode<synchronous>, transform_indices = @transform_5, window_bounds = array<i64: 2, 1, 96>}, {pipeline_mode = #tpu.pipeline_mode<synchronous>, transform_indices = @transform_6, window_bounds = array<i64: 2, 32, 32>}, {pipeline_mode = #tpu.pipeline_mode<synchronous>, transform_indices = @transform_7, window_bounds = array<i64: 2, 1, 32>}, {pipeline_mode = #tpu.pipeline_mode<synchronous>, transform_indices = @transform_8, window_bounds = array<i64: 2, 1, 32>}, {pipeline_mode = #tpu.pipeline_mode<synchronous>, transform_indices = @transform_9, window_bounds = array<i64: 2, 1, 32>}, {pipeline_mode = #tpu.pipeline_mode<synchronous>, transform_indices = @transform_10, window_bounds = array<i64: 2, 32, 64>}, {pipeline_mode = #tpu.pipeline_mode<synchronous>, transform_indices = @transform_11, window_bounds = array<i64: 2, 1, 64>}, {pipeline_mode = #tpu.pipeline_mode<synchronous>, transform_indices = @transform_12, window_bounds = array<i64: 2, 64, 32>}, {pipeline_mode = #tpu.pipeline_mode<synchronous>, transform_indices = @transform_13, window_bounds = array<i64: 2, 1, 32>}, {pipeline_mode = #tpu.pipeline_mode<synchronous>, transform_indices = @transform_14, window_bounds = array<i64: 2, 1, 32>}, {pipeline_mode = #tpu.pipeline_mode<synchronous>, transform_indices = @transform_15, window_bounds = array<i64: 2, 1, 32>}, {pipeline_mode = #tpu.pipeline_mode<synchronous>, transform_indices = @transform_16, window_bounds = array<i64: 32, 32>}, {pipeline_mode = #tpu.pipeline_mode<synchronous>, transform_indices = @transform_17, window_bounds = array<i64: 1, 32>}, {pipeline_mode = #tpu.pipeline_mode<synchronous>, transform_indices = @transform_18, window_bounds = array<i64: 32, 128>}, {pipeline_mode = #tpu.pipeline_mode<synchronous>, transform_indices = @transform_19, window_bounds = array<i64: 1, 128>}, {pipeline_mode = #tpu.pipeline_mode<synchronous>, transform_indices = @transform_20, window_bounds = array<i64: 2, 128>}]} {
    %c0 = arith.constant 0 : index
    %c0_0 = arith.constant 0 : index
    %0 = vector.load %arg1[%c0, %c0_0] : memref<16x32xf32, #tpu.memory_space<vmem>>, vector<16x32xf32>
    %c0_1 = arith.constant 0 : index
    %c0_2 = arith.constant 0 : index
    %1 = vector.load %arg3[%c0_1, %c0_2] : memref<1x32xf32, #tpu.memory_space<vmem>>, vector<1x32xf32>
    %c0_3 = arith.constant 0 : index
    %c0_4 = arith.constant 0 : index
    %2 = vector.load %arg4[%c0_3, %c0_4] : memref<1x32xf32, #tpu.memory_space<vmem>>, vector<1x32xf32>
    %cst = arith.constant dense<0.000000e+00> : vector<16xf32>
    %3 = vector.multi_reduction <add>, %0, %cst [1] : vector<16x32xf32> to vector<16xf32>
    %4 = vector.shape_cast %3 : vector<16xf32> to vector<16x1xf32>
    %cst_5 = arith.constant 3.200000e+01 : f32
    %5 = vector.broadcast %cst_5 : f32 to vector<16x1xf32>
    %6 = arith.divf %4, %5 : vector<16x1xf32>
    %7 = vector.broadcast %6 : vector<16x1xf32> to vector<16x32xf32>
    %8 = arith.subf %0, %7 : vector<16x32xf32>
    %9 = arith.mulf %8, %8 : vector<16x32xf32>
    %cst_6 = arith.constant dense<0.000000e+00> : vector<16xf32>
    %10 = vector.multi_reduction <add>, %9, %cst_6 [1] : vector<16x32xf32> to vector<16xf32>
    %11 = vector.shape_cast %10 : vector<16xf32> to vector<16x1xf32>
    %cst_7 = arith.constant 3.200000e+01 : f32
    %12 = vector.broadcast %cst_7 : f32 to vector<16x1xf32>
    %13 = arith.divf %11, %12 : vector<16x1xf32>
    %cst_8 = arith.constant 9.99999996E-13 : f32
    %14 = vector.broadcast %cst_8 : f32 to vector<16x1xf32>
    %15 = arith.addf %13, %14 : vector<16x1xf32>
    %16 = math.rsqrt %15 : vector<16x1xf32>
    %17 = vector.broadcast %16 : vector<16x1xf32> to vector<16x32xf32>
    %18 = arith.mulf %8, %17 : vector<16x32xf32>
    %19 = vector.broadcast %1 : vector<1x32xf32> to vector<16x32xf32>
    %20 = arith.mulf %18, %19 : vector<16x32xf32>
    %21 = vector.broadcast %2 : vector<1x32xf32> to vector<16x32xf32>
    %22 = arith.addf %20, %21 : vector<16x32xf32>
    %c0_9 = arith.constant 0 : index
    %c0_10 = arith.constant 0 : index
    %23 = vector.load %arg2[%c0_9, %c0_10] : memref<2x8xf32, #tpu.memory_space<vmem>>, vector<2x8xf32>
    %c0_11 = arith.constant 0 : index
    %c0_12 = arith.constant 0 : index
    %c0_13 = arith.constant 0 : index
    %24 = vector.load %arg5[%c0_11, %c0_12, %c0_13] : memref<2x32x96xbf16, #tpu.memory_space<vmem>>, vector<1x32x96xbf16>
    %25 = vector.shape_cast %24 : vector<1x32x96xbf16> to vector<32x96xbf16>
    %26 = arith.truncf %22 : vector<16x32xf32> to vector<16x32xbf16>
    %cst_14 = arith.constant dense<0.000000e+00> : vector<16x96xf32>
    %27 = tpu.matmul %26, %25, %cst_14 {dimension_numbers = #tpu.dot_dimension_numbers<[1], [0], [0], [1], [0, 0, 1, 1], [], []>} : vector<16x32xbf16>, vector<32x96xbf16>, vector<16x96xf32> -> vector<16x96xf32>
    %c0_15 = arith.constant 0 : index
    %c0_16 = arith.constant 0 : index
    %c0_17 = arith.constant 0 : index
    %28 = vector.load %arg6[%c0_15, %c0_16, %c0_17] : memref<2x1x96xf32, #tpu.memory_space<vmem>>, vector<1x1x96xf32>
    %29 = vector.shape_cast %28 : vector<1x1x96xf32> to vector<1x96xf32>
    %30 = vector.broadcast %29 : vector<1x96xf32> to vector<16x96xf32>
    %31 = arith.addf %27, %30 : vector<16x96xf32>
    %32 = vector.extract_strided_slice %23 {offsets = [0, 0], sizes = [1, 8], strides = [1, 1]} : vector<2x8xf32> to vector<1x8xf32>
    %33 = vector.extract_strided_slice %31 {offsets = [0, 0], sizes = [8, 16], strides = [1, 1]} : vector<16x96xf32> to vector<8x16xf32>
    %34 = vector.extract_strided_slice %31 {offsets = [0, 32], sizes = [8, 16], strides = [1, 1]} : vector<16x96xf32> to vector<8x16xf32>
    %35 = vector.extract_strided_slice %31 {offsets = [0, 64], sizes = [8, 16], strides = [1, 1]} : vector<16x96xf32> to vector<8x16xf32>
    %cst_18 = arith.constant dense<0.000000e+00> : vector<8x8xf32>
    %36 = tpu.matmul %33, %34, %cst_18 {dimension_numbers = #tpu.dot_dimension_numbers<[1], [1], [0], [0], [0, 0, 1, 0], [], []>} : vector<8x16xf32>, vector<8x16xf32>, vector<8x8xf32> -> vector<8x8xf32>
    %cst_19 = arith.constant 2.500000e-01 : f32
    %37 = vector.broadcast %cst_19 : f32 to vector<8x8xf32>
    %38 = arith.mulf %36, %37 : vector<8x8xf32>
    %39 = vector.broadcast %32 : vector<1x8xf32> to vector<8x8xf32>
    %40 = arith.addf %38, %39 : vector<8x8xf32>
    %cst_20 = arith.constant dense<0xFF800000> : vector<8xf32>
    %41 = vector.multi_reduction <maximumf>, %40, %cst_20 [1] : vector<8x8xf32> to vector<8xf32>
    %42 = vector.shape_cast %41 : vector<8xf32> to vector<8x1xf32>
    %43 = vector.broadcast %42 : vector<8x1xf32> to vector<8x8xf32>
    %44 = arith.subf %40, %43 : vector<8x8xf32>
    %45 = math.exp %44 : vector<8x8xf32>
    %cst_21 = arith.constant dense<0.000000e+00> : vector<8xf32>
    %46 = vector.multi_reduction <add>, %45, %cst_21 [1] : vector<8x8xf32> to vector<8xf32>
    %47 = vector.shape_cast %46 : vector<8xf32> to vector<8x1xf32>
    %48 = tpu.reciprocal %47 {approx = true} : vector<8x1xf32> -> vector<8x1xf32>
    %49 = vector.broadcast %48 : vector<8x1xf32> to vector<8x8xf32>
    %50 = arith.mulf %45, %49 : vector<8x8xf32>
    %cst_22 = arith.constant dense<0.000000e+00> : vector<8x16xf32>
    %51 = tpu.matmul %50, %35, %cst_22 {dimension_numbers = #tpu.dot_dimension_numbers<[1], [0], [0], [1], [0, 0, 1, 1], [], []>} : vector<8x8xf32>, vector<8x16xf32>, vector<8x16xf32> -> vector<8x16xf32>
    %52 = vector.extract_strided_slice %31 {offsets = [0, 16], sizes = [8, 16], strides = [1, 1]} : vector<16x96xf32> to vector<8x16xf32>
    %53 = vector.extract_strided_slice %31 {offsets = [0, 48], sizes = [8, 16], strides = [1, 1]} : vector<16x96xf32> to vector<8x16xf32>
    %54 = vector.extract_strided_slice %31 {offsets = [0, 80], sizes = [8, 16], strides = [1, 1]} : vector<16x96xf32> to vector<8x16xf32>
    %cst_23 = arith.constant dense<0.000000e+00> : vector<8x8xf32>
    %55 = tpu.matmul %52, %53, %cst_23 {dimension_numbers = #tpu.dot_dimension_numbers<[1], [1], [0], [0], [0, 0, 1, 0], [], []>} : vector<8x16xf32>, vector<8x16xf32>, vector<8x8xf32> -> vector<8x8xf32>
    %cst_24 = arith.constant 2.500000e-01 : f32
    %56 = vector.broadcast %cst_24 : f32 to vector<8x8xf32>
    %57 = arith.mulf %55, %56 : vector<8x8xf32>
    %58 = vector.broadcast %32 : vector<1x8xf32> to vector<8x8xf32>
    %59 = arith.addf %57, %58 : vector<8x8xf32>
    %cst_25 = arith.constant dense<0xFF800000> : vector<8xf32>
    %60 = vector.multi_reduction <maximumf>, %59, %cst_25 [1] : vector<8x8xf32> to vector<8xf32>
    %61 = vector.shape_cast %60 : vector<8xf32> to vector<8x1xf32>
    %62 = vector.broadcast %61 : vector<8x1xf32> to vector<8x8xf32>
    %63 = arith.subf %59, %62 : vector<8x8xf32>
    %64 = math.exp %63 : vector<8x8xf32>
    %cst_26 = arith.constant dense<0.000000e+00> : vector<8xf32>
    %65 = vector.multi_reduction <add>, %64, %cst_26 [1] : vector<8x8xf32> to vector<8xf32>
    %66 = vector.shape_cast %65 : vector<8xf32> to vector<8x1xf32>
    %67 = tpu.reciprocal %66 {approx = true} : vector<8x1xf32> -> vector<8x1xf32>
    %68 = vector.broadcast %67 : vector<8x1xf32> to vector<8x8xf32>
    %69 = arith.mulf %64, %68 : vector<8x8xf32>
    %cst_27 = arith.constant dense<0.000000e+00> : vector<8x16xf32>
    %70 = tpu.matmul %69, %54, %cst_27 {dimension_numbers = #tpu.dot_dimension_numbers<[1], [0], [0], [1], [0, 0, 1, 1], [], []>} : vector<8x8xf32>, vector<8x16xf32>, vector<8x16xf32> -> vector<8x16xf32>
    %71 = tpu.concatenate %51, %70 in 1 : vector<8x16xf32>, vector<8x16xf32> -> vector<8x32xf32>
    %72 = vector.extract_strided_slice %23 {offsets = [1, 0], sizes = [1, 8], strides = [1, 1]} : vector<2x8xf32> to vector<1x8xf32>
    %73 = vector.extract_strided_slice %31 {offsets = [8, 0], sizes = [8, 16], strides = [1, 1]} : vector<16x96xf32> to vector<8x16xf32>
    %74 = vector.extract_strided_slice %31 {offsets = [8, 32], sizes = [8, 16], strides = [1, 1]} : vector<16x96xf32> to vector<8x16xf32>
    %75 = vector.extract_strided_slice %31 {offsets = [8, 64], sizes = [8, 16], strides = [1, 1]} : vector<16x96xf32> to vector<8x16xf32>
    %cst_28 = arith.constant dense<0.000000e+00> : vector<8x8xf32>
    %76 = tpu.matmul %73, %74, %cst_28 {dimension_numbers = #tpu.dot_dimension_numbers<[1], [1], [0], [0], [0, 0, 1, 0], [], []>} : vector<8x16xf32>, vector<8x16xf32>, vector<8x8xf32> -> vector<8x8xf32>
    %cst_29 = arith.constant 2.500000e-01 : f32
    %77 = vector.broadcast %cst_29 : f32 to vector<8x8xf32>
    %78 = arith.mulf %76, %77 : vector<8x8xf32>
    %79 = vector.broadcast %72 : vector<1x8xf32> to vector<8x8xf32>
    %80 = arith.addf %78, %79 : vector<8x8xf32>
    %cst_30 = arith.constant dense<0xFF800000> : vector<8xf32>
    %81 = vector.multi_reduction <maximumf>, %80, %cst_30 [1] : vector<8x8xf32> to vector<8xf32>
    %82 = vector.shape_cast %81 : vector<8xf32> to vector<8x1xf32>
    %83 = vector.broadcast %82 : vector<8x1xf32> to vector<8x8xf32>
    %84 = arith.subf %80, %83 : vector<8x8xf32>
    %85 = math.exp %84 : vector<8x8xf32>
    %cst_31 = arith.constant dense<0.000000e+00> : vector<8xf32>
    %86 = vector.multi_reduction <add>, %85, %cst_31 [1] : vector<8x8xf32> to vector<8xf32>
    %87 = vector.shape_cast %86 : vector<8xf32> to vector<8x1xf32>
    %88 = tpu.reciprocal %87 {approx = true} : vector<8x1xf32> -> vector<8x1xf32>
    %89 = vector.broadcast %88 : vector<8x1xf32> to vector<8x8xf32>
    %90 = arith.mulf %85, %89 : vector<8x8xf32>
    %cst_32 = arith.constant dense<0.000000e+00> : vector<8x16xf32>
    %91 = tpu.matmul %90, %75, %cst_32 {dimension_numbers = #tpu.dot_dimension_numbers<[1], [0], [0], [1], [0, 0, 1, 1], [], []>} : vector<8x8xf32>, vector<8x16xf32>, vector<8x16xf32> -> vector<8x16xf32>
    %92 = vector.extract_strided_slice %31 {offsets = [8, 16], sizes = [8, 16], strides = [1, 1]} : vector<16x96xf32> to vector<8x16xf32>
    %93 = vector.extract_strided_slice %31 {offsets = [8, 48], sizes = [8, 16], strides = [1, 1]} : vector<16x96xf32> to vector<8x16xf32>
    %94 = vector.extract_strided_slice %31 {offsets = [8, 80], sizes = [8, 16], strides = [1, 1]} : vector<16x96xf32> to vector<8x16xf32>
    %cst_33 = arith.constant dense<0.000000e+00> : vector<8x8xf32>
    %95 = tpu.matmul %92, %93, %cst_33 {dimension_numbers = #tpu.dot_dimension_numbers<[1], [1], [0], [0], [0, 0, 1, 0], [], []>} : vector<8x16xf32>, vector<8x16xf32>, vector<8x8xf32> -> vector<8x8xf32>
    %cst_34 = arith.constant 2.500000e-01 : f32
    %96 = vector.broadcast %cst_34 : f32 to vector<8x8xf32>
    %97 = arith.mulf %95, %96 : vector<8x8xf32>
    %98 = vector.broadcast %72 : vector<1x8xf32> to vector<8x8xf32>
    %99 = arith.addf %97, %98 : vector<8x8xf32>
    %cst_35 = arith.constant dense<0xFF800000> : vector<8xf32>
    %100 = vector.multi_reduction <maximumf>, %99, %cst_35 [1] : vector<8x8xf32> to vector<8xf32>
    %101 = vector.shape_cast %100 : vector<8xf32> to vector<8x1xf32>
    %102 = vector.broadcast %101 : vector<8x1xf32> to vector<8x8xf32>
    %103 = arith.subf %99, %102 : vector<8x8xf32>
    %104 = math.exp %103 : vector<8x8xf32>
    %cst_36 = arith.constant dense<0.000000e+00> : vector<8xf32>
    %105 = vector.multi_reduction <add>, %104, %cst_36 [1] : vector<8x8xf32> to vector<8xf32>
    %106 = vector.shape_cast %105 : vector<8xf32> to vector<8x1xf32>
    %107 = tpu.reciprocal %106 {approx = true} : vector<8x1xf32> -> vector<8x1xf32>
    %108 = vector.broadcast %107 : vector<8x1xf32> to vector<8x8xf32>
    %109 = arith.mulf %104, %108 : vector<8x8xf32>
    %cst_37 = arith.constant dense<0.000000e+00> : vector<8x16xf32>
    %110 = tpu.matmul %109, %94, %cst_37 {dimension_numbers = #tpu.dot_dimension_numbers<[1], [0], [0], [1], [0, 0, 1, 1], [], []>} : vector<8x8xf32>, vector<8x16xf32>, vector<8x16xf32> -> vector<8x16xf32>
    %111 = tpu.concatenate %91, %110 in 1 : vector<8x16xf32>, vector<8x16xf32> -> vector<8x32xf32>
    %112 = tpu.concatenate %71, %111 in 0 : vector<8x32xf32>, vector<8x32xf32> -> vector<16x32xf32>
    %c0_38 = arith.constant 0 : index
    %c0_39 = arith.constant 0 : index
    %c0_40 = arith.constant 0 : index
    %113 = vector.load %arg7[%c0_38, %c0_39, %c0_40] : memref<2x32x32xbf16, #tpu.memory_space<vmem>>, vector<1x32x32xbf16>
    %114 = vector.shape_cast %113 : vector<1x32x32xbf16> to vector<32x32xbf16>
    %115 = arith.truncf %112 : vector<16x32xf32> to vector<16x32xbf16>
    %cst_41 = arith.constant dense<0.000000e+00> : vector<16x32xf32>
    %116 = tpu.matmul %115, %114, %cst_41 {dimension_numbers = #tpu.dot_dimension_numbers<[1], [0], [0], [1], [0, 0, 1, 1], [], []>} : vector<16x32xbf16>, vector<32x32xbf16>, vector<16x32xf32> -> vector<16x32xf32>
    %c0_42 = arith.constant 0 : index
    %c0_43 = arith.constant 0 : index
    %c0_44 = arith.constant 0 : index
    %117 = vector.load %arg8[%c0_42, %c0_43, %c0_44] : memref<2x1x32xf32, #tpu.memory_space<vmem>>, vector<1x1x32xf32>
    %118 = vector.shape_cast %117 : vector<1x1x32xf32> to vector<1x32xf32>
    %119 = vector.broadcast %118 : vector<1x32xf32> to vector<16x32xf32>
    %120 = arith.addf %116, %119 : vector<16x32xf32>
    %121 = arith.addf %120, %22 : vector<16x32xf32>
    %c0_45 = arith.constant 0 : index
    %c0_46 = arith.constant 0 : index
    %c0_47 = arith.constant 0 : index
    %122 = vector.load %arg9[%c0_45, %c0_46, %c0_47] : memref<2x1x32xf32, #tpu.memory_space<vmem>>, vector<1x1x32xf32>
    %123 = vector.shape_cast %122 : vector<1x1x32xf32> to vector<1x32xf32>
    %c0_48 = arith.constant 0 : index
    %c0_49 = arith.constant 0 : index
    %c0_50 = arith.constant 0 : index
    %124 = vector.load %arg10[%c0_48, %c0_49, %c0_50] : memref<2x1x32xf32, #tpu.memory_space<vmem>>, vector<1x1x32xf32>
    %125 = vector.shape_cast %124 : vector<1x1x32xf32> to vector<1x32xf32>
    %cst_51 = arith.constant dense<0.000000e+00> : vector<16xf32>
    %126 = vector.multi_reduction <add>, %121, %cst_51 [1] : vector<16x32xf32> to vector<16xf32>
    %127 = vector.shape_cast %126 : vector<16xf32> to vector<16x1xf32>
    %cst_52 = arith.constant 3.200000e+01 : f32
    %128 = vector.broadcast %cst_52 : f32 to vector<16x1xf32>
    %129 = arith.divf %127, %128 : vector<16x1xf32>
    %130 = vector.broadcast %129 : vector<16x1xf32> to vector<16x32xf32>
    %131 = arith.subf %121, %130 : vector<16x32xf32>
    %132 = arith.mulf %131, %131 : vector<16x32xf32>
    %cst_53 = arith.constant dense<0.000000e+00> : vector<16xf32>
    %133 = vector.multi_reduction <add>, %132, %cst_53 [1] : vector<16x32xf32> to vector<16xf32>
    %134 = vector.shape_cast %133 : vector<16xf32> to vector<16x1xf32>
    %cst_54 = arith.constant 3.200000e+01 : f32
    %135 = vector.broadcast %cst_54 : f32 to vector<16x1xf32>
    %136 = arith.divf %134, %135 : vector<16x1xf32>
    %cst_55 = arith.constant 9.99999996E-13 : f32
    %137 = vector.broadcast %cst_55 : f32 to vector<16x1xf32>
    %138 = arith.addf %136, %137 : vector<16x1xf32>
    %139 = math.rsqrt %138 : vector<16x1xf32>
    %140 = vector.broadcast %139 : vector<16x1xf32> to vector<16x32xf32>
    %141 = arith.mulf %131, %140 : vector<16x32xf32>
    %142 = vector.broadcast %123 : vector<1x32xf32> to vector<16x32xf32>
    %143 = arith.mulf %141, %142 : vector<16x32xf32>
    %144 = vector.broadcast %125 : vector<1x32xf32> to vector<16x32xf32>
    %145 = arith.addf %143, %144 : vector<16x32xf32>
    %c0_56 = arith.constant 0 : index
    %c0_57 = arith.constant 0 : index
    %c0_58 = arith.constant 0 : index
    %146 = vector.load %arg11[%c0_56, %c0_57, %c0_58] : memref<2x32x64xbf16, #tpu.memory_space<vmem>>, vector<1x32x64xbf16>
    %147 = vector.shape_cast %146 : vector<1x32x64xbf16> to vector<32x64xbf16>
    %148 = arith.truncf %145 : vector<16x32xf32> to vector<16x32xbf16>
    %cst_59 = arith.constant dense<0.000000e+00> : vector<16x64xf32>
    %149 = tpu.matmul %148, %147, %cst_59 {dimension_numbers = #tpu.dot_dimension_numbers<[1], [0], [0], [1], [0, 0, 1, 1], [], []>} : vector<16x32xbf16>, vector<32x64xbf16>, vector<16x64xf32> -> vector<16x64xf32>
    %c0_60 = arith.constant 0 : index
    %c0_61 = arith.constant 0 : index
    %c0_62 = arith.constant 0 : index
    %150 = vector.load %arg12[%c0_60, %c0_61, %c0_62] : memref<2x1x64xf32, #tpu.memory_space<vmem>>, vector<1x1x64xf32>
    %151 = vector.shape_cast %150 : vector<1x1x64xf32> to vector<1x64xf32>
    %152 = vector.broadcast %151 : vector<1x64xf32> to vector<16x64xf32>
    %153 = arith.addf %149, %152 : vector<16x64xf32>
    %cst_63 = arith.constant 5.000000e-01 : f32
    %154 = vector.broadcast %cst_63 : f32 to vector<16x64xf32>
    %155 = arith.mulf %154, %153 : vector<16x64xf32>
    %cst_64 = arith.constant 4.471500e-02 : f32
    %156 = vector.broadcast %cst_64 : f32 to vector<16x64xf32>
    %157 = arith.mulf %156, %153 : vector<16x64xf32>
    %158 = arith.mulf %157, %153 : vector<16x64xf32>
    %159 = arith.mulf %158, %153 : vector<16x64xf32>
    %160 = arith.addf %153, %159 : vector<16x64xf32>
    %cst_65 = arith.constant 0.797884583 : f32
    %161 = vector.broadcast %cst_65 : f32 to vector<16x64xf32>
    %162 = arith.mulf %161, %160 : vector<16x64xf32>
    %163 = math.tanh %162 : vector<16x64xf32>
    %cst_66 = arith.constant 1.000000e+00 : f32
    %164 = vector.broadcast %cst_66 : f32 to vector<16x64xf32>
    %165 = arith.addf %164, %163 : vector<16x64xf32>
    %166 = arith.mulf %155, %165 : vector<16x64xf32>
    %c0_67 = arith.constant 0 : index
    %c0_68 = arith.constant 0 : index
    %c0_69 = arith.constant 0 : index
    %167 = vector.load %arg13[%c0_67, %c0_68, %c0_69] : memref<2x64x32xbf16, #tpu.memory_space<vmem>>, vector<1x64x32xbf16>
    %168 = vector.shape_cast %167 : vector<1x64x32xbf16> to vector<64x32xbf16>
    %169 = arith.truncf %166 : vector<16x64xf32> to vector<16x64xbf16>
    %cst_70 = arith.constant dense<0.000000e+00> : vector<16x32xf32>
    %170 = tpu.matmul %169, %168, %cst_70 {dimension_numbers = #tpu.dot_dimension_numbers<[1], [0], [0], [1], [0, 0, 1, 1], [], []>} : vector<16x64xbf16>, vector<64x32xbf16>, vector<16x32xf32> -> vector<16x32xf32>
    %c0_71 = arith.constant 0 : index
    %c0_72 = arith.constant 0 : index
    %c0_73 = arith.constant 0 : index
    %171 = vector.load %arg14[%c0_71, %c0_72, %c0_73] : memref<2x1x32xf32, #tpu.memory_space<vmem>>, vector<1x1x32xf32>
    %172 = vector.shape_cast %171 : vector<1x1x32xf32> to vector<1x32xf32>
    %173 = vector.broadcast %172 : vector<1x32xf32> to vector<16x32xf32>
    %174 = arith.addf %170, %173 : vector<16x32xf32>
    %175 = arith.addf %174, %145 : vector<16x32xf32>
    %c0_74 = arith.constant 0 : index
    %c0_75 = arith.constant 0 : index
    %c0_76 = arith.constant 0 : index
    %176 = vector.load %arg15[%c0_74, %c0_75, %c0_76] : memref<2x1x32xf32, #tpu.memory_space<vmem>>, vector<1x1x32xf32>
    %177 = vector.shape_cast %176 : vector<1x1x32xf32> to vector<1x32xf32>
    %c0_77 = arith.constant 0 : index
    %c0_78 = arith.constant 0 : index
    %c0_79 = arith.constant 0 : index
    %178 = vector.load %arg16[%c0_77, %c0_78, %c0_79] : memref<2x1x32xf32, #tpu.memory_space<vmem>>, vector<1x1x32xf32>
    %179 = vector.shape_cast %178 : vector<1x1x32xf32> to vector<1x32xf32>
    %cst_80 = arith.constant dense<0.000000e+00> : vector<16xf32>
    %180 = vector.multi_reduction <add>, %175, %cst_80 [1] : vector<16x32xf32> to vector<16xf32>
    %181 = vector.shape_cast %180 : vector<16xf32> to vector<16x1xf32>
    %cst_81 = arith.constant 3.200000e+01 : f32
    %182 = vector.broadcast %cst_81 : f32 to vector<16x1xf32>
    %183 = arith.divf %181, %182 : vector<16x1xf32>
    %184 = vector.broadcast %183 : vector<16x1xf32> to vector<16x32xf32>
    %185 = arith.subf %175, %184 : vector<16x32xf32>
    %186 = arith.mulf %185, %185 : vector<16x32xf32>
    %cst_82 = arith.constant dense<0.000000e+00> : vector<16xf32>
    %187 = vector.multi_reduction <add>, %186, %cst_82 [1] : vector<16x32xf32> to vector<16xf32>
    %188 = vector.shape_cast %187 : vector<16xf32> to vector<16x1xf32>
    %cst_83 = arith.constant 3.200000e+01 : f32
    %189 = vector.broadcast %cst_83 : f32 to vector<16x1xf32>
    %190 = arith.divf %188, %189 : vector<16x1xf32>
    %cst_84 = arith.constant 9.99999996E-13 : f32
    %191 = vector.broadcast %cst_84 : f32 to vector<16x1xf32>
    %192 = arith.addf %190, %191 : vector<16x1xf32>
    %193 = math.rsqrt %192 : vector<16x1xf32>
    %194 = vector.broadcast %193 : vector<16x1xf32> to vector<16x32xf32>
    %195 = arith.mulf %185, %194 : vector<16x32xf32>
    %196 = vector.broadcast %177 : vector<1x32xf32> to vector<16x32xf32>
    %197 = arith.mulf %195, %196 : vector<16x32xf32>
    %198 = vector.broadcast %179 : vector<1x32xf32> to vector<16x32xf32>
    %199 = arith.addf %197, %198 : vector<16x32xf32>
    %c1 = arith.constant 1 : index
    %c0_85 = arith.constant 0 : index
    %c0_86 = arith.constant 0 : index
    %200 = vector.load %arg5[%c1, %c0_85, %c0_86] : memref<2x32x96xbf16, #tpu.memory_space<vmem>>, vector<1x32x96xbf16>
    %201 = vector.shape_cast %200 : vector<1x32x96xbf16> to vector<32x96xbf16>
    %202 = arith.truncf %199 : vector<16x32xf32> to vector<16x32xbf16>
    %cst_87 = arith.constant dense<0.000000e+00> : vector<16x96xf32>
    %203 = tpu.matmul %202, %201, %cst_87 {dimension_numbers = #tpu.dot_dimension_numbers<[1], [0], [0], [1], [0, 0, 1, 1], [], []>} : vector<16x32xbf16>, vector<32x96xbf16>, vector<16x96xf32> -> vector<16x96xf32>
    %c1_88 = arith.constant 1 : index
    %c0_89 = arith.constant 0 : index
    %c0_90 = arith.constant 0 : index
    %204 = vector.load %arg6[%c1_88, %c0_89, %c0_90] : memref<2x1x96xf32, #tpu.memory_space<vmem>>, vector<1x1x96xf32>
    %205 = vector.shape_cast %204 : vector<1x1x96xf32> to vector<1x96xf32>
    %206 = vector.broadcast %205 : vector<1x96xf32> to vector<16x96xf32>
    %207 = arith.addf %203, %206 : vector<16x96xf32>
    %208 = vector.extract_strided_slice %23 {offsets = [0, 0], sizes = [1, 8], strides = [1, 1]} : vector<2x8xf32> to vector<1x8xf32>
    %209 = vector.extract_strided_slice %207 {offsets = [0, 0], sizes = [8, 16], strides = [1, 1]} : vector<16x96xf32> to vector<8x16xf32>
    %210 = vector.extract_strided_slice %207 {offsets = [0, 32], sizes = [8, 16], strides = [1, 1]} : vector<16x96xf32> to vector<8x16xf32>
    %211 = vector.extract_strided_slice %207 {offsets = [0, 64], sizes = [8, 16], strides = [1, 1]} : vector<16x96xf32> to vector<8x16xf32>
    %cst_91 = arith.constant dense<0.000000e+00> : vector<8x8xf32>
    %212 = tpu.matmul %209, %210, %cst_91 {dimension_numbers = #tpu.dot_dimension_numbers<[1], [1], [0], [0], [0, 0, 1, 0], [], []>} : vector<8x16xf32>, vector<8x16xf32>, vector<8x8xf32> -> vector<8x8xf32>
    %cst_92 = arith.constant 2.500000e-01 : f32
    %213 = vector.broadcast %cst_92 : f32 to vector<8x8xf32>
    %214 = arith.mulf %212, %213 : vector<8x8xf32>
    %215 = vector.broadcast %208 : vector<1x8xf32> to vector<8x8xf32>
    %216 = arith.addf %214, %215 : vector<8x8xf32>
    %cst_93 = arith.constant dense<0xFF800000> : vector<8xf32>
    %217 = vector.multi_reduction <maximumf>, %216, %cst_93 [1] : vector<8x8xf32> to vector<8xf32>
    %218 = vector.shape_cast %217 : vector<8xf32> to vector<8x1xf32>
    %219 = vector.broadcast %218 : vector<8x1xf32> to vector<8x8xf32>
    %220 = arith.subf %216, %219 : vector<8x8xf32>
    %221 = math.exp %220 : vector<8x8xf32>
    %cst_94 = arith.constant dense<0.000000e+00> : vector<8xf32>
    %222 = vector.multi_reduction <add>, %221, %cst_94 [1] : vector<8x8xf32> to vector<8xf32>
    %223 = vector.shape_cast %222 : vector<8xf32> to vector<8x1xf32>
    %224 = tpu.reciprocal %223 {approx = true} : vector<8x1xf32> -> vector<8x1xf32>
    %225 = vector.broadcast %224 : vector<8x1xf32> to vector<8x8xf32>
    %226 = arith.mulf %221, %225 : vector<8x8xf32>
    %cst_95 = arith.constant dense<0.000000e+00> : vector<8x16xf32>
    %227 = tpu.matmul %226, %211, %cst_95 {dimension_numbers = #tpu.dot_dimension_numbers<[1], [0], [0], [1], [0, 0, 1, 1], [], []>} : vector<8x8xf32>, vector<8x16xf32>, vector<8x16xf32> -> vector<8x16xf32>
    %228 = vector.extract_strided_slice %207 {offsets = [0, 16], sizes = [8, 16], strides = [1, 1]} : vector<16x96xf32> to vector<8x16xf32>
    %229 = vector.extract_strided_slice %207 {offsets = [0, 48], sizes = [8, 16], strides = [1, 1]} : vector<16x96xf32> to vector<8x16xf32>
    %230 = vector.extract_strided_slice %207 {offsets = [0, 80], sizes = [8, 16], strides = [1, 1]} : vector<16x96xf32> to vector<8x16xf32>
    %cst_96 = arith.constant dense<0.000000e+00> : vector<8x8xf32>
    %231 = tpu.matmul %228, %229, %cst_96 {dimension_numbers = #tpu.dot_dimension_numbers<[1], [1], [0], [0], [0, 0, 1, 0], [], []>} : vector<8x16xf32>, vector<8x16xf32>, vector<8x8xf32> -> vector<8x8xf32>
    %cst_97 = arith.constant 2.500000e-01 : f32
    %232 = vector.broadcast %cst_97 : f32 to vector<8x8xf32>
    %233 = arith.mulf %231, %232 : vector<8x8xf32>
    %234 = vector.broadcast %208 : vector<1x8xf32> to vector<8x8xf32>
    %235 = arith.addf %233, %234 : vector<8x8xf32>
    %cst_98 = arith.constant dense<0xFF800000> : vector<8xf32>
    %236 = vector.multi_reduction <maximumf>, %235, %cst_98 [1] : vector<8x8xf32> to vector<8xf32>
    %237 = vector.shape_cast %236 : vector<8xf32> to vector<8x1xf32>
    %238 = vector.broadcast %237 : vector<8x1xf32> to vector<8x8xf32>
    %239 = arith.subf %235, %238 : vector<8x8xf32>
    %240 = math.exp %239 : vector<8x8xf32>
    %cst_99 = arith.constant dense<0.000000e+00> : vector<8xf32>
    %241 = vector.multi_reduction <add>, %240, %cst_99 [1] : vector<8x8xf32> to vector<8xf32>
    %242 = vector.shape_cast %241 : vector<8xf32> to vector<8x1xf32>
    %243 = tpu.reciprocal %242 {approx = true} : vector<8x1xf32> -> vector<8x1xf32>
    %244 = vector.broadcast %243 : vector<8x1xf32> to vector<8x8xf32>
    %245 = arith.mulf %240, %244 : vector<8x8xf32>
    %cst_100 = arith.constant dense<0.000000e+00> : vector<8x16xf32>
    %246 = tpu.matmul %245, %230, %cst_100 {dimension_numbers = #tpu.dot_dimension_numbers<[1], [0], [0], [1], [0, 0, 1, 1], [], []>} : vector<8x8xf32>, vector<8x16xf32>, vector<8x16xf32> -> vector<8x16xf32>
    %247 = tpu.concatenate %227, %246 in 1 : vector<8x16xf32>, vector<8x16xf32> -> vector<8x32xf32>
    %248 = vector.extract_strided_slice %23 {offsets = [1, 0], sizes = [1, 8], strides = [1, 1]} : vector<2x8xf32> to vector<1x8xf32>
    %249 = vector.extract_strided_slice %207 {offsets = [8, 0], sizes = [8, 16], strides = [1, 1]} : vector<16x96xf32> to vector<8x16xf32>
    %250 = vector.extract_strided_slice %207 {offsets = [8, 32], sizes = [8, 16], strides = [1, 1]} : vector<16x96xf32> to vector<8x16xf32>
    %251 = vector.extract_strided_slice %207 {offsets = [8, 64], sizes = [8, 16], strides = [1, 1]} : vector<16x96xf32> to vector<8x16xf32>
    %cst_101 = arith.constant dense<0.000000e+00> : vector<8x8xf32>
    %252 = tpu.matmul %249, %250, %cst_101 {dimension_numbers = #tpu.dot_dimension_numbers<[1], [1], [0], [0], [0, 0, 1, 0], [], []>} : vector<8x16xf32>, vector<8x16xf32>, vector<8x8xf32> -> vector<8x8xf32>
    %cst_102 = arith.constant 2.500000e-01 : f32
    %253 = vector.broadcast %cst_102 : f32 to vector<8x8xf32>
    %254 = arith.mulf %252, %253 : vector<8x8xf32>
    %255 = vector.broadcast %248 : vector<1x8xf32> to vector<8x8xf32>
    %256 = arith.addf %254, %255 : vector<8x8xf32>
    %cst_103 = arith.constant dense<0xFF800000> : vector<8xf32>
    %257 = vector.multi_reduction <maximumf>, %256, %cst_103 [1] : vector<8x8xf32> to vector<8xf32>
    %258 = vector.shape_cast %257 : vector<8xf32> to vector<8x1xf32>
    %259 = vector.broadcast %258 : vector<8x1xf32> to vector<8x8xf32>
    %260 = arith.subf %256, %259 : vector<8x8xf32>
    %261 = math.exp %260 : vector<8x8xf32>
    %cst_104 = arith.constant dense<0.000000e+00> : vector<8xf32>
    %262 = vector.multi_reduction <add>, %261, %cst_104 [1] : vector<8x8xf32> to vector<8xf32>
    %263 = vector.shape_cast %262 : vector<8xf32> to vector<8x1xf32>
    %264 = tpu.reciprocal %263 {approx = true} : vector<8x1xf32> -> vector<8x1xf32>
    %265 = vector.broadcast %264 : vector<8x1xf32> to vector<8x8xf32>
    %266 = arith.mulf %261, %265 : vector<8x8xf32>
    %cst_105 = arith.constant dense<0.000000e+00> : vector<8x16xf32>
    %267 = tpu.matmul %266, %251, %cst_105 {dimension_numbers = #tpu.dot_dimension_numbers<[1], [0], [0], [1], [0, 0, 1, 1], [], []>} : vector<8x8xf32>, vector<8x16xf32>, vector<8x16xf32> -> vector<8x16xf32>
    %268 = vector.extract_strided_slice %207 {offsets = [8, 16], sizes = [8, 16], strides = [1, 1]} : vector<16x96xf32> to vector<8x16xf32>
    %269 = vector.extract_strided_slice %207 {offsets = [8, 48], sizes = [8, 16], strides = [1, 1]} : vector<16x96xf32> to vector<8x16xf32>
    %270 = vector.extract_strided_slice %207 {offsets = [8, 80], sizes = [8, 16], strides = [1, 1]} : vector<16x96xf32> to vector<8x16xf32>
    %cst_106 = arith.constant dense<0.000000e+00> : vector<8x8xf32>
    %271 = tpu.matmul %268, %269, %cst_106 {dimension_numbers = #tpu.dot_dimension_numbers<[1], [1], [0], [0], [0, 0, 1, 0], [], []>} : vector<8x16xf32>, vector<8x16xf32>, vector<8x8xf32> -> vector<8x8xf32>
    %cst_107 = arith.constant 2.500000e-01 : f32
    %272 = vector.broadcast %cst_107 : f32 to vector<8x8xf32>
    %273 = arith.mulf %271, %272 : vector<8x8xf32>
    %274 = vector.broadcast %248 : vector<1x8xf32> to vector<8x8xf32>
    %275 = arith.addf %273, %274 : vector<8x8xf32>
    %cst_108 = arith.constant dense<0xFF800000> : vector<8xf32>
    %276 = vector.multi_reduction <maximumf>, %275, %cst_108 [1] : vector<8x8xf32> to vector<8xf32>
    %277 = vector.shape_cast %276 : vector<8xf32> to vector<8x1xf32>
    %278 = vector.broadcast %277 : vector<8x1xf32> to vector<8x8xf32>
    %279 = arith.subf %275, %278 : vector<8x8xf32>
    %280 = math.exp %279 : vector<8x8xf32>
    %cst_109 = arith.constant dense<0.000000e+00> : vector<8xf32>
    %281 = vector.multi_reduction <add>, %280, %cst_109 [1] : vector<8x8xf32> to vector<8xf32>
    %282 = vector.shape_cast %281 : vector<8xf32> to vector<8x1xf32>
    %283 = tpu.reciprocal %282 {approx = true} : vector<8x1xf32> -> vector<8x1xf32>
    %284 = vector.broadcast %283 : vector<8x1xf32> to vector<8x8xf32>
    %285 = arith.mulf %280, %284 : vector<8x8xf32>
    %cst_110 = arith.constant dense<0.000000e+00> : vector<8x16xf32>
    %286 = tpu.matmul %285, %270, %cst_110 {dimension_numbers = #tpu.dot_dimension_numbers<[1], [0], [0], [1], [0, 0, 1, 1], [], []>} : vector<8x8xf32>, vector<8x16xf32>, vector<8x16xf32> -> vector<8x16xf32>
    %287 = tpu.concatenate %267, %286 in 1 : vector<8x16xf32>, vector<8x16xf32> -> vector<8x32xf32>
    %288 = tpu.concatenate %247, %287 in 0 : vector<8x32xf32>, vector<8x32xf32> -> vector<16x32xf32>
    %c1_111 = arith.constant 1 : index
    %c0_112 = arith.constant 0 : index
    %c0_113 = arith.constant 0 : index
    %289 = vector.load %arg7[%c1_111, %c0_112, %c0_113] : memref<2x32x32xbf16, #tpu.memory_space<vmem>>, vector<1x32x32xbf16>
    %290 = vector.shape_cast %289 : vector<1x32x32xbf16> to vector<32x32xbf16>
    %291 = arith.truncf %288 : vector<16x32xf32> to vector<16x32xbf16>
    %cst_114 = arith.constant dense<0.000000e+00> : vector<16x32xf32>
    %292 = tpu.matmul %291, %290, %cst_114 {dimension_numbers = #tpu.dot_dimension_numbers<[1], [0], [0], [1], [0, 0, 1, 1], [], []>} : vector<16x32xbf16>, vector<32x32xbf16>, vector<16x32xf32> -> vector<16x32xf32>
    %c1_115 = arith.constant 1 : index
    %c0_116 = arith.constant 0 : index
    %c0_117 = arith.constant 0 : index
    %293 = vector.load %arg8[%c1_115, %c0_116, %c0_117] : memref<2x1x32xf32, #tpu.memory_space<vmem>>, vector<1x1x32xf32>
    %294 = vector.shape_cast %293 : vector<1x1x32xf32> to vector<1x32xf32>
    %295 = vector.broadcast %294 : vector<1x32xf32> to vector<16x32xf32>
    %296 = arith.addf %292, %295 : vector<16x32xf32>
    %297 = arith.addf %296, %199 : vector<16x32xf32>
    %c1_118 = arith.constant 1 : index
    %c0_119 = arith.constant 0 : index
    %c0_120 = arith.constant 0 : index
    %298 = vector.load %arg9[%c1_118, %c0_119, %c0_120] : memref<2x1x32xf32, #tpu.memory_space<vmem>>, vector<1x1x32xf32>
    %299 = vector.shape_cast %298 : vector<1x1x32xf32> to vector<1x32xf32>
    %c1_121 = arith.constant 1 : index
    %c0_122 = arith.constant 0 : index
    %c0_123 = arith.constant 0 : index
    %300 = vector.load %arg10[%c1_121, %c0_122, %c0_123] : memref<2x1x32xf32, #tpu.memory_space<vmem>>, vector<1x1x32xf32>
    %301 = vector.shape_cast %300 : vector<1x1x32xf32> to vector<1x32xf32>
    %cst_124 = arith.constant dense<0.000000e+00> : vector<16xf32>
    %302 = vector.multi_reduction <add>, %297, %cst_124 [1] : vector<16x32xf32> to vector<16xf32>
    %303 = vector.shape_cast %302 : vector<16xf32> to vector<16x1xf32>
    %cst_125 = arith.constant 3.200000e+01 : f32
    %304 = vector.broadcast %cst_125 : f32 to vector<16x1xf32>
    %305 = arith.divf %303, %304 : vector<16x1xf32>
    %306 = vector.broadcast %305 : vector<16x1xf32> to vector<16x32xf32>
    %307 = arith.subf %297, %306 : vector<16x32xf32>
    %308 = arith.mulf %307, %307 : vector<16x32xf32>
    %cst_126 = arith.constant dense<0.000000e+00> : vector<16xf32>
    %309 = vector.multi_reduction <add>, %308, %cst_126 [1] : vector<16x32xf32> to vector<16xf32>
    %310 = vector.shape_cast %309 : vector<16xf32> to vector<16x1xf32>
    %cst_127 = arith.constant 3.200000e+01 : f32
    %311 = vector.broadcast %cst_127 : f32 to vector<16x1xf32>
    %312 = arith.divf %310, %311 : vector<16x1xf32>
    %cst_128 = arith.constant 9.99999996E-13 : f32
    %313 = vector.broadcast %cst_128 : f32 to vector<16x1xf32>
    %314 = arith.addf %312, %313 : vector<16x1xf32>
    %315 = math.rsqrt %314 : vector<16x1xf32>
    %316 = vector.broadcast %315 : vector<16x1xf32> to vector<16x32xf32>
    %317 = arith.mulf %307, %316 : vector<16x32xf32>
    %318 = vector.broadcast %299 : vector<1x32xf32> to vector<16x32xf32>
    %319 = arith.mulf %317, %318 : vector<16x32xf32>
    %320 = vector.broadcast %301 : vector<1x32xf32> to vector<16x32xf32>
    %321 = arith.addf %319, %320 : vector<16x32xf32>
    %c1_129 = arith.constant 1 : index
    %c0_130 = arith.constant 0 : index
    %c0_131 = arith.constant 0 : index
    %322 = vector.load %arg11[%c1_129, %c0_130, %c0_131] : memref<2x32x64xbf16, #tpu.memory_space<vmem>>, vector<1x32x64xbf16>
    %323 = vector.shape_cast %322 : vector<1x32x64xbf16> to vector<32x64xbf16>
    %324 = arith.truncf %321 : vector<16x32xf32> to vector<16x32xbf16>
    %cst_132 = arith.constant dense<0.000000e+00> : vector<16x64xf32>
    %325 = tpu.matmul %324, %323, %cst_132 {dimension_numbers = #tpu.dot_dimension_numbers<[1], [0], [0], [1], [0, 0, 1, 1], [], []>} : vector<16x32xbf16>, vector<32x64xbf16>, vector<16x64xf32> -> vector<16x64xf32>
    %c1_133 = arith.constant 1 : index
    %c0_134 = arith.constant 0 : index
    %c0_135 = arith.constant 0 : index
    %326 = vector.load %arg12[%c1_133, %c0_134, %c0_135] : memref<2x1x64xf32, #tpu.memory_space<vmem>>, vector<1x1x64xf32>
    %327 = vector.shape_cast %326 : vector<1x1x64xf32> to vector<1x64xf32>
    %328 = vector.broadcast %327 : vector<1x64xf32> to vector<16x64xf32>
    %329 = arith.addf %325, %328 : vector<16x64xf32>
    %cst_136 = arith.constant 5.000000e-01 : f32
    %330 = vector.broadcast %cst_136 : f32 to vector<16x64xf32>
    %331 = arith.mulf %330, %329 : vector<16x64xf32>
    %cst_137 = arith.constant 4.471500e-02 : f32
    %332 = vector.broadcast %cst_137 : f32 to vector<16x64xf32>
    %333 = arith.mulf %332, %329 : vector<16x64xf32>
    %334 = arith.mulf %333, %329 : vector<16x64xf32>
    %335 = arith.mulf %334, %329 : vector<16x64xf32>
    %336 = arith.addf %329, %335 : vector<16x64xf32>
    %cst_138 = arith.constant 0.797884583 : f32
    %337 = vector.broadcast %cst_138 : f32 to vector<16x64xf32>
    %338 = arith.mulf %337, %336 : vector<16x64xf32>
    %339 = math.tanh %338 : vector<16x64xf32>
    %cst_139 = arith.constant 1.000000e+00 : f32
    %340 = vector.broadcast %cst_139 : f32 to vector<16x64xf32>
    %341 = arith.addf %340, %339 : vector<16x64xf32>
    %342 = arith.mulf %331, %341 : vector<16x64xf32>
    %c1_140 = arith.constant 1 : index
    %c0_141 = arith.constant 0 : index
    %c0_142 = arith.constant 0 : index
    %343 = vector.load %arg13[%c1_140, %c0_141, %c0_142] : memref<2x64x32xbf16, #tpu.memory_space<vmem>>, vector<1x64x32xbf16>
    %344 = vector.shape_cast %343 : vector<1x64x32xbf16> to vector<64x32xbf16>
    %345 = arith.truncf %342 : vector<16x64xf32> to vector<16x64xbf16>
    %cst_143 = arith.constant dense<0.000000e+00> : vector<16x32xf32>
    %346 = tpu.matmul %345, %344, %cst_143 {dimension_numbers = #tpu.dot_dimension_numbers<[1], [0], [0], [1], [0, 0, 1, 1], [], []>} : vector<16x64xbf16>, vector<64x32xbf16>, vector<16x32xf32> -> vector<16x32xf32>
    %c1_144 = arith.constant 1 : index
    %c0_145 = arith.constant 0 : index
    %c0_146 = arith.constant 0 : index
    %347 = vector.load %arg14[%c1_144, %c0_145, %c0_146] : memref<2x1x32xf32, #tpu.memory_space<vmem>>, vector<1x1x32xf32>
    %348 = vector.shape_cast %347 : vector<1x1x32xf32> to vector<1x32xf32>
    %349 = vector.broadcast %348 : vector<1x32xf32> to vector<16x32xf32>
    %350 = arith.addf %346, %349 : vector<16x32xf32>
    %351 = arith.addf %350, %321 : vector<16x32xf32>
    %c1_147 = arith.constant 1 : index
    %c0_148 = arith.constant 0 : index
    %c0_149 = arith.constant 0 : index
    %352 = vector.load %arg15[%c1_147, %c0_148, %c0_149] : memref<2x1x32xf32, #tpu.memory_space<vmem>>, vector<1x1x32xf32>
    %353 = vector.shape_cast %352 : vector<1x1x32xf32> to vector<1x32xf32>
    %c1_150 = arith.constant 1 : index
    %c0_151 = arith.constant 0 : index
    %c0_152 = arith.constant 0 : index
    %354 = vector.load %arg16[%c1_150, %c0_151, %c0_152] : memref<2x1x32xf32, #tpu.memory_space<vmem>>, vector<1x1x32xf32>
    %355 = vector.shape_cast %354 : vector<1x1x32xf32> to vector<1x32xf32>
    %cst_153 = arith.constant dense<0.000000e+00> : vector<16xf32>
    %356 = vector.multi_reduction <add>, %351, %cst_153 [1] : vector<16x32xf32> to vector<16xf32>
    %357 = vector.shape_cast %356 : vector<16xf32> to vector<16x1xf32>
    %cst_154 = arith.constant 3.200000e+01 : f32
    %358 = vector.broadcast %cst_154 : f32 to vector<16x1xf32>
    %359 = arith.divf %357, %358 : vector<16x1xf32>
    %360 = vector.broadcast %359 : vector<16x1xf32> to vector<16x32xf32>
    %361 = arith.subf %351, %360 : vector<16x32xf32>
    %362 = arith.mulf %361, %361 : vector<16x32xf32>
    %cst_155 = arith.constant dense<0.000000e+00> : vector<16xf32>
    %363 = vector.multi_reduction <add>, %362, %cst_155 [1] : vector<16x32xf32> to vector<16xf32>
    %364 = vector.shape_cast %363 : vector<16xf32> to vector<16x1xf32>
    %cst_156 = arith.constant 3.200000e+01 : f32
    %365 = vector.broadcast %cst_156 : f32 to vector<16x1xf32>
    %366 = arith.divf %364, %365 : vector<16x1xf32>
    %cst_157 = arith.constant 9.99999996E-13 : f32
    %367 = vector.broadcast %cst_157 : f32 to vector<16x1xf32>
    %368 = arith.addf %366, %367 : vector<16x1xf32>
    %369 = math.rsqrt %368 : vector<16x1xf32>
    %370 = vector.broadcast %369 : vector<16x1xf32> to vector<16x32xf32>
    %371 = arith.mulf %361, %370 : vector<16x32xf32>
    %372 = vector.broadcast %353 : vector<1x32xf32> to vector<16x32xf32>
    %373 = arith.mulf %371, %372 : vector<16x32xf32>
    %374 = vector.broadcast %355 : vector<1x32xf32> to vector<16x32xf32>
    %375 = arith.addf %373, %374 : vector<16x32xf32>
    %376 = vector.extract_strided_slice %375 {offsets = [0, 0], sizes = [1, 32], strides = [1, 1]} : vector<16x32xf32> to vector<1x32xf32>
    %377 = vector.extract_strided_slice %375 {offsets = [8, 0], sizes = [1, 32], strides = [1, 1]} : vector<16x32xf32> to vector<1x32xf32>
    %378 = tpu.concatenate %376, %377 in 0 : vector<1x32xf32>, vector<1x32xf32> -> vector<2x32xf32>
    %c0_158 = arith.constant 0 : index
    %c0_159 = arith.constant 0 : index
    %379 = vector.load %arg17[%c0_158, %c0_159] : memref<32x32xbf16, #tpu.memory_space<vmem>>, vector<32x32xbf16>
    %380 = arith.truncf %378 : vector<2x32xf32> to vector<2x32xbf16>
    %cst_160 = arith.constant dense<0.000000e+00> : vector<2x32xf32>
    %381 = tpu.matmul %380, %379, %cst_160 {dimension_numbers = #tpu.dot_dimension_numbers<[1], [0], [0], [1], [0, 0, 1, 1], [], []>} : vector<2x32xbf16>, vector<32x32xbf16>, vector<2x32xf32> -> vector<2x32xf32>
    %c0_161 = arith.constant 0 : index
    %c0_162 = arith.constant 0 : index
    %382 = vector.load %arg18[%c0_161, %c0_162] : memref<1x32xf32, #tpu.memory_space<vmem>>, vector<1x32xf32>
    %383 = vector.broadcast %382 : vector<1x32xf32> to vector<2x32xf32>
    %384 = arith.addf %381, %383 : vector<2x32xf32>
    %385 = math.tanh %384 : vector<2x32xf32>
    %c0_163 = arith.constant 0 : index
    %c0_164 = arith.constant 0 : index
    %386 = vector.load %arg19[%c0_163, %c0_164] : memref<32x128xbf16, #tpu.memory_space<vmem>>, vector<32x128xbf16>
    %387 = arith.truncf %385 : vector<2x32xf32> to vector<2x32xbf16>
    %cst_165 = arith.constant dense<0.000000e+00> : vector<2x128xf32>
    %388 = tpu.matmul %387, %386, %cst_165 {dimension_numbers = #tpu.dot_dimension_numbers<[1], [0], [0], [1], [0, 0, 1, 1], [], []>} : vector<2x32xbf16>, vector<32x128xbf16>, vector<2x128xf32> -> vector<2x128xf32>
    %c0_166 = arith.constant 0 : index
    %c0_167 = arith.constant 0 : index
    %389 = vector.load %arg20[%c0_166, %c0_167] : memref<1x128xf32, #tpu.memory_space<vmem>>, vector<1x128xf32>
    %390 = vector.broadcast %389 : vector<1x128xf32> to vector<2x128xf32>
    %391 = arith.addf %388, %390 : vector<2x128xf32>
    %c0_168 = arith.constant 0 : index
    %c0_169 = arith.constant 0 : index
    %392 = vector.load %arg21[%c0_168, %c0_169] : memref<2x128xf32, #tpu.memory_space<vmem>>, vector<2x128xf32>
    tpu.vector_store %arg21[%c0_168, %c0_169], %391 {strides = array<i32>} : memref<2x128xf32, #tpu.memory_space<vmem>>, vector<2x128xf32>,
    return
  }
  func.func @transform_0(%arg0: i32) -> (i32, i32) {
    %c0_i32 = arith.constant 0 : i32
    %c0_i32_0 = arith.constant 0 : i32
    %c0_i32_1 = arith.constant 0 : i32
    return %c0_i32, %c0_i32_0 : i32, i32
  }
  func.func @transform_1(%arg0: i32) -> (i32, i32) {
    %c0_i32 = arith.constant 0 : i32
    %c0_i32_0 = arith.constant 0 : i32
    %c0_i32_1 = arith.constant 0 : i32
    return %c0_i32, %c0_i32_0 : i32, i32
  }
  func.func @transform_2(%arg0: i32) -> (i32, i32) {
    %c0_i32 = arith.constant 0 : i32
    %c0_i32_0 = arith.constant 0 : i32
    %c0_i32_1 = arith.constant 0 : i32
    return %c0_i32, %c0_i32_0 : i32, i32
  }
  func.func @transform_3(%arg0: i32) -> (i32, i32) {
    %c0_i32 = arith.constant 0 : i32
    %c0_i32_0 = arith.constant 0 : i32
    %c0_i32_1 = arith.constant 0 : i32
    return %c0_i32, %c0_i32_0 : i32, i32
  }
  func.func @transform_4(%arg0: i32) -> (i32, i32, i32) {
    %c0_i32 = arith.constant 0 : i32
    %c0_i32_0 = arith.constant 0 : i32
    %c0_i32_1 = arith.constant 0 : i32
    %c0_i32_2 = arith.constant 0 : i32
    return %c0_i32, %c0_i32_0, %c0_i32_1 : i32, i32, i32
  }
  func.func @transform_5(%arg0: i32) -> (i32, i32, i32) {
    %c0_i32 = arith.constant 0 : i32
    %c0_i32_0 = arith.constant 0 : i32
    %c0_i32_1 = arith.constant 0 : i32
    %c0_i32_2 = arith.constant 0 : i32
    return %c0_i32, %c0_i32_0, %c0_i32_1 : i32, i32, i32
  }
  func.func @transform_6(%arg0: i32) -> (i32, i32, i32) {
    %c0_i32 = arith.constant 0 : i32
    %c0_i32_0 = arith.constant 0 : i32
    %c0_i32_1 = arith.constant 0 : i32
    %c0_i32_2 = arith.constant 0 : i32
    return %c0_i32, %c0_i32_0, %c0_i32_1 : i32, i32, i32
  }
  func.func @transform_7(%arg0: i32) -> (i32, i32, i32) {
    %c0_i32 = arith.constant 0 : i32
    %c0_i32_0 = arith.constant 0 : i32
    %c0_i32_1 = arith.constant 0 : i32
    %c0_i32_2 = arith.constant 0 : i32
    return %c0_i32, %c0_i32_0, %c0_i32_1 : i32, i32, i32
  }
  func.func @transform_8(%arg0: i32) -> (i32, i32, i32) {
    %c0_i32 = arith.constant 0 : i32
    %c0_i32_0 = arith.constant 0 : i32
    %c0_i32_1 = arith.constant 0 : i32
    %c0_i32_2 = arith.constant 0 : i32
    return %c0_i32, %c0_i32_0, %c0_i32_1 : i32, i32, i32
  }
  func.func @transform_9(%arg0: i32) -> (i32, i32, i32) {
    %c0_i32 = arith.constant 0 : i32
    %c0_i32_0 = arith.constant 0 : i32
    %c0_i32_1 = arith.constant 0 : i32
    %c0_i32_2 = arith.constant 0 : i32
    return %c0_i32, %c0_i32_0, %c0_i32_1 : i32, i32, i32
  }
  func.func @transform_10(%arg0: i32) -> (i32, i32, i32) {
    %c0_i32 = arith.constant 0 : i32
    %c0_i32_0 = arith.constant 0 : i32
    %c0_i32_1 = arith.constant 0 : i32
    %c0_i32_2 = arith.constant 0 : i32
    return %c0_i32, %c0_i32_0, %c0_i32_1 : i32, i32, i32
  }
  func.func @transform_11(%arg0: i32) -> (i32, i32, i32) {
    %c0_i32 = arith.constant 0 : i32
    %c0_i32_0 = arith.constant 0 : i32
    %c0_i32_1 = arith.constant 0 : i32
    %c0_i32_2 = arith.constant 0 : i32
    return %c0_i32, %c0_i32_0, %c0_i32_1 : i32, i32, i32
  }
  func.func @transform_12(%arg0: i32) -> (i32, i32, i32) {
    %c0_i32 = arith.constant 0 : i32
    %c0_i32_0 = arith.constant 0 : i32
    %c0_i32_1 = arith.constant 0 : i32
    %c0_i32_2 = arith.constant 0 : i32
    return %c0_i32, %c0_i32_0, %c0_i32_1 : i32, i32, i32
  }
  func.func @transform_13(%arg0: i32) -> (i32, i32, i32) {
    %c0_i32 = arith.constant 0 : i32
    %c0_i32_0 = arith.constant 0 : i32
    %c0_i32_1 = arith.constant 0 : i32
    %c0_i32_2 = arith.constant 0 : i32
    return %c0_i32, %c0_i32_0, %c0_i32_1 : i32, i32, i32
  }
  func.func @transform_14(%arg0: i32) -> (i32, i32, i32) {
    %c0_i32 = arith.constant 0 : i32
    %c0_i32_0 = arith.constant 0 : i32
    %c0_i32_1 = arith.constant 0 : i32
    %c0_i32_2 = arith.constant 0 : i32
    return %c0_i32, %c0_i32_0, %c0_i32_1 : i32, i32, i32
  }
  func.func @transform_15(%arg0: i32) -> (i32, i32, i32) {
    %c0_i32 = arith.constant 0 : i32
    %c0_i32_0 = arith.constant 0 : i32
    %c0_i32_1 = arith.constant 0 : i32
    %c0_i32_2 = arith.constant 0 : i32
    return %c0_i32, %c0_i32_0, %c0_i32_1 : i32, i32, i32
  }
  func.func @transform_16(%arg0: i32) -> (i32, i32) {
    %c0_i32 = arith.constant 0 : i32
    %c0_i32_0 = arith.constant 0 : i32
    %c0_i32_1 = arith.constant 0 : i32
    return %c0_i32, %c0_i32_0 : i32, i32
  }
  func.func @transform_17(%arg0: i32) -> (i32, i32) {
    %c0_i32 = arith.constant 0 : i32
    %c0_i32_0 = arith.constant 0 : i32
    %c0_i32_1 = arith.constant 0 : i32
    return %c0_i32, %c0_i32_0 : i32, i32
  }
  func.func @transform_18(%arg0: i32) -> (i32, i32) {
    %c0_i32 = arith.constant 0 : i32
    %c0_i32_0 = arith.constant 0 : i32
    %c0_i32_1 = arith.constant 0 : i32
    return %c0_i32, %c0_i32_0 : i32, i32
  }
  func.func @transform_19(%arg0: i32) -> (i32, i32) {
    %c0_i32 = arith.constant 0 : i32
    %c0_i32_0 = arith.constant 0 : i32
    %c0_i32_1 = arith.constant 0 : i32
    return %c0_i32, %c0_i32_0 : i32, i32
  }
  func.func @transform_20(%arg0: i32) -> (i32, i32) {
    %c0_i32 = arith.constant 0 : i32
    %c0_i32_0 = arith.constant 0 : i32
    %c0_i32_1 = arith.constant 0 : i32
    return %c0_i32, %c0_i32_0 : i32, i32
  }
}

</mosaic_0001>

<llo_original>
// kernel: phishing_classifier_forward.1
$region0: #{phishing_classifier_forward.1}
  #allocation0 [shape = 'u32[]', space=smem, size = 0x4, offset = 0x4, fixed_abs, tag = 'smem constant byte address 0x4 - core index']
  #allocation1 [shape = 'u32[144,128]{1,0:T(1,128)}', space=vmem, size = 0x12000, scoped, tag = 'internal scratch']
  %s0 = inlined_call_operand.vmem [shape: f32[16,32], index: 0, kind: input, shape index: {}]
  %s1 = inlined_call_operand.vmem [shape: f32[2,8], index: 1, kind: input, shape index: {}]
  %s2 = inlined_call_operand.vmem [shape: f32[1,32], index: 2, kind: input, shape index: {}]
  %s3 = inlined_call_operand.vmem [shape: f32[1,32], index: 3, kind: input, shape index: {}]
  %s4 = inlined_call_operand.vmem [shape: bf16[2,32,96], index: 4, kind: input, shape index: {}]
  %s5 = inlined_call_operand.vmem [shape: f32[2,1,96], index: 5, kind: input, shape index: {}]
  %s6 = inlined_call_operand.vmem [shape: bf16[2,32,32], index: 6, kind: input, shape index: {}]
  %s7 = inlined_call_operand.vmem [shape: f32[2,1,32], index: 7, kind: input, shape index: {}]
  %s8 = inlined_call_operand.vmem [shape: f32[2,1,32], index: 8, kind: input, shape index: {}]
  %s9 = inlined_call_operand.vmem [shape: f32[2,1,32], index: 9, kind: input, shape index: {}]
  %s10 = inlined_call_operand.vmem [shape: bf16[2,32,64], index: 10, kind: input, shape index: {}]
  %s11 = inlined_call_operand.vmem [shape: f32[2,1,64], index: 11, kind: input, shape index: {}]
  %s12 = inlined_call_operand.vmem [shape: bf16[2,64,32], index: 12, kind: input, shape index: {}]
  %s13 = inlined_call_operand.vmem [shape: f32[2,1,32], index: 13, kind: input, shape index: {}]
  %s14 = inlined_call_operand.vmem [shape: f32[2,1,32], index: 14, kind: input, shape index: {}]
  %s15 = inlined_call_operand.vmem [shape: f32[2,1,32], index: 15, kind: input, shape index: {}]
  %s16 = inlined_call_operand.vmem [shape: bf16[32,32], index: 16, kind: input, shape index: {}]
  %s17 = inlined_call_operand.vmem [shape: f32[1,32], index: 17, kind: input, shape index: {}]
  %s18 = inlined_call_operand.vmem [shape: bf16[32,128], index: 18, kind: input, shape index: {}]
  %s19 = inlined_call_operand.vmem [shape: f32[1,128], index: 19, kind: input, shape index: {}]
  %s20 = inlined_call_operand.hbm [shape: f32[2,128], index: 20, kind: output, shape index: {}]
  %s21 = sld [smem:[#allocation0]]
  $region90: #{phishing_classifier_forward.1} parent=0
    _
  %s23 = ssub.s32 1, %s21
  %s24 = scalar_select 0, %s23, %s21
  $region1: #{phishing_classifier_forward.1} parent=0
    #allocation2 [shape = 'u8[1024]{0}', space=vmem, size = 0x400, scoped, tag = 'output window, operand 0, single buffered']
    #allocation3 [shape = 's32[1]{0}', space=sflag, size = 0x4, scoped, tag = 'scoped memory for phishing_classifier_forward.1']
    %25 = vsyncpa [#allocation3], 0
    // Predicated region
    $region2: #{phishing_classifier_forward.1} parent=1 // pred_check
      _
    $region3: #{phishing_classifier_forward.1} parent=1 // pred_check_branch
      %27 = sbr.rel (0) target = $region5
    $region4: #{phishing_classifier_forward.1} parent=1 // pred_region
      _
    $region5: #{phishing_classifier_forward.1} parent=1 // pred_fallthru
      _
    // Predicated region
    $region6: #{phishing_classifier_forward.1} parent=1 // pred_check
      _
    $region7: #{phishing_classifier_forward.1} parent=1 // pred_check_branch
      %29 = sbr.rel (0) target = $region9
    $region8: #{phishing_classifier_forward.1} parent=1 // pred_region
      _
    $region9: #{phishing_classifier_forward.1} parent=1 // pred_fallthru
      _
    // Predicated region
    $region10: #{phishing_classifier_forward.1} parent=1 // pred_check
      _
    $region11: #{phishing_classifier_forward.1} parent=1 // pred_check_branch
      %31 = sbr.rel (0) target = $region13
    $region12: #{phishing_classifier_forward.1} parent=1 // pred_region
      _
    $region13: #{phishing_classifier_forward.1} parent=1 // pred_fallthru
      _
    // Predicated region
    $region14: #{phishing_classifier_forward.1} parent=1 // pred_check
      _
    $region15: #{phishing_classifier_forward.1} parent=1 // pred_check_branch
      %33 = sbr.rel (0) target = $region17
    $region16: #{phishing_classifier_forward.1} parent=1 // pred_region
      _
    $region17: #{phishing_classifier_forward.1} parent=1 // pred_fallthru
      _
    // Predicated region
    $region18: #{phishing_classifier_forward.1} parent=1 // pred_check
      _
    $region19: #{phishing_classifier_forward.1} parent=1 // pred_check_branch
      %35 = sbr.rel (0) target = $region21
    $region20: #{phishing_classifier_forward.1} parent=1 // pred_region
      _
    $region21: #{phishing_classifier_forward.1} parent=1 // pred_fallthru
      _
    // Predicated region
    $region22: #{phishing_classifier_forward.1} parent=1 // pred_check
      _
    $region23: #{phishing_classifier_forward.1} parent=1 // pred_check_branch
      %37 = sbr.rel (0) target = $region25
    $region24: #{phishing_classifier_forward.1} parent=1 // pred_region
      _
    $region25: #{phishing_classifier_forward.1} parent=1 // pred_fallthru
      _
    // Predicated region
    $region26: #{phishing_classifier_forward.1} parent=1 // pred_check
      _
    $region27: #{phishing_classifier_forward.1} parent=1 // pred_check_branch
      %39 = sbr.rel (0) target = $region29
    $region28: #{phishing_classifier_forward.1} parent=1 // pred_region
      _
    $region29: #{phishing_classifier_forward.1} parent=1 // pred_fallthru
      _
    // Predicated region
    $region30: #{phishing_classifier_forward.1} parent=1 // pred_check
      _
    $region31: #{phishing_classifier_forward.1} parent=1 // pred_check_branch
      %41 = sbr.rel (0) target = $region33
    $region32: #{phishing_classifier_forward.1} parent=1 // pred_region
      _
    $region33: #{phishing_classifier_forward.1} parent=1 // pred_fallthru
      _
    // Predicated region
    $region34: #{phishing_classifier_forward.1} parent=1 // pred_check
      _
    $region35: #{phishing_classifier_forward.1} parent=1 // pred_check_branch
      %43 = sbr.rel (0) target = $region37
    $region36: #{phishing_classifier_forward.1} parent=1 // pred_region
      _
    $region37: #{phishing_classifier_forward.1} parent=1 // pred_fallthru
      _
    // Predicated region
    $region38: #{phishing_classifier_forward.1} parent=1 // pred_check
      _
    $region39: #{phishing_classifier_forward.1} parent=1 // pred_check_branch
      %45 = sbr.rel (0) target = $region41
    $region40: #{phishing_classifier_forward.1} parent=1 // pred_region
      _
    $region41: #{phishing_classifier_forward.1} parent=1 // pred_fallthru
      _
    // Predicated region
    $region42: #{phishing_classifier_forward.1} parent=1 // pred_check
      _
    $region43: #{phishing_classifier_forward.1} parent=1 // pred_check_branch
      %47 = sbr.rel (0) target = $region45
    $region44: #{phishing_classifier_forward.1} parent=1 // pred_region
      _
    $region45: #{phishing_classifier_forward.1} parent=1 // pred_fallthru
      _
    // Predicated region
    $region46: #{phishing_classifier_forward.1} parent=1 // pred_check
      _
    $region47: #{phishing_classifier_forward.1} parent=1 // pred_check_branch
      %49 = sbr.rel (0) target = $region49
    $region48: #{phishing_classifier_forward.1} parent=1 // pred_region
      _
    $region49: #{phishing_classifier_forward.1} parent=1 // pred_fallthru
      _
    // Predicated region
    $region50: #{phishing_classifier_forward.1} parent=1 // pred_check
      _
    $region51: #{phishing_classifier_forward.1} parent=1 // pred_check_branch
      %51 = sbr.rel (0) target = $region53
    $region52: #{phishing_classifier_forward.1} parent=1 // pred_region
      _
    $region53: #{phishing_classifier_forward.1} parent=1 // pred_fallthru
      _
    // Predicated region
    $region54: #{phishing_classifier_forward.1} parent=1 // pred_check
      _
    $region55: #{phishing_classifier_forward.1} parent=1 // pred_check_branch
      %53 = sbr.rel (0) target = $region57
    $region56: #{phishing_classifier_forward.1} parent=1 // pred_region
      _
    $region57: #{phishing_classifier_forward.1} parent=1 // pred_fallthru
      _
    // Predicated region
    $region58: #{phishing_classifier_forward.1} parent=1 // pred_check
      _
    $region59: #{phishing_classifier_forward.1} parent=1 // pred_check_branch
      %55 = sbr.rel (0) target = $region61
    $region60: #{phishing_classifier_forward.1} parent=1 // pred_region
      _
    $region61: #{phishing_classifier_forward.1} parent=1 // pred_fallthru
      _
    // Predicated region
    $region62: #{phishing_classifier_forward.1} parent=1 // pred_check
      _
    $region63: #{phishing_classifier_forward.1} parent=1 // pred_check_branch
      %57 = sbr.rel (0) target = $region65
    $region64: #{phishing_classifier_forward.1} parent=1 // pred_region
      _
    $region65: #{phishing_classifier_forward.1} parent=1 // pred_fallthru
      _
    // Predicated region
    $region66: #{phishing_classifier_forward.1} parent=1 // pred_check
      _
    $region67: #{phishing_classifier_forward.1} parent=1 // pred_check_branch
      %59 = sbr.rel (0) target = $region69
    $region68: #{phishing_classifier_forward.1} parent=1 // pred_region
      _
    $region69: #{phishing_classifier_forward.1} parent=1 // pred_fallthru
      _
    // Predicated region
    $region70: #{phishing_classifier_forward.1} parent=1 // pred_check
      _
    $region71: #{phishing_classifier_forward.1} parent=1 // pred_check_branch
      %61 = sbr.rel (0) target = $region73
    $region72: #{phishing_classifier_forward.1} parent=1 // pred_region
      _
    $region73: #{phishing_classifier_forward.1} parent=1 // pred_fallthru
      _
    // Predicated region
    $region74: #{phishing_classifier_forward.1} parent=1 // pred_check
      _
    $region75: #{phishing_classifier_forward.1} parent=1 // pred_check_branch
      %63 = sbr.rel (0) target = $region77
    $region76: #{phishing_classifier_forward.1} parent=1 // pred_region
      _
    $region77: #{phishing_classifier_forward.1} parent=1 // pred_fallthru
      _
    // Predicated region
    $region78: #{phishing_classifier_forward.1} parent=1 // pred_check
      _
    $region79: #{phishing_classifier_forward.1} parent=1 // pred_check_branch
      %65 = sbr.rel (0) target = $region81
    $region80: #{phishing_classifier_forward.1} parent=1 // pred_region
      _
    $region81: #{phishing_classifier_forward.1} parent=1 // pred_fallthru
      _
    %v67 = vld [vmem:[%s0] sm:$0xff]
    %v68 = vld [vmem:[%s0 + $0x8] sm:$0xff]
    %v69 = vld [vmem:[%s2] sm:$0x1]
    %v70 = vld [vmem:[%s3] sm:$0x1]
    %vm71 = vcmask 261120
    %v72 = vsel %vm71, %v67, 0.0
    %73 = vadd.xlane.f32.xlu0 %v72
    %v74 = vpop.xlane.xlu0 %73
    %v75 = vsel %vm71, %v68, 0.0
    %76 = vadd.xlane.f32.xlu0 %v75
    %v77 = vpop.xlane.xlu0 %76
    %v78 = vrcp.pop 32.0
    %v79 = vmul.f32 %v74, %v78
    %v80 = vmul.f32 %v77, %v78
    %v81 = vsub.f32 %v67, %v79
    %v82 = vsub.f32 %v68, %v80
    %v83 = vmul.f32 %v81, %v81
    %v84 = vmul.f32 %v82, %v82
    %v85 = vsel %vm71, %v83, 0.0
    %86 = vadd.xlane.f32.xlu0 %v85
    %v87 = vpop.xlane.xlu0 %86
    %v88 = vsel %vm71, %v84, 0.0
    %89 = vadd.xlane.f32.xlu0 %v88
    %v90 = vpop.xlane.xlu0 %89
    %v91 = vmul.f32 %v87, %v78
    %v92 = vmul.f32 %v90, %v78
    %v93 = vadd.f32 %v91, 1e-12
    %v94 = vadd.f32 %v92, 1e-12
    %v95 = vrsqrt.pop %v93
    %v96 = vrsqrt.pop %v94
    %v97 = vmul.f32 %v81, %v95
    %v98 = vmul.f32 %v82, %v96
    %v100 = vlaneseq
    %v101 = vshrl.u32 %v100, 7
    %v102 = vsub.s32 0, %v101
    %v103 = vrot.slane %v69, %v102
    %v105 = vmul.f32 %v97, %v103
    %v106 = vmul.f32 %v98, %v103
    %v108 = vlaneseq
    %v109 = vshrl.u32 %v108, 7
    %v110 = vsub.s32 0, %v109
    %v111 = vrot.slane %v70, %v110
    %v113 = vadd.f32 %v105, %v111
    %v114 = vadd.f32 %v106, %v111
    %v115 = vld [vmem:[%s1] sm:$0x3]
    %v116 = vld [vmem:[%s4] sm:$0xf]
    %v117 = vld [vmem:[%s4 + $0x4] sm:$0xf]
    %v118 = vld [vmem:[%s4 + $0x8] sm:$0xf]
    %v119 = vld [vmem:[%s4 + $0xc] sm:$0xf]
    %v120 = vpack.c.bf16 %v114, %v113
    %v121 = vld [vmem:[%s5] sm:$0x1]
    %v123 = vlaneseq
    %v124 = vshrl.u32 %v123, 7
    %v125 = vsub.s32 0, %v124
    %v126 = vrot.slane %v121, %v125
    %v132 = vunpack.c.l.b16 %v116
    %v133 = vunpack.c.l.b16 %v117
    %v134 = vunpack.c.l.b16 %v118
    %v135 = vunpack.c.l.b16 %v119
    %v136 = vpack.c.b16 %v133, %v132
    %v137 = vpack.c.b16 %v135, %v134
    %v141 = vsel %vm71, %v120, 0
    %143 = vmatprep.subr.bf16.mxu0 0
    %144 = vmatpush1.bf16.msra.mxu0 %v136
    %145 = vmatprep.subr.bf16.mxu0 0
    %146 = vmatpush1.bf16.msra.mxu0 %v137
    %147 = vmatprep.subr.bf16.mxu0 0
    %148 = vmatpush1.bf16.msra.mxu0 0
    %149 = vmatprep.subr.bf16.mxu0 0
    %150 = vmatpush1.bf16.msra.mxu0 0
    %151 = vmatprep.subr.bf16.mxu0 0
    %152 = vmatpush1.bf16.msra.mxu0 0
    %153 = vmatprep.subr.bf16.mxu0 0
    %154 = vmatpush1.bf16.msra.mxu0 0
    %155 = vmatprep.subr.bf16.mxu0 0
    %156 = vmatpush1.bf16.msra.mxu0 0
    %157 = vmatprep.subr.bf16.mxu0 0
    %158 = vmatpush1.bf16.msra.mxu0 0
    %159 = vmatprep.subr.bf16.mxu0 0
    %160 = vmatpush1.bf16.msra.mxu0 0
    %161 = vmatprep.subr.bf16.mxu0 0
    %162 = vmatpush1.bf16.msra.mxu0 0
    %163 = vmatprep.subr.bf16.mxu0 0
    %164 = vmatpush1.bf16.msra.mxu0 0
    %165 = vmatprep.subr.bf16.mxu0 0
    %166 = vmatpush1.bf16.msra.mxu0 0
    %167 = vmatprep.subr.bf16.mxu0 0
    %168 = vmatpush1.bf16.msra.mxu0 0
    %169 = vmatprep.subr.bf16.mxu0 0
    %170 = vmatpush1.bf16.msra.mxu0 0
    %171 = vmatprep.subr.bf16.mxu0 0
    %172 = vmatpush1.bf16.msra.mxu0 0
    %173 = vmatprep.subr.bf16.mxu0 0
    %174 = vmatpush1.bf16.msra.mxu0 0
    %175 = vmatprep.mubr.bf16.mxu0 0
    %176 = vmatmul.mubr.bf16.gmra.mrb[0].mxu0 %v141
    %v177 = vpop.f32.mrb[0].mxu0
    %v178 = vadd.f32 %v126, %v177
    %v179 = vpop.f32.mrb[0].mxu0
    %v180 = vpop.f32.mrb[0].mxu0
    %v181 = vadd.f32 %v126, %v180
    %v182 = vpop.f32.mrb[0].mxu0
    %183 = vdwg.mxu0
    %185 = vrot.lane.b32.xlu0 %v178, 96
    %v186 = vpop.permute.xlu0 %185
    %vm187 = vcmask 130048
    %v188 = vsel %vm187, %v178, 0
    %v190 = vsel %vm187, %v186, 0
    %192 = vmatprep.subr.mxu0 0.0
    %193 = vmatpush1.xpose.msra.mxu0 %v190
    %194 = vmatprep.subr.mxu0 0.0
    %195 = vmatpush1.xpose.msra.mxu0 0.0
    %196 = vmatprep.subr.mxu0 0.0
    %197 = vmatpush1.xpose.msra.mxu0 0.0
    %198 = vmatprep.subr.mxu0 0.0
    %199 = vmatpush1.xpose.msra.mxu0 0.0
    %200 = vmatprep.subr.mxu0 0.0
    %201 = vmatpush1.xpose.msra.mxu0 0.0
    %202 = vmatprep.subr.mxu0 0.0
    %203 = vmatpush1.xpose.msra.mxu0 0.0
    %204 = vmatprep.subr.mxu0 0.0
    %205 = vmatpush1.xpose.msra.mxu0 0.0
    %206 = vmatprep.subr.mxu0 0.0
    %207 = vmatpush1.xpose.msra.mxu0 0.0
    %208 = vmatprep.subr.mxu0 0.0
    %209 = vmatpush1.xpose.msra.mxu0 0.0
    %210 = vmatprep.subr.mxu0 0.0
    %211 = vmatpush1.xpose.msra.mxu0 0.0
    %212 = vmatprep.subr.mxu0 0.0
    %213 = vmatpush1.xpose.msra.mxu0 0.0
    %214 = vmatprep.subr.mxu0 0.0
    %215 = vmatpush1.xpose.msra.mxu0 0.0
    %216 = vmatprep.subr.mxu0 0.0
    %217 = vmatpush1.xpose.msra.mxu0 0.0
    %218 = vmatprep.subr.mxu0 0.0
    %219 = vmatpush1.xpose.msra.mxu0 0.0
    %220 = vmatprep.subr.mxu0 0.0
    %221 = vmatpush1.xpose.msra.mxu0 0.0
    %222 = vmatprep.subr.mxu0 0.0
    %223 = vmatpush1.xpose.msra.mxu0 0.0
    %224 = vmatprep.subr.mxu0 0.0
    %225 = vmatpush1.xpose.msra.mxu0 0.0
    %226 = vmatprep.subr.mxu0 0.0
    %227 = vmatpush1.xpose.msra.mxu0 0.0
    %228 = vmatprep.subr.mxu0 0.0
    %229 = vmatpush1.xpose.msra.mxu0 0.0
    %230 = vmatprep.subr.mxu0 0.0
    %231 = vmatpush1.xpose.msra.mxu0 0.0
    %232 = vmatprep.subr.mxu0 0.0
    %233 = vmatpush1.xpose.msra.mxu0 0.0
    %234 = vmatprep.subr.mxu0 0.0
    %235 = vmatpush1.xpose.msra.mxu0 0.0
    %236 = vmatprep.subr.mxu0 0.0
    %237 = vmatpush1.xpose.msra.mxu0 0.0
    %238 = vmatprep.subr.mxu0 0.0
    %239 = vmatpush1.xpose.msra.mxu0 0.0
    %240 = vmatprep.subr.mxu0 0.0
    %241 = vmatpush1.xpose.msra.mxu0 0.0
    %242 = vmatprep.subr.mxu0 0.0
    %243 = vmatpush1.xpose.msra.mxu0 0.0
    %244 = vmatprep.subr.mxu0 0.0
    %245 = vmatpush1.xpose.msra.mxu0 0.0
    %246 = vmatprep.subr.mxu0 0.0
    %247 = vmatpush1.xpose.msra.mxu0 0.0
    %248 = vmatprep.subr.mxu0 0.0
    %249 = vmatpush1.xpose.msra.mxu0 0.0
    %250 = vmatprep.subr.mxu0 0.0
    %251 = vmatpush1.xpose.msra.mxu0 0.0
    %252 = vmatprep.subr.mxu0 0.0
    %253 = vmatpush1.xpose.msra.mxu0 0.0
    %254 = vmatprep.subr.mxu0 0.0
    %255 = vmatpush1.xpose.msra.mxu0 0.0
    %256 = vmatprep.mubr.f32.mxu0 0.0
    %257 = vmatmul.mubr.f32.gmra.mrb[0].mxu0 %v188
    %v258 = vpop.f32.mrb[0].mxu0
    %v259 = vadd.f32 0.0, %v258
    %v260 = vpop.f32.mrb[0].mxu0
    %261 = vdwg.mxu0
    %v262 = vmul.f32 %v259, 0.25
    %v263 = vlaneseq
    %v264 = vshrl.u32 %v263, 7
    %v265 = vsub.s32 0, %v264
    %v266 = vrot.slane %v115, %v265
    %v267 = vadd.f32 %v262, %v266
    %vm268 = vcmask 64512
    %v269 = vsel %vm268, %v267, -inf
    %270 = vmax.xlane.f32.xlu0 %v269
    %v271 = vpop.xlane.xlu0 %270
    %v272 = vsub.f32 %v267, %v271
    %v273 = vmul.f32 %v272, 1.442695
    %v274 = vpow.pop %v273
    %v275 = vsel %vm268, %v274, 0.0
    %276 = vadd.xlane.f32.xlu0 %v275
    %v277 = vpop.xlane.xlu0 %276
    %v278 = vrcp.pop %v277
    %v279 = vmul.f32 %v274, %v278
    %280 = vrot.lane.b32.xlu0 %v178, 64
    %v281 = vpop.permute.xlu0 %280
    %v284 = vsel %vm268, %v279, 0
    %286 = vmatprep.subr.mxu0 0.0
    %287 = vmatpush1.msra.mxu0 %v281
    %288 = vmatprep.subr.mxu0 0.0
    %289 = vmatpush1.msra.mxu0 0.0
    %290 = vmatprep.subr.mxu0 0.0
    %291 = vmatpush1.msra.mxu0 0.0
    %292 = vmatprep.subr.mxu0 0.0
    %293 = vmatpush1.msra.mxu0 0.0
    %294 = vmatprep.subr.mxu0 0.0
    %295 = vmatpush1.msra.mxu0 0.0
    %296 = vmatprep.subr.mxu0 0.0
    %297 = vmatpush1.msra.mxu0 0.0
    %298 = vmatprep.subr.mxu0 0.0
    %299 = vmatpush1.msra.mxu0 0.0
    %300 = vmatprep.subr.mxu0 0.0
    %301 = vmatpush1.msra.mxu0 0.0
    %302 = vmatprep.subr.mxu0 0.0
    %303 = vmatpush1.msra.mxu0 0.0
    %304 = vmatprep.subr.mxu0 0.0
    %305 = vmatpush1.msra.mxu0 0.0
    %306 = vmatprep.subr.mxu0 0.0
    %307 = vmatpush1.msra.mxu0 0.0
    %308 = vmatprep.subr.mxu0 0.0
    %309 = vmatpush1.msra.mxu0 0.0
    %310 = vmatprep.subr.mxu0 0.0
    %311 = vmatpush1.msra.mxu0 0.0
    %312 = vmatprep.subr.mxu0 0.0
    %313 = vmatpush1.msra.mxu0 0.0
    %314 = vmatprep.subr.mxu0 0.0
    %315 = vmatpush1.msra.mxu0 0.0
    %316 = vmatprep.subr.mxu0 0.0
    %317 = vmatpush1.msra.mxu0 0.0
    %318 = vmatprep.subr.mxu0 0.0
    %319 = vmatpush1.msra.mxu0 0.0
    %320 = vmatprep.subr.mxu0 0.0
    %321 = vmatpush1.msra.mxu0 0.0
    %322 = vmatprep.subr.mxu0 0.0
    %323 = vmatpush1.msra.mxu0 0.0
    %324 = vmatprep.subr.mxu0 0.0
    %325 = vmatpush1.msra.mxu0 0.0
    %326 = vmatprep.subr.mxu0 0.0
    %327 = vmatpush1.msra.mxu0 0.0
    %328 = vmatprep.subr.mxu0 0.0
    %329 = vmatpush1.msra.mxu0 0.0
    %330 = vmatprep.subr.mxu0 0.0
    %331 = vmatpush1.msra.mxu0 0.0
    %332 = vmatprep.subr.mxu0 0.0
    %333 = vmatpush1.msra.mxu0 0.0
    %334 = vmatprep.subr.mxu0 0.0
    %335 = vmatpush1.msra.mxu0 0.0
    %336 = vmatprep.subr.mxu0 0.0
    %337 = vmatpush1.msra.mxu0 0.0
    %338 = vmatprep.subr.mxu0 0.0
    %339 = vmatpush1.msra.mxu0 0.0
    %340 = vmatprep.subr.mxu0 0.0
    %341 = vmatpush1.msra.mxu0 0.0
    %342 = vmatprep.subr.mxu0 0.0
    %343 = vmatpush1.msra.mxu0 0.0
    %344 = vmatprep.subr.mxu0 0.0
    %345 = vmatpush1.msra.mxu0 0.0
    %346 = vmatprep.subr.mxu0 0.0
    %347 = vmatpush1.msra.mxu0 0.0
    %348 = vmatprep.subr.mxu0 0.0
    %349 = vmatpush1.msra.mxu0 0.0
    %350 = vmatprep.mubr.f32.mxu0 0.0
    %351 = vmatmul.mubr.f32.gmra.mrb[0].mxu0 %v284
    %v352 = vpop.f32.mrb[0].mxu0
    %v353 = vadd.f32 0.0, %v352
    %v354 = vpop.f32.mrb[0].mxu0
    %355 = vdwg.mxu0
    %356 = vrot.lane.b32.xlu0 %v178, 112
    %v357 = vpop.permute.xlu0 %356
    %358 = vrot.lane.b32.xlu0 %v178, 80
    %v359 = vpop.permute.xlu0 %358
    %v360 = vsel %vm187, %v357, 0
    %v362 = vsel %vm187, %v359, 0
    %364 = vmatprep.subr.mxu0 0.0
    %365 = vmatpush1.xpose.msra.mxu0 %v362
    %366 = vmatprep.subr.mxu0 0.0
    %367 = vmatpush1.xpose.msra.mxu0 0.0
    %368 = vmatprep.subr.mxu0 0.0
    %369 = vmatpush1.xpose.msra.mxu0 0.0
    %370 = vmatprep.subr.mxu0 0.0
    %371 = vmatpush1.xpose.msra.mxu0 0.0
    %372 = vmatprep.subr.mxu0 0.0
    %373 = vmatpush1.xpose.msra.mxu0 0.0
    %374 = vmatprep.subr.mxu0 0.0
    %375 = vmatpush1.xpose.msra.mxu0 0.0
    %376 = vmatprep.subr.mxu0 0.0
    %377 = vmatpush1.xpose.msra.mxu0 0.0
    %378 = vmatprep.subr.mxu0 0.0
    %379 = vmatpush1.xpose.msra.mxu0 0.0
    %380 = vmatprep.subr.mxu0 0.0
    %381 = vmatpush1.xpose.msra.mxu0 0.0
    %382 = vmatprep.subr.mxu0 0.0
    %383 = vmatpush1.xpose.msra.mxu0 0.0
    %384 = vmatprep.subr.mxu0 0.0
    %385 = vmatpush1.xpose.msra.mxu0 0.0
    %386 = vmatprep.subr.mxu0 0.0
    %387 = vmatpush1.xpose.msra.mxu0 0.0
    %388 = vmatprep.subr.mxu0 0.0
    %389 = vmatpush1.xpose.msra.mxu0 0.0
    %390 = vmatprep.subr.mxu0 0.0
    %391 = vmatpush1.xpose.msra.mxu0 0.0
    %392 = vmatprep.subr.mxu0 0.0
    %393 = vmatpush1.xpose.msra.mxu0 0.0
    %394 = vmatprep.subr.mxu0 0.0
    %395 = vmatpush1.xpose.msra.mxu0 0.0
    %396 = vmatprep.subr.mxu0 0.0
    %397 = vmatpush1.xpose.msra.mxu0 0.0
    %398 = vmatprep.subr.mxu0 0.0
    %399 = vmatpush1.xpose.msra.mxu0 0.0
    %400 = vmatprep.subr.mxu0 0.0
    %401 = vmatpush1.xpose.msra.mxu0 0.0
    %402 = vmatprep.subr.mxu0 0.0
    %403 = vmatpush1.xpose.msra.mxu0 0.0
    %404 = vmatprep.subr.mxu0 0.0
    %405 = vmatpush1.xpose.msra.mxu0 0.0
    %406 = vmatprep.subr.mxu0 0.0
    %407 = vmatpush1.xpose.msra.mxu0 0.0
    %408 = vmatprep.subr.mxu0 0.0
    %409 = vmatpush1.xpose.msra.mxu0 0.0
    %410 = vmatprep.subr.mxu0 0.0
    %411 = vmatpush1.xpose.msra.mxu0 0.0
    %412 = vmatprep.subr.mxu0 0.0
    %413 = vmatpush1.xpose.msra.mxu0 0.0
    %414 = vmatprep.subr.mxu0 0.0
    %415 = vmatpush1.xpose.msra.mxu0 0.0
    %416 = vmatprep.subr.mxu0 0.0
    %417 = vmatpush1.xpose.msra.mxu0 0.0
    %418 = vmatprep.subr.mxu0 0.0
    %419 = vmatpush1.xpose.msra.mxu0 0.0
    %420 = vmatprep.subr.mxu0 0.0
    %421 = vmatpush1.xpose.msra.mxu0 0.0
    %422 = vmatprep.subr.mxu0 0.0
    %423 = vmatpush1.xpose.msra.mxu0 0.0
    %424 = vmatprep.subr.mxu0 0.0
    %425 = vmatpush1.xpose.msra.mxu0 0.0
    %426 = vmatprep.subr.mxu0 0.0
    %427 = vmatpush1.xpose.msra.mxu0 0.0
    %428 = vmatprep.mubr.f32.mxu0 0.0
    %429 = vmatmul.mubr.f32.gmra.mrb[0].mxu0 %v360
    %v430 = vpop.f32.mrb[0].mxu0
    %v431 = vadd.f32 0.0, %v430
    %v432 = vpop.f32.mrb[0].mxu0
    %433 = vdwg.mxu0
    %v434 = vmul.f32 %v431, 0.25
    %v435 = vadd.f32 %v434, %v266
    %v436 = vsel %vm268, %v435, -inf
    %437 = vmax.xlane.f32.xlu0 %v436
    %v438 = vpop.xlane.xlu0 %437
    %v439 = vsub.f32 %v435, %v438
    %v440 = vmul.f32 %v439, 1.442695
    %v441 = vpow.pop %v440
    %v442 = vsel %vm268, %v441, 0.0
    %443 = vadd.xlane.f32.xlu0 %v442
    %v444 = vpop.xlane.xlu0 %443
    %v445 = vrcp.pop %v444
    %v446 = vmul.f32 %v441, %v445
    %447 = vrot.lane.b32.xlu0 %v178, 48
    %v448 = vpop.permute.xlu0 %447
    %v451 = vsel %vm268, %v446, 0
    %453 = vmatprep.subr.mxu0 0.0
    %454 = vmatpush1.msra.mxu0 %v448
    %455 = vmatprep.subr.mxu0 0.0
    %456 = vmatpush1.msra.mxu0 0.0
    %457 = vmatprep.subr.mxu0 0.0
    %458 = vmatpush1.msra.mxu0 0.0
    %459 = vmatprep.subr.mxu0 0.0
    %460 = vmatpush1.msra.mxu0 0.0
    %461 = vmatprep.subr.mxu0 0.0
    %462 = vmatpush1.msra.mxu0 0.0
    %463 = vmatprep.subr.mxu0 0.0
    %464 = vmatpush1.msra.mxu0 0.0
    %465 = vmatprep.subr.mxu0 0.0
    %466 = vmatpush1.msra.mxu0 0.0
    %467 = vmatprep.subr.mxu0 0.0
    %468 = vmatpush1.msra.mxu0 0.0
    %469 = vmatprep.subr.mxu0 0.0
    %470 = vmatpush1.msra.mxu0 0.0
    %471 = vmatprep.subr.mxu0 0.0
    %472 = vmatpush1.msra.mxu0 0.0
    %473 = vmatprep.subr.mxu0 0.0
    %474 = vmatpush1.msra.mxu0 0.0
    %475 = vmatprep.subr.mxu0 0.0
    %476 = vmatpush1.msra.mxu0 0.0
    %477 = vmatprep.subr.mxu0 0.0
    %478 = vmatpush1.msra.mxu0 0.0
    %479 = vmatprep.subr.mxu0 0.0
    %480 = vmatpush1.msra.mxu0 0.0
    %481 = vmatprep.subr.mxu0 0.0
    %482 = vmatpush1.msra.mxu0 0.0
    %483 = vmatprep.subr.mxu0 0.0
    %484 = vmatpush1.msra.mxu0 0.0
    %485 = vmatprep.subr.mxu0 0.0
    %486 = vmatpush1.msra.mxu0 0.0
    %487 = vmatprep.subr.mxu0 0.0
    %488 = vmatpush1.msra.mxu0 0.0
    %489 = vmatprep.subr.mxu0 0.0
    %490 = vmatpush1.msra.mxu0 0.0
    %491 = vmatprep.subr.mxu0 0.0
    %492 = vmatpush1.msra.mxu0 0.0
    %493 = vmatprep.subr.mxu0 0.0
    %494 = vmatpush1.msra.mxu0 0.0
    %495 = vmatprep.subr.mxu0 0.0
    %496 = vmatpush1.msra.mxu0 0.0
    %497 = vmatprep.subr.mxu0 0.0
    %498 = vmatpush1.msra.mxu0 0.0
    %499 = vmatprep.subr.mxu0 0.0
    %500 = vmatpush1.msra.mxu0 0.0
    %501 = vmatprep.subr.mxu0 0.0
    %502 = vmatpush1.msra.mxu0 0.0
    %503 = vmatprep.subr.mxu0 0.0
    %504 = vmatpush1.msra.mxu0 0.0
    %505 = vmatprep.subr.mxu0 0.0
    %506 = vmatpush1.msra.mxu0 0.0
    %507 = vmatprep.subr.mxu0 0.0
    %508 = vmatpush1.msra.mxu0 0.0
    %509 = vmatprep.subr.mxu0 0.0
    %510 = vmatpush1.msra.mxu0 0.0
    %511 = vmatprep.subr.mxu0 0.0
    %512 = vmatpush1.msra.mxu0 0.0
    %513 = vmatprep.subr.mxu0 0.0
    %514 = vmatpush1.msra.mxu0 0.0
    %515 = vmatprep.subr.mxu0 0.0
    %516 = vmatpush1.msra.mxu0 0.0
    %517 = vmatprep.mubr.f32.mxu0 0.0
    %518 = vmatmul.mubr.f32.gmra.mrb[0].mxu0 %v451
    %v519 = vpop.f32.mrb[0].mxu0
    %v520 = vadd.f32 0.0, %v519
    %v521 = vpop.f32.mrb[0].mxu0
    %522 = vdwg.mxu0
    %524 = vrot.lane.b32.xlu0 %v520, 16
    %v525 = vpop.permute.xlu0 %524
    %v527 = vsel %vm187, %v353, %v525
    %529 = vrot.lane.b32.xlu0 %v181, 96
    %v530 = vpop.permute.xlu0 %529
    %v531 = vsel %vm187, %v181, 0
    %v533 = vsel %vm187, %v530, 0
    %535 = vmatprep.subr.mxu0 0.0
    %536 = vmatpush1.xpose.msra.mxu0 %v533
    %537 = vmatprep.subr.mxu0 0.0
    %538 = vmatpush1.xpose.msra.mxu0 0.0
    %539 = vmatprep.subr.mxu0 0.0
    %540 = vmatpush1.xpose.msra.mxu0 0.0
    %541 = vmatprep.subr.mxu0 0.0
    %542 = vmatpush1.xpose.msra.mxu0 0.0
    %543 = vmatprep.subr.mxu0 0.0
    %544 = vmatpush1.xpose.msra.mxu0 0.0
    %545 = vmatprep.subr.mxu0 0.0
    %546 = vmatpush1.xpose.msra.mxu0 0.0
    %547 = vmatprep.subr.mxu0 0.0
    %548 = vmatpush1.xpose.msra.mxu0 0.0
    %549 = vmatprep.subr.mxu0 0.0
    %550 = vmatpush1.xpose.msra.mxu0 0.0
    %551 = vmatprep.subr.mxu0 0.0
    %552 = vmatpush1.xpose.msra.mxu0 0.0
    %553 = vmatprep.subr.mxu0 0.0
    %554 = vmatpush1.xpose.msra.mxu0 0.0
    %555 = vmatprep.subr.mxu0 0.0
    %556 = vmatpush1.xpose.msra.mxu0 0.0
    %557 = vmatprep.subr.mxu0 0.0
    %558 = vmatpush1.xpose.msra.mxu0 0.0
    %559 = vmatprep.subr.mxu0 0.0
    %560 = vmatpush1.xpose.msra.mxu0 0.0
    %561 = vmatprep.subr.mxu0 0.0
    %562 = vmatpush1.xpose.msra.mxu0 0.0
    %563 = vmatprep.subr.mxu0 0.0
    %564 = vmatpush1.xpose.msra.mxu0 0.0
    %565 = vmatprep.subr.mxu0 0.0
    %566 = vmatpush1.xpose.msra.mxu0 0.0
    %567 = vmatprep.subr.mxu0 0.0
    %568 = vmatpush1.xpose.msra.mxu0 0.0
    %569 = vmatprep.subr.mxu0 0.0
    %570 = vmatpush1.xpose.msra.mxu0 0.0
    %571 = vmatprep.subr.mxu0 0.0
    %572 = vmatpush1.xpose.msra.mxu0 0.0
    %573 = vmatprep.subr.mxu0 0.0
    %574 = vmatpush1.xpose.msra.mxu0 0.0
    %575 = vmatprep.subr.mxu0 0.0
    %576 = vmatpush1.xpose.msra.mxu0 0.0
    %577 = vmatprep.subr.mxu0 0.0
    %578 = vmatpush1.xpose.msra.mxu0 0.0
    %579 = vmatprep.subr.mxu0 0.0
    %580 = vmatpush1.xpose.msra.mxu0 0.0
    %581 = vmatprep.subr.mxu0 0.0
    %582 = vmatpush1.xpose.msra.mxu0 0.0
    %583 = vmatprep.subr.mxu0 0.0
    %584 = vmatpush1.xpose.msra.mxu0 0.0
    %585 = vmatprep.subr.mxu0 0.0
    %586 = vmatpush1.xpose.msra.mxu0 0.0
    %587 = vmatprep.subr.mxu0 0.0
    %588 = vmatpush1.xpose.msra.mxu0 0.0
    %589 = vmatprep.subr.mxu0 0.0
    %590 = vmatpush1.xpose.msra.mxu0 0.0
    %591 = vmatprep.subr.mxu0 0.0
    %592 = vmatpush1.xpose.msra.mxu0 0.0
    %593 = vmatprep.subr.mxu0 0.0
    %594 = vmatpush1.xpose.msra.mxu0 0.0
    %595 = vmatprep.subr.mxu0 0.0
    %596 = vmatpush1.xpose.msra.mxu0 0.0
    %597 = vmatprep.subr.mxu0 0.0
    %598 = vmatpush1.xpose.msra.mxu0 0.0
    %599 = vmatprep.mubr.f32.mxu0 0.0
    %600 = vmatmul.mubr.f32.gmra.mrb[0].mxu0 %v531
    %v601 = vpop.f32.mrb[0].mxu0
    %v602 = vadd.f32 0.0, %v601
    %v603 = vpop.f32.mrb[0].mxu0
    %604 = vdwg.mxu0
    %v605 = vmul.f32 %v602, 0.25
    %v606 = vlaneseq
    %v607 = vshrl.u32 %v606, 7
    %v608 = vsub.s32 1, %v607
    %v609 = vrot.slane %v115, %v608
    %v610 = vadd.f32 %v605, %v609
    %v611 = vsel %vm268, %v610, -inf
    %612 = vmax.xlane.f32.xlu0 %v611
    %v613 = vpop.xlane.xlu0 %612
    %v614 = vsub.f32 %v610, %v613
    %v615 = vmul.f32 %v614, 1.442695
    %v616 = vpow.pop %v615
    %v617 = vsel %vm268, %v616, 0.0
    %618 = vadd.xlane.f32.xlu0 %v617
    %v619 = vpop.xlane.xlu0 %618
    %v620 = vrcp.pop %v619
    %v621 = vmul.f32 %v616, %v620
    %622 = vrot.lane.b32.xlu0 %v181, 64
    %v623 = vpop.permute.xlu0 %622
    %v626 = vsel %vm268, %v621, 0
    %628 = vmatprep.subr.mxu0 0.0
    %629 = vmatpush1.msra.mxu0 %v623
    %630 = vmatprep.subr.mxu0 0.0
    %631 = vmatpush1.msra.mxu0 0.0
    %632 = vmatprep.subr.mxu0 0.0
    %633 = vmatpush1.msra.mxu0 0.0
    %634 = vmatprep.subr.mxu0 0.0
    %635 = vmatpush1.msra.mxu0 0.0
    %636 = vmatprep.subr.mxu0 0.0
    %637 = vmatpush1.msra.mxu0 0.0
    %638 = vmatprep.subr.mxu0 0.0
    %639 = vmatpush1.msra.mxu0 0.0
    %640 = vmatprep.subr.mxu0 0.0
    %641 = vmatpush1.msra.mxu0 0.0
    %642 = vmatprep.subr.mxu0 0.0
    %643 = vmatpush1.msra.mxu0 0.0
    %644 = vmatprep.subr.mxu0 0.0
    %645 = vmatpush1.msra.mxu0 0.0
    %646 = vmatprep.subr.mxu0 0.0
    %647 = vmatpush1.msra.mxu0 0.0
    %648 = vmatprep.subr.mxu0 0.0
    %649 = vmatpush1.msra.mxu0 0.0
    %650 = vmatprep.subr.mxu0 0.0
    %651 = vmatpush1.msra.mxu0 0.0
    %652 = vmatprep.subr.mxu0 0.0
    %653 = vmatpush1.msra.mxu0 0.0
    %654 = vmatprep.subr.mxu0 0.0
    %655 = vmatpush1.msra.mxu0 0.0
    %656 = vmatprep.subr.mxu0 0.0
    %657 = vmatpush1.msra.mxu0 0.0
    %658 = vmatprep.subr.mxu0 0.0
    %659 = vmatpush1.msra.mxu0 0.0
    %660 = vmatprep.subr.mxu0 0.0
    %661 = vmatpush1.msra.mxu0 0.0
    %662 = vmatprep.subr.mxu0 0.0
    %663 = vmatpush1.msra.mxu0 0.0
    %664 = vmatprep.subr.mxu0 0.0
    %665 = vmatpush1.msra.mxu0 0.0
    %666 = vmatprep.subr.mxu0 0.0
    %667 = vmatpush1.msra.mxu0 0.0
    %668 = vmatprep.subr.mxu0 0.0
    %669 = vmatpush1.msra.mxu0 0.0
    %670 = vmatprep.subr.mxu0 0.0
    %671 = vmatpush1.msra.mxu0 0.0
    %672 = vmatprep.subr.mxu0 0.0
    %673 = vmatpush1.msra.mxu0 0.0
    %674 = vmatprep.subr.mxu0 0.0
    %675 = vmatpush1.msra.mxu0 0.0
    %676 = vmatprep.subr.mxu0 0.0
    %677 = vmatpush1.msra.mxu0 0.0
    %678 = vmatprep.subr.mxu0 0.0
    %679 = vmatpush1.msra.mxu0 0.0
    %680 = vmatprep.subr.mxu0 0.0
    %681 = vmatpush1.msra.mxu0 0.0
    %682 = vmatprep.subr.mxu0 0.0
    %683 = vmatpush1.msra.mxu0 0.0
    %684 = vmatprep.subr.mxu0 0.0
    %685 = vmatpush1.msra.mxu0 0.0
    %686 = vmatprep.subr.mxu0 0.0
    %687 = vmatpush1.msra.mxu0 0.0
    %688 = vmatprep.subr.mxu0 0.0
    %689 = vmatpush1.msra.mxu0 0.0
    %690 = vmatprep.subr.mxu0 0.0
    %691 = vmatpush1.msra.mxu0 0.0
    %692 = vmatprep.mubr.f32.mxu0 0.0
    %693 = vmatmul.mubr.f32.gmra.mrb[0].mxu0 %v626
    %v694 = vpop.f32.mrb[0].mxu0
    %v695 = vadd.f32 0.0, %v694
    %v696 = vpop.f32.mrb[0].mxu0
    %697 = vdwg.mxu0
    %698 = vrot.lane.b32.xlu0 %v181, 112
    %v699 = vpop.permute.xlu0 %698
    %700 = vrot.lane.b32.xlu0 %v181, 80
    %v701 = vpop.permute.xlu0 %700
    %v702 = vsel %vm187, %v699, 0
    %v704 = vsel %vm187, %v701, 0
    %706 = vmatprep.subr.mxu0 0.0
    %707 = vmatpush1.xpose.msra.mxu0 %v704
    %708 = vmatprep.subr.mxu0 0.0
    %709 = vmatpush1.xpose.msra.mxu0 0.0
    %710 = vmatprep.subr.mxu0 0.0
    %711 = vmatpush1.xpose.msra.mxu0 0.0
    %712 = vmatprep.subr.mxu0 0.0
    %713 = vmatpush1.xpose.msra.mxu0 0.0
    %714 = vmatprep.subr.mxu0 0.0
    %715 = vmatpush1.xpose.msra.mxu0 0.0
    %716 = vmatprep.subr.mxu0 0.0
    %717 = vmatpush1.xpose.msra.mxu0 0.0
    %718 = vmatprep.subr.mxu0 0.0
    %719 = vmatpush1.xpose.msra.mxu0 0.0
    %720 = vmatprep.subr.mxu0 0.0
    %721 = vmatpush1.xpose.msra.mxu0 0.0
    %722 = vmatprep.subr.mxu0 0.0
    %723 = vmatpush1.xpose.msra.mxu0 0.0
    %724 = vmatprep.subr.mxu0 0.0
    %725 = vmatpush1.xpose.msra.mxu0 0.0
    %726 = vmatprep.subr.mxu0 0.0
    %727 = vmatpush1.xpose.msra.mxu0 0.0
    %728 = vmatprep.subr.mxu0 0.0
    %729 = vmatpush1.xpose.msra.mxu0 0.0
    %730 = vmatprep.subr.mxu0 0.0
    %731 = vmatpush1.xpose.msra.mxu0 0.0
    %732 = vmatprep.subr.mxu0 0.0
    %733 = vmatpush1.xpose.msra.mxu0 0.0
    %734 = vmatprep.subr.mxu0 0.0
    %735 = vmatpush1.xpose.msra.mxu0 0.0
    %736 = vmatprep.subr.mxu0 0.0
    %737 = vmatpush1.xpose.msra.mxu0 0.0
    %738 = vmatprep.subr.mxu0 0.0
    %739 = vmatpush1.xpose.msra.mxu0 0.0
    %740 = vmatprep.subr.mxu0 0.0
    %741 = vmatpush1.xpose.msra.mxu0 0.0
    %742 = vmatprep.subr.mxu0 0.0
    %743 = vmatpush1.xpose.msra.mxu0 0.0
    %744 = vmatprep.subr.mxu0 0.0
    %745 = vmatpush1.xpose.msra.mxu0 0.0
    %746 = vmatprep.subr.mxu0 0.0
    %747 = vmatpush1.xpose.msra.mxu0 0.0
    %748 = vmatprep.subr.mxu0 0.0
    %749 = vmatpush1.xpose.msra.mxu0 0.0
    %750 = vmatprep.subr.mxu0 0.0
    %751 = vmatpush1.xpose.msra.mxu0 0.0
    %752 = vmatprep.subr.mxu0 0.0
    %753 = vmatpush1.xpose.msra.mxu0 0.0
    %754 = vmatprep.subr.mxu0 0.0
    %755 = vmatpush1.xpose.msra.mxu0 0.0
    %756 = vmatprep.subr.mxu0 0.0
    %757 = vmatpush1.xpose.msra.mxu0 0.0
    %758 = vmatprep.subr.mxu0 0.0
    %759 = vmatpush1.xpose.msra.mxu0 0.0
    %760 = vmatprep.subr.mxu0 0.0
    %761 = vmatpush1.xpose.msra.mxu0 0.0
    %762 = vmatprep.subr.mxu0 0.0
    %763 = vmatpush1.xpose.msra.mxu0 0.0
    %764 = vmatprep.subr.mxu0 0.0
    %765 = vmatpush1.xpose.msra.mxu0 0.0
    %766 = vmatprep.subr.mxu0 0.0
    %767 = vmatpush1.xpose.msra.mxu0 0.0
    %768 = vmatprep.subr.mxu0 0.0
    %769 = vmatpush1.xpose.msra.mxu0 0.0
    %770 = vmatprep.mubr.f32.mxu0 0.0
    %771 = vmatmul.mubr.f32.gmra.mrb[0].mxu0 %v702
    %v772 = vpop.f32.mrb[0].mxu0
    %v773 = vadd.f32 0.0, %v772
    %v774 = vpop.f32.mrb[0].mxu0
    %775 = vdwg.mxu0
    %v776 = vmul.f32 %v773, 0.25
    %v777 = vadd.f32 %v776, %v609
    %v778 = vsel %vm268, %v777, -inf
    %779 = vmax.xlane.f32.xlu0 %v778
    %v780 = vpop.xlane.xlu0 %779
    %v781 = vsub.f32 %v777, %v780
    %v782 = vmul.f32 %v781, 1.442695
    %v783 = vpow.pop %v782
    %v784 = vsel %vm268, %v783, 0.0
    %785 = vadd.xlane.f32.xlu0 %v784
    %v786 = vpop.xlane.xlu0 %785
    %v787 = vrcp.pop %v786
    %v788 = vmul.f32 %v783, %v787
    %789 = vrot.lane.b32.xlu0 %v181, 48
    %v790 = vpop.permute.xlu0 %789
    %v793 = vsel %vm268, %v788, 0
    %795 = vmatprep.subr.mxu0 0.0
    %796 = vmatpush1.msra.mxu0 %v790
    %797 = vmatprep.subr.mxu0 0.0
    %798 = vmatpush1.msra.mxu0 0.0
    %799 = vmatprep.subr.mxu0 0.0
    %800 = vmatpush1.msra.mxu0 0.0
    %801 = vmatprep.subr.mxu0 0.0
    %802 = vmatpush1.msra.mxu0 0.0
    %803 = vmatprep.subr.mxu0 0.0
    %804 = vmatpush1.msra.mxu0 0.0
    %805 = vmatprep.subr.mxu0 0.0
    %806 = vmatpush1.msra.mxu0 0.0
    %807 = vmatprep.subr.mxu0 0.0
    %808 = vmatpush1.msra.mxu0 0.0
    %809 = vmatprep.subr.mxu0 0.0
    %810 = vmatpush1.msra.mxu0 0.0
    %811 = vmatprep.subr.mxu0 0.0
    %812 = vmatpush1.msra.mxu0 0.0
    %813 = vmatprep.subr.mxu0 0.0
    %814 = vmatpush1.msra.mxu0 0.0
    %815 = vmatprep.subr.mxu0 0.0
    %816 = vmatpush1.msra.mxu0 0.0
    %817 = vmatprep.subr.mxu0 0.0
    %818 = vmatpush1.msra.mxu0 0.0
    %819 = vmatprep.subr.mxu0 0.0
    %820 = vmatpush1.msra.mxu0 0.0
    %821 = vmatprep.subr.mxu0 0.0
    %822 = vmatpush1.msra.mxu0 0.0
    %823 = vmatprep.subr.mxu0 0.0
    %824 = vmatpush1.msra.mxu0 0.0
    %825 = vmatprep.subr.mxu0 0.0
    %826 = vmatpush1.msra.mxu0 0.0
    %827 = vmatprep.subr.mxu0 0.0
    %828 = vmatpush1.msra.mxu0 0.0
    %829 = vmatprep.subr.mxu0 0.0
    %830 = vmatpush1.msra.mxu0 0.0
    %831 = vmatprep.subr.mxu0 0.0
    %832 = vmatpush1.msra.mxu0 0.0
    %833 = vmatprep.subr.mxu0 0.0
    %834 = vmatpush1.msra.mxu0 0.0
    %835 = vmatprep.subr.mxu0 0.0
    %836 = vmatpush1.msra.mxu0 0.0
    %837 = vmatprep.subr.mxu0 0.0
    %838 = vmatpush1.msra.mxu0 0.0
    %839 = vmatprep.subr.mxu0 0.0
    %840 = vmatpush1.msra.mxu0 0.0
    %841 = vmatprep.subr.mxu0 0.0
    %842 = vmatpush1.msra.mxu0 0.0
    %843 = vmatprep.subr.mxu0 0.0
    %844 = vmatpush1.msra.mxu0 0.0
    %845 = vmatprep.subr.mxu0 0.0
    %846 = vmatpush1.msra.mxu0 0.0
    %847 = vmatprep.subr.mxu0 0.0
    %848 = vmatpush1.msra.mxu0 0.0
    %849 = vmatprep.subr.mxu0 0.0
    %850 = vmatpush1.msra.mxu0 0.0
    %851 = vmatprep.subr.mxu0 0.0
    %852 = vmatpush1.msra.mxu0 0.0
    %853 = vmatprep.subr.mxu0 0.0
    %854 = vmatpush1.msra.mxu0 0.0
    %855 = vmatprep.subr.mxu0 0.0
    %856 = vmatpush1.msra.mxu0 0.0
    %857 = vmatprep.subr.mxu0 0.0
    %858 = vmatpush1.msra.mxu0 0.0
    %859 = vmatprep.mubr.f32.mxu0 0.0
    %860 = vmatmul.mubr.f32.gmra.mrb[0].mxu0 %v793
    %v861 = vpop.f32.mrb[0].mxu0
    %v862 = vadd.f32 0.0, %v861
    %v863 = vpop.f32.mrb[0].mxu0
    %864 = vdwg.mxu0
    %866 = vrot.lane.b32.xlu0 %v862, 16
    %v867 = vpop.permute.xlu0 %866
    %v869 = vsel %vm187, %v695, %v867
    %v870 = vld [vmem:[%s6] sm:$0xf]
    %v871 = vld [vmem:[%s6 + $0x4] sm:$0xf]
    %v872 = vld [vmem:[%s6 + $0x8] sm:$0xf]
    %v873 = vld [vmem:[%s6 + $0xc] sm:$0xf]
    %v874 = vpack.c.bf16 %v869, %v527
    %v875 = vld [vmem:[%s7] sm:$0x1]
    %v877 = vlaneseq
    %v878 = vshrl.u32 %v877, 7
    %v879 = vsub.s32 0, %v878
    %v880 = vrot.slane %v875, %v879
    %v886 = vunpack.c.l.b16 %v870
    %v887 = vunpack.c.l.b16 %v871
    %v888 = vunpack.c.l.b16 %v872
    %v889 = vunpack.c.l.b16 %v873
    %v890 = vpack.c.b16 %v887, %v886
    %v891 = vpack.c.b16 %v889, %v888
    %v895 = vsel %vm71, %v874, 0
    %897 = vmatprep.subr.bf16.mxu0 0
    %898 = vmatpush1.bf16.msra.mxu0 %v890
    %899 = vmatprep.subr.bf16.mxu0 0
    %900 = vmatpush1.bf16.msra.mxu0 %v891
    %901 = vmatprep.subr.bf16.mxu0 0
    %902 = vmatpush1.bf16.msra.mxu0 0
    %903 = vmatprep.subr.bf16.mxu0 0
    %904 = vmatpush1.bf16.msra.mxu0 0
    %905 = vmatprep.subr.bf16.mxu0 0
    %906 = vmatpush1.bf16.msra.mxu0 0
    %907 = vmatprep.subr.bf16.mxu0 0
    %908 = vmatpush1.bf16.msra.mxu0 0
    %909 = vmatprep.subr.bf16.mxu0 0
    %910 = vmatpush1.bf16.msra.mxu0 0
    %911 = vmatprep.subr.bf16.mxu0 0
    %912 = vmatpush1.bf16.msra.mxu0 0
    %913 = vmatprep.subr.bf16.mxu0 0
    %914 = vmatpush1.bf16.msra.mxu0 0
    %915 = vmatprep.subr.bf16.mxu0 0
    %916 = vmatpush1.bf16.msra.mxu0 0
    %917 = vmatprep.subr.bf16.mxu0 0
    %918 = vmatpush1.bf16.msra.mxu0 0
    %919 = vmatprep.subr.bf16.mxu0 0
    %920 = vmatpush1.bf16.msra.mxu0 0
    %921 = vmatprep.subr.bf16.mxu0 0
    %922 = vmatpush1.bf16.msra.mxu0 0
    %923 = vmatprep.subr.bf16.mxu0 0
    %924 = vmatpush1.bf16.msra.mxu0 0
    %925 = vmatprep.subr.bf16.mxu0 0
    %926 = vmatpush1.bf16.msra.mxu0 0
    %927 = vmatprep.subr.bf16.mxu0 0
    %928 = vmatpush1.bf16.msra.mxu0 0
    %929 = vmatprep.mubr.bf16.mxu0 0
    %930 = vmatmul.mubr.bf16.gmra.mrb[0].mxu0 %v895
    %v931 = vpop.f32.mrb[0].mxu0
    %v932 = vadd.f32 %v880, %v931
    %v933 = vpop.f32.mrb[0].mxu0
    %v934 = vpop.f32.mrb[0].mxu0
    %v935 = vadd.f32 %v880, %v934
    %v936 = vpop.f32.mrb[0].mxu0
    %937 = vdwg.mxu0
    %v938 = vadd.f32 %v932, %v113
    %v939 = vadd.f32 %v935, %v114
    %v940 = vld [vmem:[%s8] sm:$0x1]
    %v941 = vld [vmem:[%s9] sm:$0x1]
    %v942 = vsel %vm71, %v938, 0.0
    %943 = vadd.xlane.f32.xlu0 %v942
    %v944 = vpop.xlane.xlu0 %943
    %v945 = vsel %vm71, %v939, 0.0
    %946 = vadd.xlane.f32.xlu0 %v945
    %v947 = vpop.xlane.xlu0 %946
    %v948 = vmul.f32 %v944, %v78
    %v949 = vmul.f32 %v947, %v78
    %v950 = vsub.f32 %v938, %v948
    %v951 = vsub.f32 %v939, %v949
    %v952 = vmul.f32 %v950, %v950
    %v953 = vmul.f32 %v951, %v951
    %v954 = vsel %vm71, %v952, 0.0
    %955 = vadd.xlane.f32.xlu0 %v954
    %v956 = vpop.xlane.xlu0 %955
    %v957 = vsel %vm71, %v953, 0.0
    %958 = vadd.xlane.f32.xlu0 %v957
    %v959 = vpop.xlane.xlu0 %958
    %v960 = vmul.f32 %v956, %v78
    %v961 = vmul.f32 %v959, %v78
    %v962 = vadd.f32 %v960, 1e-12
    %v963 = vadd.f32 %v961, 1e-12
    %v964 = vrsqrt.pop %v962
    %v965 = vrsqrt.pop %v963
    %v966 = vmul.f32 %v950, %v964
    %v967 = vmul.f32 %v951, %v965
    %v969 = vlaneseq
    %v970 = vshrl.u32 %v969, 7
    %v971 = vsub.s32 0, %v970
    %v972 = vrot.slane %v940, %v971
    %v974 = vmul.f32 %v966, %v972
    %v975 = vmul.f32 %v967, %v972
    %v977 = vlaneseq
    %v978 = vshrl.u32 %v977, 7
    %v979 = vsub.s32 0, %v978
    %v980 = vrot.slane %v941, %v979
    %v982 = vadd.f32 %v974, %v980
    %v983 = vadd.f32 %v975, %v980
    %v984 = vld [vmem:[%s10] sm:$0xf]
    %v985 = vld [vmem:[%s10 + $0x4] sm:$0xf]
    %v986 = vld [vmem:[%s10 + $0x8] sm:$0xf]
    %v987 = vld [vmem:[%s10 + $0xc] sm:$0xf]
    %v988 = vpack.c.bf16 %v983, %v982
    %v989 = vld [vmem:[%s11] sm:$0x1]
    %v991 = vlaneseq
    %v992 = vshrl.u32 %v991, 7
    %v993 = vsub.s32 0, %v992
    %v994 = vrot.slane %v989, %v993
    %v1000 = vunpack.c.l.b16 %v984
    %v1001 = vunpack.c.l.b16 %v985
    %v1002 = vunpack.c.l.b16 %v986
    %v1003 = vunpack.c.l.b16 %v987
    %v1004 = vpack.c.b16 %v1001, %v1000
    %v1005 = vpack.c.b16 %v1003, %v1002
    %v1009 = vsel %vm71, %v988, 0
    %1011 = vmatprep.subr.bf16.mxu0 0
    %1012 = vmatpush1.bf16.msra.mxu0 %v1004
    %1013 = vmatprep.subr.bf16.mxu0 0
    %1014 = vmatpush1.bf16.msra.mxu0 %v1005
    %1015 = vmatprep.subr.bf16.mxu0 0
    %1016 = vmatpush1.bf16.msra.mxu0 0
    %1017 = vmatprep.subr.bf16.mxu0 0
    %1018 = vmatpush1.bf16.msra.mxu0 0
    %1019 = vmatprep.subr.bf16.mxu0 0
    %1020 = vmatpush1.bf16.msra.mxu0 0
    %1021 = vmatprep.subr.bf16.mxu0 0
    %1022 = vmatpush1.bf16.msra.mxu0 0
    %1023 = vmatprep.subr.bf16.mxu0 0
    %1024 = vmatpush1.bf16.msra.mxu0 0
    %1025 = vmatprep.subr.bf16.mxu0 0
    %1026 = vmatpush1.bf16.msra.mxu0 0
    %1027 = vmatprep.subr.bf16.mxu0 0
    %1028 = vmatpush1.bf16.msra.mxu0 0
    %1029 = vmatprep.subr.bf16.mxu0 0
    %1030 = vmatpush1.bf16.msra.mxu0 0
    %1031 = vmatprep.subr.bf16.mxu0 0
    %1032 = vmatpush1.bf16.msra.mxu0 0
    %1033 = vmatprep.subr.bf16.mxu0 0
    %1034 = vmatpush1.bf16.msra.mxu0 0
    %1035 = vmatprep.subr.bf16.mxu0 0
    %1036 = vmatpush1.bf16.msra.mxu0 0
    %1037 = vmatprep.subr.bf16.mxu0 0
    %1038 = vmatpush1.bf16.msra.mxu0 0
    %1039 = vmatprep.subr.bf16.mxu0 0
    %1040 = vmatpush1.bf16.msra.mxu0 0
    %1041 = vmatprep.subr.bf16.mxu0 0
    %1042 = vmatpush1.bf16.msra.mxu0 0
    %1043 = vmatprep.mubr.bf16.mxu0 0
    %1044 = vmatmul.mubr.bf16.gmra.mrb[0].mxu0 %v1009
    %v1045 = vpop.f32.mrb[0].mxu0
    %v1046 = vadd.f32 %v994, %v1045
    %v1047 = vpop.f32.mrb[0].mxu0
    %v1048 = vpop.f32.mrb[0].mxu0
    %v1049 = vadd.f32 %v994, %v1048
    %v1050 = vpop.f32.mrb[0].mxu0
    %1051 = vdwg.mxu0
    %v1052 = vmul.f32 %v1046, 0.5
    %v1053 = vmul.f32 %v1049, 0.5
    %v1054 = vmul.f32 %v1046, 0.044715
    %v1055 = vmul.f32 %v1049, 0.044715
    %v1056 = vmul.f32 %v1054, %v1046
    %v1057 = vmul.f32 %v1055, %v1049
    %v1058 = vmul.f32 %v1056, %v1046
    %v1059 = vmul.f32 %v1057, %v1049
    %v1060 = vadd.f32 %v1046, %v1058
    %v1061 = vadd.f32 %v1049, %v1059
    %v1062 = vmul.f32 %v1060, 0.7978846
    %v1063 = vmul.f32 %v1061, 0.7978846
    %v1064 = vtanh.pop %v1062
    %v1065 = vtanh.pop %v1063
    %v1066 = vadd.f32 %v1064, 1.0
    %v1067 = vadd.f32 %v1065, 1.0
    %v1068 = vmul.f32 %v1052, %v1066
    %v1069 = vmul.f32 %v1053, %v1067
    %v1070 = vld [vmem:[%s12] sm:$0xf]
    %v1071 = vld [vmem:[%s12 + $0x4] sm:$0xf]
    %v1072 = vld [vmem:[%s12 + $0x8] sm:$0xf]
    %v1073 = vld [vmem:[%s12 + $0xc] sm:$0xf]
    %v1074 = vld [vmem:[%s12 + $0x10] sm:$0xf]
    %v1075 = vld [vmem:[%s12 + $0x14] sm:$0xf]
    %v1076 = vld [vmem:[%s12 + $0x18] sm:$0xf]
    %v1077 = vld [vmem:[%s12 + $0x1c] sm:$0xf]
    %v1078 = vpack.c.bf16 %v1069, %v1068
    %v1079 = vld [vmem:[%s13] sm:$0x1]
    %v1081 = vlaneseq
    %v1082 = vshrl.u32 %v1081, 7
    %v1083 = vsub.s32 0, %v1082
    %v1084 = vrot.slane %v1079, %v1083
    %v1094 = vunpack.c.l.b16 %v1070
    %v1095 = vunpack.c.l.b16 %v1071
    %v1096 = vunpack.c.l.b16 %v1072
    %v1097 = vunpack.c.l.b16 %v1073
    %v1098 = vunpack.c.l.b16 %v1074
    %v1099 = vunpack.c.l.b16 %v1075
    %v1100 = vunpack.c.l.b16 %v1076
    %v1101 = vunpack.c.l.b16 %v1077
    %v1102 = vpack.c.b16 %v1095, %v1094
    %v1103 = vpack.c.b16 %v1097, %v1096
    %v1104 = vpack.c.b16 %v1099, %v1098
    %v1105 = vpack.c.b16 %v1101, %v1100
    %vm1110 = vcmask 523264
    %v1112 = vsel %vm1110, %v1078, 0
    %1114 = vmatprep.subr.bf16.mxu0 0
    %1115 = vmatpush1.bf16.msra.mxu0 %v1102
    %1116 = vmatprep.subr.bf16.mxu0 0
    %1117 = vmatpush1.bf16.msra.mxu0 %v1103
    %1118 = vmatprep.subr.bf16.mxu0 0
    %1119 = vmatpush1.bf16.msra.mxu0 %v1104
    %1120 = vmatprep.subr.bf16.mxu0 0
    %1121 = vmatpush1.bf16.msra.mxu0 %v1105
    %1122 = vmatprep.subr.bf16.mxu0 0
    %1123 = vmatpush1.bf16.msra.mxu0 0
    %1124 = vmatprep.subr.bf16.mxu0 0
    %1125 = vmatpush1.bf16.msra.mxu0 0
    %1126 = vmatprep.subr.bf16.mxu0 0
    %1127 = vmatpush1.bf16.msra.mxu0 0
    %1128 = vmatprep.subr.bf16.mxu0 0
    %1129 = vmatpush1.bf16.msra.mxu0 0
    %1130 = vmatprep.subr.bf16.mxu0 0
    %1131 = vmatpush1.bf16.msra.mxu0 0
    %1132 = vmatprep.subr.bf16.mxu0 0
    %1133 = vmatpush1.bf16.msra.mxu0 0
    %1134 = vmatprep.subr.bf16.mxu0 0
    %1135 = vmatpush1.bf16.msra.mxu0 0
    %1136 = vmatprep.subr.bf16.mxu0 0
    %1137 = vmatpush1.bf16.msra.mxu0 0
    %1138 = vmatprep.subr.bf16.mxu0 0
    %1139 = vmatpush1.bf16.msra.mxu0 0
    %1140 = vmatprep.subr.bf16.mxu0 0
    %1141 = vmatpush1.bf16.msra.mxu0 0
    %1142 = vmatprep.subr.bf16.mxu0 0
    %1143 = vmatpush1.bf16.msra.mxu0 0
    %1144 = vmatprep.subr.bf16.mxu0 0
    %1145 = vmatpush1.bf16.msra.mxu0 0
    %1146 = vmatprep.mubr.bf16.mxu0 0
    %1147 = vmatmul.mubr.bf16.gmra.mrb[0].mxu0 %v1112
    %v1148 = vpop.f32.mrb[0].mxu0
    %v1149 = vadd.f32 %v1084, %v1148
    %v1150 = vpop.f32.mrb[0].mxu0
    %v1151 = vpop.f32.mrb[0].mxu0
    %v1152 = vadd.f32 %v1084, %v1151
    %v1153 = vpop.f32.mrb[0].mxu0
    %1154 = vdwg.mxu0
    %v1155 = vadd.f32 %v1149, %v982
    %v1156 = vadd.f32 %v1152, %v983
    %v1157 = vld [vmem:[%s14] sm:$0x1]
    %v1158 = vld [vmem:[%s15] sm:$0x1]
    %v1159 = vsel %vm71, %v1155, 0.0
    %1160 = vadd.xlane.f32.xlu0 %v1159
    %v1161 = vpop.xlane.xlu0 %1160
    %v1162 = vsel %vm71, %v1156, 0.0
    %1163 = vadd.xlane.f32.xlu0 %v1162
    %v1164 = vpop.xlane.xlu0 %1163
    %v1165 = vmul.f32 %v1161, %v78
    %v1166 = vmul.f32 %v1164, %v78
    %v1167 = vsub.f32 %v1155, %v1165
    %v1168 = vsub.f32 %v1156, %v1166
    %v1169 = vmul.f32 %v1167, %v1167
    %v1170 = vmul.f32 %v1168, %v1168
    %v1171 = vsel %vm71, %v1169, 0.0
    %1172 = vadd.xlane.f32.xlu0 %v1171
    %v1173 = vpop.xlane.xlu0 %1172
    %v1174 = vsel %vm71, %v1170, 0.0
    %1175 = vadd.xlane.f32.xlu0 %v1174
    %v1176 = vpop.xlane.xlu0 %1175
    %v1177 = vmul.f32 %v1173, %v78
    %v1178 = vmul.f32 %v1176, %v78
    %v1179 = vadd.f32 %v1177, 1e-12
    %v1180 = vadd.f32 %v1178, 1e-12
    %v1181 = vrsqrt.pop %v1179
    %v1182 = vrsqrt.pop %v1180
    %v1183 = vmul.f32 %v1167, %v1181
    %v1184 = vmul.f32 %v1168, %v1182
    %v1186 = vlaneseq
    %v1187 = vshrl.u32 %v1186, 7
    %v1188 = vsub.s32 0, %v1187
    %v1189 = vrot.slane %v1157, %v1188
    %v1191 = vmul.f32 %v1183, %v1189
    %v1192 = vmul.f32 %v1184, %v1189
    %v1194 = vlaneseq
    %v1195 = vshrl.u32 %v1194, 7
    %v1196 = vsub.s32 0, %v1195
    %v1197 = vrot.slane %v1158, %v1196
    %v1199 = vadd.f32 %v1191, %v1197
    %v1200 = vadd.f32 %v1192, %v1197
    %s1201 = scalar_lea.vmem %s4, 16
    %v1202 = vld [vmem:[%s1201] sm:$0xf]
    %v1203 = vld [vmem:[%s1201 + $0x4] sm:$0xf]
    %v1204 = vld [vmem:[%s1201 + $0x8] sm:$0xf]
    %v1205 = vld [vmem:[%s1201 + $0xc] sm:$0xf]
    %v1206 = vpack.c.bf16 %v1200, %v1199
    %s1207 = scalar_lea.vmem %s5, 1
    %v1208 = vld [vmem:[%s1207] sm:$0x1]
    %v1210 = vlaneseq
    %v1211 = vshrl.u32 %v1210, 7
    %v1212 = vsub.s32 0, %v1211
    %v1213 = vrot.slane %v1208, %v1212
    %v1219 = vunpack.c.l.b16 %v1202
    %v1220 = vunpack.c.l.b16 %v1203
    %v1221 = vunpack.c.l.b16 %v1204
    %v1222 = vunpack.c.l.b16 %v1205
    %v1223 = vpack.c.b16 %v1220, %v1219
    %v1224 = vpack.c.b16 %v1222, %v1221
    %v1228 = vsel %vm71, %v1206, 0
    %1230 = vmatprep.subr.bf16.mxu0 0
    %1231 = vmatpush1.bf16.msra.mxu0 %v1223
    %1232 = vmatprep.subr.bf16.mxu0 0
    %1233 = vmatpush1.bf16.msra.mxu0 %v1224
    %1234 = vmatprep.subr.bf16.mxu0 0
    %1235 = vmatpush1.bf16.msra.mxu0 0
    %1236 = vmatprep.subr.bf16.mxu0 0
    %1237 = vmatpush1.bf16.msra.mxu0 0
    %1238 = vmatprep.subr.bf16.mxu0 0
    %1239 = vmatpush1.bf16.msra.mxu0 0
    %1240 = vmatprep.subr.bf16.mxu0 0
    %1241 = vmatpush1.bf16.msra.mxu0 0
    %1242 = vmatprep.subr.bf16.mxu0 0
    %1243 = vmatpush1.bf16.msra.mxu0 0
    %1244 = vmatprep.subr.bf16.mxu0 0
    %1245 = vmatpush1.bf16.msra.mxu0 0
    %1246 = vmatprep.subr.bf16.mxu0 0
    %1247 = vmatpush1.bf16.msra.mxu0 0
    %1248 = vmatprep.subr.bf16.mxu0 0
    %1249 = vmatpush1.bf16.msra.mxu0 0
    %1250 = vmatprep.subr.bf16.mxu0 0
    %1251 = vmatpush1.bf16.msra.mxu0 0
    %1252 = vmatprep.subr.bf16.mxu0 0
    %1253 = vmatpush1.bf16.msra.mxu0 0
    %1254 = vmatprep.subr.bf16.mxu0 0
    %1255 = vmatpush1.bf16.msra.mxu0 0
    %1256 = vmatprep.subr.bf16.mxu0 0
    %1257 = vmatpush1.bf16.msra.mxu0 0
    %1258 = vmatprep.subr.bf16.mxu0 0
    %1259 = vmatpush1.bf16.msra.mxu0 0
    %1260 = vmatprep.subr.bf16.mxu0 0
    %1261 = vmatpush1.bf16.msra.mxu0 0
    %1262 = vmatprep.mubr.bf16.mxu0 0
    %1263 = vmatmul.mubr.bf16.gmra.mrb[0].mxu0 %v1228
    %v1264 = vpop.f32.mrb[0].mxu0
    %v1265 = vadd.f32 %v1213, %v1264
    %v1266 = vpop.f32.mrb[0].mxu0
    %v1267 = vpop.f32.mrb[0].mxu0
    %v1268 = vadd.f32 %v1213, %v1267
    %v1269 = vpop.f32.mrb[0].mxu0
    %1270 = vdwg.mxu0
    %1272 = vrot.lane.b32.xlu0 %v1265, 96
    %v1273 = vpop.permute.xlu0 %1272
    %v1274 = vsel %vm187, %v1265, 0
    %v1276 = vsel %vm187, %v1273, 0
    %1278 = vmatprep.subr.mxu0 0.0
    %1279 = vmatpush1.xpose.msra.mxu0 %v1276
    %1280 = vmatprep.subr.mxu0 0.0
    %1281 = vmatpush1.xpose.msra.mxu0 0.0
    %1282 = vmatprep.subr.mxu0 0.0
    %1283 = vmatpush1.xpose.msra.mxu0 0.0
    %1284 = vmatprep.subr.mxu0 0.0
    %1285 = vmatpush1.xpose.msra.mxu0 0.0
    %1286 = vmatprep.subr.mxu0 0.0
    %1287 = vmatpush1.xpose.msra.mxu0 0.0
    %1288 = vmatprep.subr.mxu0 0.0
    %1289 = vmatpush1.xpose.msra.mxu0 0.0
    %1290 = vmatprep.subr.mxu0 0.0
    %1291 = vmatpush1.xpose.msra.mxu0 0.0
    %1292 = vmatprep.subr.mxu0 0.0
    %1293 = vmatpush1.xpose.msra.mxu0 0.0
    %1294 = vmatprep.subr.mxu0 0.0
    %1295 = vmatpush1.xpose.msra.mxu0 0.0
    %1296 = vmatprep.subr.mxu0 0.0
    %1297 = vmatpush1.xpose.msra.mxu0 0.0
    %1298 = vmatprep.subr.mxu0 0.0
    %1299 = vmatpush1.xpose.msra.mxu0 0.0
    %1300 = vmatprep.subr.mxu0 0.0
    %1301 = vmatpush1.xpose.msra.mxu0 0.0
    %1302 = vmatprep.subr.mxu0 0.0
    %1303 = vmatpush1.xpose.msra.mxu0 0.0
    %1304 = vmatprep.subr.mxu0 0.0
    %1305 = vmatpush1.xpose.msra.mxu0 0.0
    %1306 = vmatprep.subr.mxu0 0.0
    %1307 = vmatpush1.xpose.msra.mxu0 0.0
    %1308 = vmatprep.subr.mxu0 0.0
    %1309 = vmatpush1.xpose.msra.mxu0 0.0
    %1310 = vmatprep.subr.mxu0 0.0
    %1311 = vmatpush1.xpose.msra.mxu0 0.0
    %1312 = vmatprep.subr.mxu0 0.0
    %1313 = vmatpush1.xpose.msra.mxu0 0.0
    %1314 = vmatprep.subr.mxu0 0.0
    %1315 = vmatpush1.xpose.msra.mxu0 0.0
    %1316 = vmatprep.subr.mxu0 0.0
    %1317 = vmatpush1.xpose.msra.mxu0 0.0
    %1318 = vmatprep.subr.mxu0 0.0
    %1319 = vmatpush1.xpose.msra.mxu0 0.0
    %1320 = vmatprep.subr.mxu0 0.0
    %1321 = vmatpush1.xpose.msra.mxu0 0.0
    %1322 = vmatprep.subr.mxu0 0.0
    %1323 = vmatpush1.xpose.msra.mxu0 0.0
    %1324 = vmatprep.subr.mxu0 0.0
    %1325 = vmatpush1.xpose.msra.mxu0 0.0
    %1326 = vmatprep.subr.mxu0 0.0
    %1327 = vmatpush1.xpose.msra.mxu0 0.0
    %1328 = vmatprep.subr.mxu0 0.0
    %1329 = vmatpush1.xpose.msra.mxu0 0.0
    %1330 = vmatprep.subr.mxu0 0.0
    %1331 = vmatpush1.xpose.msra.mxu0 0.0
    %1332 = vmatprep.subr.mxu0 0.0
    %1333 = vmatpush1.xpose.msra.mxu0 0.0
    %1334 = vmatprep.subr.mxu0 0.0
    %1335 = vmatpush1.xpose.msra.mxu0 0.0
    %1336 = vmatprep.subr.mxu0 0.0
    %1337 = vmatpush1.xpose.msra.mxu0 0.0
    %1338 = vmatprep.subr.mxu0 0.0
    %1339 = vmatpush1.xpose.msra.mxu0 0.0
    %1340 = vmatprep.subr.mxu0 0.0
    %1341 = vmatpush1.xpose.msra.mxu0 0.0
    %1342 = vmatprep.mubr.f32.mxu0 0.0
    %1343 = vmatmul.mubr.f32.gmra.mrb[0].mxu0 %v1274
    %v1344 = vpop.f32.mrb[0].mxu0
    %v1345 = vadd.f32 0.0, %v1344
    %v1346 = vpop.f32.mrb[0].mxu0
    %1347 = vdwg.mxu0
    %v1348 = vmul.f32 %v1345, 0.25
    %v1349 = vadd.f32 %v1348, %v266
    %v1350 = vsel %vm268, %v1349, -inf
    %1351 = vmax.xlane.f32.xlu0 %v1350
    %v1352 = vpop.xlane.xlu0 %1351
    %v1353 = vsub.f32 %v1349, %v1352
    %v1354 = vmul.f32 %v1353, 1.442695
    %v1355 = vpow.pop %v1354
    %v1356 = vsel %vm268, %v1355, 0.0
    %1357 = vadd.xlane.f32.xlu0 %v1356
    %v1358 = vpop.xlane.xlu0 %1357
    %v1359 = vrcp.pop %v1358
    %v1360 = vmul.f32 %v1355, %v1359
    %1361 = vrot.lane.b32.xlu0 %v1265, 64
    %v1362 = vpop.permute.xlu0 %1361
    %v1365 = vsel %vm268, %v1360, 0
    %1367 = vmatprep.subr.mxu0 0.0
    %1368 = vmatpush1.msra.mxu0 %v1362
    %1369 = vmatprep.subr.mxu0 0.0
    %1370 = vmatpush1.msra.mxu0 0.0
    %1371 = vmatprep.subr.mxu0 0.0
    %1372 = vmatpush1.msra.mxu0 0.0
    %1373 = vmatprep.subr.mxu0 0.0
    %1374 = vmatpush1.msra.mxu0 0.0
    %1375 = vmatprep.subr.mxu0 0.0
    %1376 = vmatpush1.msra.mxu0 0.0
    %1377 = vmatprep.subr.mxu0 0.0
    %1378 = vmatpush1.msra.mxu0 0.0
    %1379 = vmatprep.subr.mxu0 0.0
    %1380 = vmatpush1.msra.mxu0 0.0
    %1381 = vmatprep.subr.mxu0 0.0
    %1382 = vmatpush1.msra.mxu0 0.0
    %1383 = vmatprep.subr.mxu0 0.0
    %1384 = vmatpush1.msra.mxu0 0.0
    %1385 = vmatprep.subr.mxu0 0.0
    %1386 = vmatpush1.msra.mxu0 0.0
    %1387 = vmatprep.subr.mxu0 0.0
    %1388 = vmatpush1.msra.mxu0 0.0
    %1389 = vmatprep.subr.mxu0 0.0
    %1390 = vmatpush1.msra.mxu0 0.0
    %1391 = vmatprep.subr.mxu0 0.0
    %1392 = vmatpush1.msra.mxu0 0.0
    %1393 = vmatprep.subr.mxu0 0.0
    %1394 = vmatpush1.msra.mxu0 0.0
    %1395 = vmatprep.subr.mxu0 0.0
    %1396 = vmatpush1.msra.mxu0 0.0
    %1397 = vmatprep.subr.mxu0 0.0
    %1398 = vmatpush1.msra.mxu0 0.0
    %1399 = vmatprep.subr.mxu0 0.0
    %1400 = vmatpush1.msra.mxu0 0.0
    %1401 = vmatprep.subr.mxu0 0.0
    %1402 = vmatpush1.msra.mxu0 0.0
    %1403 = vmatprep.subr.mxu0 0.0
    %1404 = vmatpush1.msra.mxu0 0.0
    %1405 = vmatprep.subr.mxu0 0.0
    %1406 = vmatpush1.msra.mxu0 0.0
    %1407 = vmatprep.subr.mxu0 0.0
    %1408 = vmatpush1.msra.mxu0 0.0
    %1409 = vmatprep.subr.mxu0 0.0
    %1410 = vmatpush1.msra.mxu0 0.0
    %1411 = vmatprep.subr.mxu0 0.0
    %1412 = vmatpush1.msra.mxu0 0.0
    %1413 = vmatprep.subr.mxu0 0.0
    %1414 = vmatpush1.msra.mxu0 0.0
    %1415 = vmatprep.subr.mxu0 0.0
    %1416 = vmatpush1.msra.mxu0 0.0
    %1417 = vmatprep.subr.mxu0 0.0
    %1418 = vmatpush1.msra.mxu0 0.0
    %1419 = vmatprep.subr.mxu0 0.0
    %1420 = vmatpush1.msra.mxu0 0.0
    %1421 = vmatprep.subr.mxu0 0.0
    %1422 = vmatpush1.msra.mxu0 0.0
    %1423 = vmatprep.subr.mxu0 0.0
    %1424 = vmatpush1.msra.mxu0 0.0
    %1425 = vmatprep.subr.mxu0 0.0
    %1426 = vmatpush1.msra.mxu0 0.0
    %1427 = vmatprep.subr.mxu0 0.0
    %1428 = vmatpush1.msra.mxu0 0.0
    %1429 = vmatprep.subr.mxu0 0.0
    %1430 = vmatpush1.msra.mxu0 0.0
    %1431 = vmatprep.mubr.f32.mxu0 0.0
    %1432 = vmatmul.mubr.f32.gmra.mrb[0].mxu0 %v1365
    %v1433 = vpop.f32.mrb[0].mxu0
    %v1434 = vadd.f32 0.0, %v1433
    %v1435 = vpop.f32.mrb[0].mxu0
    %1436 = vdwg.mxu0
    %1437 = vrot.lane.b32.xlu0 %v1265, 112
    %v1438 = vpop.permute.xlu0 %1437
    %1439 = vrot.lane.b32.xlu0 %v1265, 80
    %v1440 = vpop.permute.xlu0 %1439
    %v1441 = vsel %vm187, %v1438, 0
    %v1443 = vsel %vm187, %v1440, 0
    %1445 = vmatprep.subr.mxu0 0.0
    %1446 = vmatpush1.xpose.msra.mxu0 %v1443
    %1447 = vmatprep.subr.mxu0 0.0
    %1448 = vmatpush1.xpose.msra.mxu0 0.0
    %1449 = vmatprep.subr.mxu0 0.0
    %1450 = vmatpush1.xpose.msra.mxu0 0.0
    %1451 = vmatprep.subr.mxu0 0.0
    %1452 = vmatpush1.xpose.msra.mxu0 0.0
    %1453 = vmatprep.subr.mxu0 0.0
    %1454 = vmatpush1.xpose.msra.mxu0 0.0
    %1455 = vmatprep.subr.mxu0 0.0
    %1456 = vmatpush1.xpose.msra.mxu0 0.0
    %1457 = vmatprep.subr.mxu0 0.0
    %1458 = vmatpush1.xpose.msra.mxu0 0.0
    %1459 = vmatprep.subr.mxu0 0.0
    %1460 = vmatpush1.xpose.msra.mxu0 0.0
    %1461 = vmatprep.subr.mxu0 0.0
    %1462 = vmatpush1.xpose.msra.mxu0 0.0
    %1463 = vmatprep.subr.mxu0 0.0
    %1464 = vmatpush1.xpose.msra.mxu0 0.0
    %1465 = vmatprep.subr.mxu0 0.0
    %1466 = vmatpush1.xpose.msra.mxu0 0.0
    %1467 = vmatprep.subr.mxu0 0.0
    %1468 = vmatpush1.xpose.msra.mxu0 0.0
    %1469 = vmatprep.subr.mxu0 0.0
    %1470 = vmatpush1.xpose.msra.mxu0 0.0
    %1471 = vmatprep.subr.mxu0 0.0
    %1472 = vmatpush1.xpose.msra.mxu0 0.0
    %1473 = vmatprep.subr.mxu0 0.0
    %1474 = vmatpush1.xpose.msra.mxu0 0.0
    %1475 = vmatprep.subr.mxu0 0.0
    %1476 = vmatpush1.xpose.msra.mxu0 0.0
    %1477 = vmatprep.subr.mxu0 0.0
    %1478 = vmatpush1.xpose.msra.mxu0 0.0
    %1479 = vmatprep.subr.mxu0 0.0
    %1480 = vmatpush1.xpose.msra.mxu0 0.0
    %1481 = vmatprep.subr.mxu0 0.0
    %1482 = vmatpush1.xpose.msra.mxu0 0.0
    %1483 = vmatprep.subr.mxu0 0.0
    %1484 = vmatpush1.xpose.msra.mxu0 0.0
    %1485 = vmatprep.subr.mxu0 0.0
    %1486 = vmatpush1.xpose.msra.mxu0 0.0
    %1487 = vmatprep.subr.mxu0 0.0
    %1488 = vmatpush1.xpose.msra.mxu0 0.0
    %1489 = vmatprep.subr.mxu0 0.0
    %1490 = vmatpush1.xpose.msra.mxu0 0.0
    %1491 = vmatprep.subr.mxu0 0.0
    %1492 = vmatpush1.xpose.msra.mxu0 0.0
    %1493 = vmatprep.subr.mxu0 0.0
    %1494 = vmatpush1.xpose.msra.mxu0 0.0
    %1495 = vmatprep.subr.mxu0 0.0
    %1496 = vmatpush1.xpose.msra.mxu0 0.0
    %1497 = vmatprep.subr.mxu0 0.0
    %1498 = vmatpush1.xpose.msra.mxu0 0.0
    %1499 = vmatprep.subr.mxu0 0.0
    %1500 = vmatpush1.xpose.msra.mxu0 0.0
    %1501 = vmatprep.subr.mxu0 0.0
    %1502 = vmatpush1.xpose.msra.mxu0 0.0
    %1503 = vmatprep.subr.mxu0 0.0
    %1504 = vmatpush1.xpose.msra.mxu0 0.0
    %1505 = vmatprep.subr.mxu0 0.0
    %1506 = vmatpush1.xpose.msra.mxu0 0.0
    %1507 = vmatprep.subr.mxu0 0.0
    %1508 = vmatpush1.xpose.msra.mxu0 0.0
    %1509 = vmatprep.mubr.f32.mxu0 0.0
    %1510 = vmatmul.mubr.f32.gmra.mrb[0].mxu0 %v1441
    %v1511 = vpop.f32.mrb[0].mxu0
    %v1512 = vadd.f32 0.0, %v1511
    %v1513 = vpop.f32.mrb[0].mxu0
    %1514 = vdwg.mxu0
    %v1515 = vmul.f32 %v1512, 0.25
    %v1516 = vadd.f32 %v1515, %v266
    %v1517 = vsel %vm268, %v1516, -inf
    %1518 = vmax.xlane.f32.xlu0 %v1517
    %v1519 = vpop.xlane.xlu0 %1518
    %v1520 = vsub.f32 %v1516, %v1519
    %v1521 = vmul.f32 %v1520, 1.442695
    %v1522 = vpow.pop %v1521
    %v1523 = vsel %vm268, %v1522, 0.0
    %1524 = vadd.xlane.f32.xlu0 %v1523
    %v1525 = vpop.xlane.xlu0 %1524
    %v1526 = vrcp.pop %v1525
    %v1527 = vmul.f32 %v1522, %v1526
    %1528 = vrot.lane.b32.xlu0 %v1265, 48
    %v1529 = vpop.permute.xlu0 %1528
    %v1532 = vsel %vm268, %v1527, 0
    %1534 = vmatprep.subr.mxu0 0.0
    %1535 = vmatpush1.msra.mxu0 %v1529
    %1536 = vmatprep.subr.mxu0 0.0
    %1537 = vmatpush1.msra.mxu0 0.0
    %1538 = vmatprep.subr.mxu0 0.0
    %1539 = vmatpush1.msra.mxu0 0.0
    %1540 = vmatprep.subr.mxu0 0.0
    %1541 = vmatpush1.msra.mxu0 0.0
    %1542 = vmatprep.subr.mxu0 0.0
    %1543 = vmatpush1.msra.mxu0 0.0
    %1544 = vmatprep.subr.mxu0 0.0
    %1545 = vmatpush1.msra.mxu0 0.0
    %1546 = vmatprep.subr.mxu0 0.0
    %1547 = vmatpush1.msra.mxu0 0.0
    %1548 = vmatprep.subr.mxu0 0.0
    %1549 = vmatpush1.msra.mxu0 0.0
    %1550 = vmatprep.subr.mxu0 0.0
    %1551 = vmatpush1.msra.mxu0 0.0
    %1552 = vmatprep.subr.mxu0 0.0
    %1553 = vmatpush1.msra.mxu0 0.0
    %1554 = vmatprep.subr.mxu0 0.0
    %1555 = vmatpush1.msra.mxu0 0.0
    %1556 = vmatprep.subr.mxu0 0.0
    %1557 = vmatpush1.msra.mxu0 0.0
    %1558 = vmatprep.subr.mxu0 0.0
    %1559 = vmatpush1.msra.mxu0 0.0
    %1560 = vmatprep.subr.mxu0 0.0
    %1561 = vmatpush1.msra.mxu0 0.0
    %1562 = vmatprep.subr.mxu0 0.0
    %1563 = vmatpush1.msra.mxu0 0.0
    %1564 = vmatprep.subr.mxu0 0.0
    %1565 = vmatpush1.msra.mxu0 0.0
    %1566 = vmatprep.subr.mxu0 0.0
    %1567 = vmatpush1.msra.mxu0 0.0
    %1568 = vmatprep.subr.mxu0 0.0
    %1569 = vmatpush1.msra.mxu0 0.0
    %1570 = vmatprep.subr.mxu0 0.0
    %1571 = vmatpush1.msra.mxu0 0.0
    %1572 = vmatprep.subr.mxu0 0.0
    %1573 = vmatpush1.msra.mxu0 0.0
    %1574 = vmatprep.subr.mxu0 0.0
    %1575 = vmatpush1.msra.mxu0 0.0
    %1576 = vmatprep.subr.mxu0 0.0
    %1577 = vmatpush1.msra.mxu0 0.0
    %1578 = vmatprep.subr.mxu0 0.0
    %1579 = vmatpush1.msra.mxu0 0.0
    %1580 = vmatprep.subr.mxu0 0.0
    %1581 = vmatpush1.msra.mxu0 0.0
    %1582 = vmatprep.subr.mxu0 0.0
    %1583 = vmatpush1.msra.mxu0 0.0
    %1584 = vmatprep.subr.mxu0 0.0
    %1585 = vmatpush1.msra.mxu0 0.0
    %1586 = vmatprep.subr.mxu0 0.0
    %1587 = vmatpush1.msra.mxu0 0.0
    %1588 = vmatprep.subr.mxu0 0.0
    %1589 = vmatpush1.msra.mxu0 0.0
    %1590 = vmatprep.subr.mxu0 0.0
    %1591 = vmatpush1.msra.mxu0 0.0
    %1592 = vmatprep.subr.mxu0 0.0
    %1593 = vmatpush1.msra.mxu0 0.0
    %1594 = vmatprep.subr.mxu0 0.0
    %1595 = vmatpush1.msra.mxu0 0.0
    %1596 = vmatprep.subr.mxu0 0.0
    %1597 = vmatpush1.msra.mxu0 0.0
    %1598 = vmatprep.mubr.f32.mxu0 0.0
    %1599 = vmatmul.mubr.f32.gmra.mrb[0].mxu0 %v1532
    %v1600 = vpop.f32.mrb[0].mxu0
    %v1601 = vadd.f32 0.0, %v1600
    %v1602 = vpop.f32.mrb[0].mxu0
    %1603 = vdwg.mxu0
    %1605 = vrot.lane.b32.xlu0 %v1601, 16
    %v1606 = vpop.permute.xlu0 %1605
    %v1608 = vsel %vm187, %v1434, %v1606
    %1610 = vrot.lane.b32.xlu0 %v1268, 96
    %v1611 = vpop.permute.xlu0 %1610
    %v1612 = vsel %vm187, %v1268, 0
    %v1614 = vsel %vm187, %v1611, 0
    %1616 = vmatprep.subr.mxu0 0.0
    %1617 = vmatpush1.xpose.msra.mxu0 %v1614
    %1618 = vmatprep.subr.mxu0 0.0
    %1619 = vmatpush1.xpose.msra.mxu0 0.0
    %1620 = vmatprep.subr.mxu0 0.0
    %1621 = vmatpush1.xpose.msra.mxu0 0.0
    %1622 = vmatprep.subr.mxu0 0.0
    %1623 = vmatpush1.xpose.msra.mxu0 0.0
    %1624 = vmatprep.subr.mxu0 0.0
    %1625 = vmatpush1.xpose.msra.mxu0 0.0
    %1626 = vmatprep.subr.mxu0 0.0
    %1627 = vmatpush1.xpose.msra.mxu0 0.0
    %1628 = vmatprep.subr.mxu0 0.0
    %1629 = vmatpush1.xpose.msra.mxu0 0.0
    %1630 = vmatprep.subr.mxu0 0.0
    %1631 = vmatpush1.xpose.msra.mxu0 0.0
    %1632 = vmatprep.subr.mxu0 0.0
    %1633 = vmatpush1.xpose.msra.mxu0 0.0
    %1634 = vmatprep.subr.mxu0 0.0
    %1635 = vmatpush1.xpose.msra.mxu0 0.0
    %1636 = vmatprep.subr.mxu0 0.0
    %1637 = vmatpush1.xpose.msra.mxu0 0.0
    %1638 = vmatprep.subr.mxu0 0.0
    %1639 = vmatpush1.xpose.msra.mxu0 0.0
    %1640 = vmatprep.subr.mxu0 0.0
    %1641 = vmatpush1.xpose.msra.mxu0 0.0
    %1642 = vmatprep.subr.mxu0 0.0
    %1643 = vmatpush1.xpose.msra.mxu0 0.0
    %1644 = vmatprep.subr.mxu0 0.0
    %1645 = vmatpush1.xpose.msra.mxu0 0.0
    %1646 = vmatprep.subr.mxu0 0.0
    %1647 = vmatpush1.xpose.msra.mxu0 0.0
    %1648 = vmatprep.subr.mxu0 0.0
    %1649 = vmatpush1.xpose.msra.mxu0 0.0
    %1650 = vmatprep.subr.mxu0 0.0
    %1651 = vmatpush1.xpose.msra.mxu0 0.0
    %1652 = vmatprep.subr.mxu0 0.0
    %1653 = vmatpush1.xpose.msra.mxu0 0.0
    %1654 = vmatprep.subr.mxu0 0.0
    %1655 = vmatpush1.xpose.msra.mxu0 0.0
    %1656 = vmatprep.subr.mxu0 0.0
    %1657 = vmatpush1.xpose.msra.mxu0 0.0
    %1658 = vmatprep.subr.mxu0 0.0
    %1659 = vmatpush1.xpose.msra.mxu0 0.0
    %1660 = vmatprep.subr.mxu0 0.0
    %1661 = vmatpush1.xpose.msra.mxu0 0.0
    %1662 = vmatprep.subr.mxu0 0.0
    %1663 = vmatpush1.xpose.msra.mxu0 0.0
    %1664 = vmatprep.subr.mxu0 0.0
    %1665 = vmatpush1.xpose.msra.mxu0 0.0
    %1666 = vmatprep.subr.mxu0 0.0
    %1667 = vmatpush1.xpose.msra.mxu0 0.0
    %1668 = vmatprep.subr.mxu0 0.0
    %1669 = vmatpush1.xpose.msra.mxu0 0.0
    %1670 = vmatprep.subr.mxu0 0.0
    %1671 = vmatpush1.xpose.msra.mxu0 0.0
    %1672 = vmatprep.subr.mxu0 0.0
    %1673 = vmatpush1.xpose.msra.mxu0 0.0
    %1674 = vmatprep.subr.mxu0 0.0
    %1675 = vmatpush1.xpose.msra.mxu0 0.0
    %1676 = vmatprep.subr.mxu0 0.0
    %1677 = vmatpush1.xpose.msra.mxu0 0.0
    %1678 = vmatprep.subr.mxu0 0.0
    %1679 = vmatpush1.xpose.msra.mxu0 0.0
    %1680 = vmatprep.mubr.f32.mxu0 0.0
    %1681 = vmatmul.mubr.f32.gmra.mrb[0].mxu0 %v1612
    %v1682 = vpop.f32.mrb[0].mxu0
    %v1683 = vadd.f32 0.0, %v1682
    %v1684 = vpop.f32.mrb[0].mxu0
    %1685 = vdwg.mxu0
    %v1686 = vmul.f32 %v1683, 0.25
    %v1687 = vadd.f32 %v1686, %v609
    %v1688 = vsel %vm268, %v1687, -inf
    %1689 = vmax.xlane.f32.xlu0 %v1688
    %v1690 = vpop.xlane.xlu0 %1689
    %v1691 = vsub.f32 %v1687, %v1690
    %v1692 = vmul.f32 %v1691, 1.442695
    %v1693 = vpow.pop %v1692
    %v1694 = vsel %vm268, %v1693, 0.0
    %1695 = vadd.xlane.f32.xlu0 %v1694
    %v1696 = vpop.xlane.xlu0 %1695
    %v1697 = vrcp.pop %v1696
    %v1698 = vmul.f32 %v1693, %v1697
    %1699 = vrot.lane.b32.xlu0 %v1268, 64
    %v1700 = vpop.permute.xlu0 %1699
    %v1703 = vsel %vm268, %v1698, 0
    %1705 = vmatprep.subr.mxu0 0.0
    %1706 = vmatpush1.msra.mxu0 %v1700
    %1707 = vmatprep.subr.mxu0 0.0
    %1708 = vmatpush1.msra.mxu0 0.0
    %1709 = vmatprep.subr.mxu0 0.0
    %1710 = vmatpush1.msra.mxu0 0.0
    %1711 = vmatprep.subr.mxu0 0.0
    %1712 = vmatpush1.msra.mxu0 0.0
    %1713 = vmatprep.subr.mxu0 0.0
    %1714 = vmatpush1.msra.mxu0 0.0
    %1715 = vmatprep.subr.mxu0 0.0
    %1716 = vmatpush1.msra.mxu0 0.0
    %1717 = vmatprep.subr.mxu0 0.0
    %1718 = vmatpush1.msra.mxu0 0.0
    %1719 = vmatprep.subr.mxu0 0.0
    %1720 = vmatpush1.msra.mxu0 0.0
    %1721 = vmatprep.subr.mxu0 0.0
    %1722 = vmatpush1.msra.mxu0 0.0
    %1723 = vmatprep.subr.mxu0 0.0
    %1724 = vmatpush1.msra.mxu0 0.0
    %1725 = vmatprep.subr.mxu0 0.0
    %1726 = vmatpush1.msra.mxu0 0.0
    %1727 = vmatprep.subr.mxu0 0.0
    %1728 = vmatpush1.msra.mxu0 0.0
    %1729 = vmatprep.subr.mxu0 0.0
    %1730 = vmatpush1.msra.mxu0 0.0
    %1731 = vmatprep.subr.mxu0 0.0
    %1732 = vmatpush1.msra.mxu0 0.0
    %1733 = vmatprep.subr.mxu0 0.0
    %1734 = vmatpush1.msra.mxu0 0.0
    %1735 = vmatprep.subr.mxu0 0.0
    %1736 = vmatpush1.msra.mxu0 0.0
    %1737 = vmatprep.subr.mxu0 0.0
    %1738 = vmatpush1.msra.mxu0 0.0
    %1739 = vmatprep.subr.mxu0 0.0
    %1740 = vmatpush1.msra.mxu0 0.0
    %1741 = vmatprep.subr.mxu0 0.0
    %1742 = vmatpush1.msra.mxu0 0.0
    %1743 = vmatprep.subr.mxu0 0.0
    %1744 = vmatpush1.msra.mxu0 0.0
    %1745 = vmatprep.subr.mxu0 0.0
    %1746 = vmatpush1.msra.mxu0 0.0
    %1747 = vmatprep.subr.mxu0 0.0
    %1748 = vmatpush1.msra.mxu0 0.0
    %1749 = vmatprep.subr.mxu0 0.0
    %1750 = vmatpush1.msra.mxu0 0.0
    %1751 = vmatprep.subr.mxu0 0.0
    %1752 = vmatpush1.msra.mxu0 0.0
    %1753 = vmatprep.subr.mxu0 0.0
    %1754 = vmatpush1.msra.mxu0 0.0
    %1755 = vmatprep.subr.mxu0 0.0
    %1756 = vmatpush1.msra.mxu0 0.0
    %1757 = vmatprep.subr.mxu0 0.0
    %1758 = vmatpush1.msra.mxu0 0.0
    %1759 = vmatprep.subr.mxu0 0.0
    %1760 = vmatpush1.msra.mxu0 0.0
    %1761 = vmatprep.subr.mxu0 0.0
    %1762 = vmatpush1.msra.mxu0 0.0
    %1763 = vmatprep.subr.mxu0 0.0
    %1764 = vmatpush1.msra.mxu0 0.0
    %1765 = vmatprep.subr.mxu0 0.0
    %1766 = vmatpush1.msra.mxu0 0.0
    %1767 = vmatprep.subr.mxu0 0.0
    %1768 = vmatpush1.msra.mxu0 0.0
    %1769 = vmatprep.mubr.f32.mxu0 0.0
    %1770 = vmatmul.mubr.f32.gmra.mrb[0].mxu0 %v1703
    %v1771 = vpop.f32.mrb[0].mxu0
    %v1772 = vadd.f32 0.0, %v1771
    %v1773 = vpop.f32.mrb[0].mxu0
    %1774 = vdwg.mxu0
    %1775 = vrot.lane.b32.xlu0 %v1268, 112
    %v1776 = vpop.permute.xlu0 %1775
    %1777 = vrot.lane.b32.xlu0 %v1268, 80
    %v1778 = vpop.permute.xlu0 %1777
    %v1779 = vsel %vm187, %v1776, 0
    %v1781 = vsel %vm187, %v1778, 0
    %1783 = vmatprep.subr.mxu0 0.0
    %1784 = vmatpush1.xpose.msra.mxu0 %v1781
    %1785 = vmatprep.subr.mxu0 0.0
    %1786 = vmatpush1.xpose.msra.mxu0 0.0
    %1787 = vmatprep.subr.mxu0 0.0
    %1788 = vmatpush1.xpose.msra.mxu0 0.0
    %1789 = vmatprep.subr.mxu0 0.0
    %1790 = vmatpush1.xpose.msra.mxu0 0.0
    %1791 = vmatprep.subr.mxu0 0.0
    %1792 = vmatpush1.xpose.msra.mxu0 0.0
    %1793 = vmatprep.subr.mxu0 0.0
    %1794 = vmatpush1.xpose.msra.mxu0 0.0
    %1795 = vmatprep.subr.mxu0 0.0
    %1796 = vmatpush1.xpose.msra.mxu0 0.0
    %1797 = vmatprep.subr.mxu0 0.0
    %1798 = vmatpush1.xpose.msra.mxu0 0.0
    %1799 = vmatprep.subr.mxu0 0.0
    %1800 = vmatpush1.xpose.msra.mxu0 0.0
    %1801 = vmatprep.subr.mxu0 0.0
    %1802 = vmatpush1.xpose.msra.mxu0 0.0
    %1803 = vmatprep.subr.mxu0 0.0
    %1804 = vmatpush1.xpose.msra.mxu0 0.0
    %1805 = vmatprep.subr.mxu0 0.0
    %1806 = vmatpush1.xpose.msra.mxu0 0.0
    %1807 = vmatprep.subr.mxu0 0.0
    %1808 = vmatpush1.xpose.msra.mxu0 0.0
    %1809 = vmatprep.subr.mxu0 0.0
    %1810 = vmatpush1.xpose.msra.mxu0 0.0
    %1811 = vmatprep.subr.mxu0 0.0
    %1812 = vmatpush1.xpose.msra.mxu0 0.0
    %1813 = vmatprep.subr.mxu0 0.0
    %1814 = vmatpush1.xpose.msra.mxu0 0.0
    %1815 = vmatprep.subr.mxu0 0.0
    %1816 = vmatpush1.xpose.msra.mxu0 0.0
    %1817 = vmatprep.subr.mxu0 0.0
    %1818 = vmatpush1.xpose.msra.mxu0 0.0
    %1819 = vmatprep.subr.mxu0 0.0
    %1820 = vmatpush1.xpose.msra.mxu0 0.0
    %1821 = vmatprep.subr.mxu0 0.0
    %1822 = vmatpush1.xpose.msra.mxu0 0.0
    %1823 = vmatprep.subr.mxu0 0.0
    %1824 = vmatpush1.xpose.msra.mxu0 0.0
    %1825 = vmatprep.subr.mxu0 0.0
    %1826 = vmatpush1.xpose.msra.mxu0 0.0
    %1827 = vmatprep.subr.mxu0 0.0
    %1828 = vmatpush1.xpose.msra.mxu0 0.0
    %1829 = vmatprep.subr.mxu0 0.0
    %1830 = vmatpush1.xpose.msra.mxu0 0.0
    %1831 = vmatprep.subr.mxu0 0.0
    %1832 = vmatpush1.xpose.msra.mxu0 0.0
    %1833 = vmatprep.subr.mxu0 0.0
    %1834 = vmatpush1.xpose.msra.mxu0 0.0
    %1835 = vmatprep.subr.mxu0 0.0
    %1836 = vmatpush1.xpose.msra.mxu0 0.0
    %1837 = vmatprep.subr.mxu0 0.0
    %1838 = vmatpush1.xpose.msra.mxu0 0.0
    %1839 = vmatprep.subr.mxu0 0.0
    %1840 = vmatpush1.xpose.msra.mxu0 0.0
    %1841 = vmatprep.subr.mxu0 0.0
    %1842 = vmatpush1.xpose.msra.mxu0 0.0
    %1843 = vmatprep.subr.mxu0 0.0
    %1844 = vmatpush1.xpose.msra.mxu0 0.0
    %1845 = vmatprep.subr.mxu0 0.0
    %1846 = vmatpush1.xpose.msra.mxu0 0.0
    %1847 = vmatprep.mubr.f32.mxu0 0.0
    %1848 = vmatmul.mubr.f32.gmra.mrb[0].mxu0 %v1779
    %v1849 = vpop.f32.mrb[0].mxu0
    %v1850 = vadd.f32 0.0, %v1849
    %v1851 = vpop.f32.mrb[0].mxu0
    %1852 = vdwg.mxu0
    %v1853 = vmul.f32 %v1850, 0.25
    %v1854 = vadd.f32 %v1853, %v609
    %v1855 = vsel %vm268, %v1854, -inf
    %1856 = vmax.xlane.f32.xlu0 %v1855
    %v1857 = vpop.xlane.xlu0 %1856
    %v1858 = vsub.f32 %v1854, %v1857
    %v1859 = vmul.f32 %v1858, 1.442695
    %v1860 = vpow.pop %v1859
    %v1861 = vsel %vm268, %v1860, 0.0
    %1862 = vadd.xlane.f32.xlu0 %v1861
    %v1863 = vpop.xlane.xlu0 %1862
    %v1864 = vrcp.pop %v1863
    %v1865 = vmul.f32 %v1860, %v1864
    %1866 = vrot.lane.b32.xlu0 %v1268, 48
    %v1867 = vpop.permute.xlu0 %1866
    %v1870 = vsel %vm268, %v1865, 0
    %1872 = vmatprep.subr.mxu0 0.0
    %1873 = vmatpush1.msra.mxu0 %v1867
    %1874 = vmatprep.subr.mxu0 0.0
    %1875 = vmatpush1.msra.mxu0 0.0
    %1876 = vmatprep.subr.mxu0 0.0
    %1877 = vmatpush1.msra.mxu0 0.0
    %1878 = vmatprep.subr.mxu0 0.0
    %1879 = vmatpush1.msra.mxu0 0.0
    %1880 = vmatprep.subr.mxu0 0.0
    %1881 = vmatpush1.msra.mxu0 0.0
    %1882 = vmatprep.subr.mxu0 0.0
    %1883 = vmatpush1.msra.mxu0 0.0
    %1884 = vmatprep.subr.mxu0 0.0
    %1885 = vmatpush1.msra.mxu0 0.0
    %1886 = vmatprep.subr.mxu0 0.0
    %1887 = vmatpush1.msra.mxu0 0.0
    %1888 = vmatprep.subr.mxu0 0.0
    %1889 = vmatpush1.msra.mxu0 0.0
    %1890 = vmatprep.subr.mxu0 0.0
    %1891 = vmatpush1.msra.mxu0 0.0
    %1892 = vmatprep.subr.mxu0 0.0
    %1893 = vmatpush1.msra.mxu0 0.0
    %1894 = vmatprep.subr.mxu0 0.0
    %1895 = vmatpush1.msra.mxu0 0.0
    %1896 = vmatprep.subr.mxu0 0.0
    %1897 = vmatpush1.msra.mxu0 0.0
    %1898 = vmatprep.subr.mxu0 0.0
    %1899 = vmatpush1.msra.mxu0 0.0
    %1900 = vmatprep.subr.mxu0 0.0
    %1901 = vmatpush1.msra.mxu0 0.0
    %1902 = vmatprep.subr.mxu0 0.0
    %1903 = vmatpush1.msra.mxu0 0.0
    %1904 = vmatprep.subr.mxu0 0.0
    %1905 = vmatpush1.msra.mxu0 0.0
    %1906 = vmatprep.subr.mxu0 0.0
    %1907 = vmatpush1.msra.mxu0 0.0
    %1908 = vmatprep.subr.mxu0 0.0
    %1909 = vmatpush1.msra.mxu0 0.0
    %1910 = vmatprep.subr.mxu0 0.0
    %1911 = vmatpush1.msra.mxu0 0.0
    %1912 = vmatprep.subr.mxu0 0.0
    %1913 = vmatpush1.msra.mxu0 0.0
    %1914 = vmatprep.subr.mxu0 0.0
    %1915 = vmatpush1.msra.mxu0 0.0
    %1916 = vmatprep.subr.mxu0 0.0
    %1917 = vmatpush1.msra.mxu0 0.0
    %1918 = vmatprep.subr.mxu0 0.0
    %1919 = vmatpush1.msra.mxu0 0.0
    %1920 = vmatprep.subr.mxu0 0.0
    %1921 = vmatpush1.msra.mxu0 0.0
    %1922 = vmatprep.subr.mxu0 0.0
    %1923 = vmatpush1.msra.mxu0 0.0
    %1924 = vmatprep.subr.mxu0 0.0
    %1925 = vmatpush1.msra.mxu0 0.0
    %1926 = vmatprep.subr.mxu0 0.0
    %1927 = vmatpush1.msra.mxu0 0.0
    %1928 = vmatprep.subr.mxu0 0.0
    %1929 = vmatpush1.msra.mxu0 0.0
    %1930 = vmatprep.subr.mxu0 0.0
    %1931 = vmatpush1.msra.mxu0 0.0
    %1932 = vmatprep.subr.mxu0 0.0
    %1933 = vmatpush1.msra.mxu0 0.0
    %1934 = vmatprep.subr.mxu0 0.0
    %1935 = vmatpush1.msra.mxu0 0.0
    %1936 = vmatprep.mubr.f32.mxu0 0.0
    %1937 = vmatmul.mubr.f32.gmra.mrb[0].mxu0 %v1870
    %v1938 = vpop.f32.mrb[0].mxu0
    %v1939 = vadd.f32 0.0, %v1938
    %v1940 = vpop.f32.mrb[0].mxu0
    %1941 = vdwg.mxu0
    %1943 = vrot.lane.b32.xlu0 %v1939, 16
    %v1944 = vpop.permute.xlu0 %1943
    %v1946 = vsel %vm187, %v1772, %v1944
    %s1947 = scalar_lea.vmem %s6, 16
    %v1948 = vld [vmem:[%s1947] sm:$0xf]
    %v1949 = vld [vmem:[%s1947 + $0x4] sm:$0xf]
    %v1950 = vld [vmem:[%s1947 + $0x8] sm:$0xf]
    %v1951 = vld [vmem:[%s1947 + $0xc] sm:$0xf]
    %v1952 = vpack.c.bf16 %v1946, %v1608
    %s1953 = scalar_lea.vmem %s7, 1
    %v1954 = vld [vmem:[%s1953] sm:$0x1]
    %v1956 = vlaneseq
    %v1957 = vshrl.u32 %v1956, 7
    %v1958 = vsub.s32 0, %v1957
    %v1959 = vrot.slane %v1954, %v1958
    %v1965 = vunpack.c.l.b16 %v1948
    %v1966 = vunpack.c.l.b16 %v1949
    %v1967 = vunpack.c.l.b16 %v1950
    %v1968 = vunpack.c.l.b16 %v1951
    %v1969 = vpack.c.b16 %v1966, %v1965
    %v1970 = vpack.c.b16 %v1968, %v1967
    %v1974 = vsel %vm71, %v1952, 0
    %1976 = vmatprep.subr.bf16.mxu0 0
    %1977 = vmatpush1.bf16.msra.mxu0 %v1969
    %1978 = vmatprep.subr.bf16.mxu0 0
    %1979 = vmatpush1.bf16.msra.mxu0 %v1970
    %1980 = vmatprep.subr.bf16.mxu0 0
    %1981 = vmatpush1.bf16.msra.mxu0 0
    %1982 = vmatprep.subr.bf16.mxu0 0
    %1983 = vmatpush1.bf16.msra.mxu0 0
    %1984 = vmatprep.subr.bf16.mxu0 0
    %1985 = vmatpush1.bf16.msra.mxu0 0
    %1986 = vmatprep.subr.bf16.mxu0 0
    %1987 = vmatpush1.bf16.msra.mxu0 0
    %1988 = vmatprep.subr.bf16.mxu0 0
    %1989 = vmatpush1.bf16.msra.mxu0 0
    %1990 = vmatprep.subr.bf16.mxu0 0
    %1991 = vmatpush1.bf16.msra.mxu0 0
    %1992 = vmatprep.subr.bf16.mxu0 0
    %1993 = vmatpush1.bf16.msra.mxu0 0
    %1994 = vmatprep.subr.bf16.mxu0 0
    %1995 = vmatpush1.bf16.msra.mxu0 0
    %1996 = vmatprep.subr.bf16.mxu0 0
    %1997 = vmatpush1.bf16.msra.mxu0 0
    %1998 = vmatprep.subr.bf16.mxu0 0
    %1999 = vmatpush1.bf16.msra.mxu0 0
    %2000 = vmatprep.subr.bf16.mxu0 0
    %2001 = vmatpush1.bf16.msra.mxu0 0
    %2002 = vmatprep.subr.bf16.mxu0 0
    %2003 = vmatpush1.bf16.msra.mxu0 0
    %2004 = vmatprep.subr.bf16.mxu0 0
    %2005 = vmatpush1.bf16.msra.mxu0 0
    %2006 = vmatprep.subr.bf16.mxu0 0
    %2007 = vmatpush1.bf16.msra.mxu0 0
    %2008 = vmatprep.mubr.bf16.mxu0 0
    %2009 = vmatmul.mubr.bf16.gmra.mrb[0].mxu0 %v1974
    %v2010 = vpop.f32.mrb[0].mxu0
    %v2011 = vadd.f32 %v1959, %v2010
    %v2012 = vpop.f32.mrb[0].mxu0
    %v2013 = vpop.f32.mrb[0].mxu0
    %v2014 = vadd.f32 %v1959, %v2013
    %v2015 = vpop.f32.mrb[0].mxu0
    %2016 = vdwg.mxu0
    %v2017 = vadd.f32 %v2011, %v1199
    %v2018 = vadd.f32 %v2014, %v1200
    %s2019 = scalar_lea.vmem %s8, 1
    %v2020 = vld [vmem:[%s2019] sm:$0x1]
    %s2021 = scalar_lea.vmem %s9, 1
    %v2022 = vld [vmem:[%s2021] sm:$0x1]
    %v2023 = vsel %vm71, %v2017, 0.0
    %2024 = vadd.xlane.f32.xlu0 %v2023
    %v2025 = vpop.xlane.xlu0 %2024
    %v2026 = vsel %vm71, %v2018, 0.0
    %2027 = vadd.xlane.f32.xlu0 %v2026
    %v2028 = vpop.xlane.xlu0 %2027
    %v2029 = vmul.f32 %v2025, %v78
    %v2030 = vmul.f32 %v2028, %v78
    %v2031 = vsub.f32 %v2017, %v2029
    %v2032 = vsub.f32 %v2018, %v2030
    %v2033 = vmul.f32 %v2031, %v2031
    %v2034 = vmul.f32 %v2032, %v2032
    %v2035 = vsel %vm71, %v2033, 0.0
    %2036 = vadd.xlane.f32.xlu0 %v2035
    %v2037 = vpop.xlane.xlu0 %2036
    %v2038 = vsel %vm71, %v2034, 0.0
    %2039 = vadd.xlane.f32.xlu0 %v2038
    %v2040 = vpop.xlane.xlu0 %2039
    %v2041 = vmul.f32 %v2037, %v78
    %v2042 = vmul.f32 %v2040, %v78
    %v2043 = vadd.f32 %v2041, 1e-12
    %v2044 = vadd.f32 %v2042, 1e-12
    %v2045 = vrsqrt.pop %v2043
    %v2046 = vrsqrt.pop %v2044
    %v2047 = vmul.f32 %v2031, %v2045
    %v2048 = vmul.f32 %v2032, %v2046
    %v2050 = vlaneseq
    %v2051 = vshrl.u32 %v2050, 7
    %v2052 = vsub.s32 0, %v2051
    %v2053 = vrot.slane %v2020, %v2052
    %v2055 = vmul.f32 %v2047, %v2053
    %v2056 = vmul.f32 %v2048, %v2053
    %v2058 = vlaneseq
    %v2059 = vshrl.u32 %v2058, 7
    %v2060 = vsub.s32 0, %v2059
    %v2061 = vrot.slane %v2022, %v2060
    %v2063 = vadd.f32 %v2055, %v2061
    %v2064 = vadd.f32 %v2056, %v2061
    %s2065 = scalar_lea.vmem %s10, 16
    %v2066 = vld [vmem:[%s2065] sm:$0xf]
    %v2067 = vld [vmem:[%s2065 + $0x4] sm:$0xf]
    %v2068 = vld [vmem:[%s2065 + $0x8] sm:$0xf]
    %v2069 = vld [vmem:[%s2065 + $0xc] sm:$0xf]
    %v2070 = vpack.c.bf16 %v2064, %v2063
    %s2071 = scalar_lea.vmem %s11, 1
    %v2072 = vld [vmem:[%s2071] sm:$0x1]
    %v2074 = vlaneseq
    %v2075 = vshrl.u32 %v2074, 7
    %v2076 = vsub.s32 0, %v2075
    %v2077 = vrot.slane %v2072, %v2076
    %v2083 = vunpack.c.l.b16 %v2066
    %v2084 = vunpack.c.l.b16 %v2067
    %v2085 = vunpack.c.l.b16 %v2068
    %v2086 = vunpack.c.l.b16 %v2069
    %v2087 = vpack.c.b16 %v2084, %v2083
    %v2088 = vpack.c.b16 %v2086, %v2085
    %v2092 = vsel %vm71, %v2070, 0
    %2094 = vmatprep.subr.bf16.mxu0 0
    %2095 = vmatpush1.bf16.msra.mxu0 %v2087
    %2096 = vmatprep.subr.bf16.mxu0 0
    %2097 = vmatpush1.bf16.msra.mxu0 %v2088
    %2098 = vmatprep.subr.bf16.mxu0 0
    %2099 = vmatpush1.bf16.msra.mxu0 0
    %2100 = vmatprep.subr.bf16.mxu0 0
    %2101 = vmatpush1.bf16.msra.mxu0 0
    %2102 = vmatprep.subr.bf16.mxu0 0
    %2103 = vmatpush1.bf16.msra.mxu0 0
    %2104 = vmatprep.subr.bf16.mxu0 0
    %2105 = vmatpush1.bf16.msra.mxu0 0
    %2106 = vmatprep.subr.bf16.mxu0 0
    %2107 = vmatpush1.bf16.msra.mxu0 0
    %2108 = vmatprep.subr.bf16.mxu0 0
    %2109 = vmatpush1.bf16.msra.mxu0 0
    %2110 = vmatprep.subr.bf16.mxu0 0
    %2111 = vmatpush1.bf16.msra.mxu0 0
    %2112 = vmatprep.subr.bf16.mxu0 0
    %2113 = vmatpush1.bf16.msra.mxu0 0
    %2114 = vmatprep.subr.bf16.mxu0 0
    %2115 = vmatpush1.bf16.msra.mxu0 0
    %2116 = vmatprep.subr.bf16.mxu0 0
    %2117 = vmatpush1.bf16.msra.mxu0 0
    %2118 = vmatprep.subr.bf16.mxu0 0
    %2119 = vmatpush1.bf16.msra.mxu0 0
    %2120 = vmatprep.subr.bf16.mxu0 0
    %2121 = vmatpush1.bf16.msra.mxu0 0
    %2122 = vmatprep.subr.bf16.mxu0 0
    %2123 = vmatpush1.bf16.msra.mxu0 0
    %2124 = vmatprep.subr.bf16.mxu0 0
    %2125 = vmatpush1.bf16.msra.mxu0 0
    %2126 = vmatprep.mubr.bf16.mxu0 0
    %2127 = vmatmul.mubr.bf16.gmra.mrb[0].mxu0 %v2092
    %v2128 = vpop.f32.mrb[0].mxu0
    %v2129 = vadd.f32 %v2077, %v2128
    %v2130 = vpop.f32.mrb[0].mxu0
    %v2131 = vpop.f32.mrb[0].mxu0
    %v2132 = vadd.f32 %v2077, %v2131
    %v2133 = vpop.f32.mrb[0].mxu0
    %2134 = vdwg.mxu0
    %v2135 = vmul.f32 %v2129, 0.5
    %v2136 = vmul.f32 %v2132, 0.5
    %v2137 = vmul.f32 %v2129, 0.044715
    %v2138 = vmul.f32 %v2132, 0.044715
    %v2139 = vmul.f32 %v2137, %v2129
    %v2140 = vmul.f32 %v2138, %v2132
    %v2141 = vmul.f32 %v2139, %v2129
    %v2142 = vmul.f32 %v2140, %v2132
    %v2143 = vadd.f32 %v2129, %v2141
    %v2144 = vadd.f32 %v2132, %v2142
    %v2145 = vmul.f32 %v2143, 0.7978846
    %v2146 = vmul.f32 %v2144, 0.7978846
    %v2147 = vtanh.pop %v2145
    %v2148 = vtanh.pop %v2146
    %v2149 = vadd.f32 %v2147, 1.0
    %v2150 = vadd.f32 %v2148, 1.0
    %v2151 = vmul.f32 %v2135, %v2149
    %v2152 = vmul.f32 %v2136, %v2150
    %s2153 = scalar_lea.vmem %s12, 32
    %v2154 = vld [vmem:[%s2153] sm:$0xf]
    %v2155 = vld [vmem:[%s2153 + $0x4] sm:$0xf]
    %v2156 = vld [vmem:[%s2153 + $0x8] sm:$0xf]
    %v2157 = vld [vmem:[%s2153 + $0xc] sm:$0xf]
    %v2158 = vld [vmem:[%s2153 + $0x10] sm:$0xf]
    %v2159 = vld [vmem:[%s2153 + $0x14] sm:$0xf]
    %v2160 = vld [vmem:[%s2153 + $0x18] sm:$0xf]
    %v2161 = vld [vmem:[%s2153 + $0x1c] sm:$0xf]
    %v2162 = vpack.c.bf16 %v2152, %v2151
    %s2163 = scalar_lea.vmem %s13, 1
    %v2164 = vld [vmem:[%s2163] sm:$0x1]
    %v2166 = vlaneseq
    %v2167 = vshrl.u32 %v2166, 7
    %v2168 = vsub.s32 0, %v2167
    %v2169 = vrot.slane %v2164, %v2168
    %v2179 = vunpack.c.l.b16 %v2154
    %v2180 = vunpack.c.l.b16 %v2155
    %v2181 = vunpack.c.l.b16 %v2156
    %v2182 = vunpack.c.l.b16 %v2157
    %v2183 = vunpack.c.l.b16 %v2158
    %v2184 = vunpack.c.l.b16 %v2159
    %v2185 = vunpack.c.l.b16 %v2160
    %v2186 = vunpack.c.l.b16 %v2161
    %v2187 = vpack.c.b16 %v2180, %v2179
    %v2188 = vpack.c.b16 %v2182, %v2181
    %v2189 = vpack.c.b16 %v2184, %v2183
    %v2190 = vpack.c.b16 %v2186, %v2185
    %v2196 = vsel %vm1110, %v2162, 0
    %2198 = vmatprep.subr.bf16.mxu0 0
    %2199 = vmatpush1.bf16.msra.mxu0 %v2187
    %2200 = vmatprep.subr.bf16.mxu0 0
    %2201 = vmatpush1.bf16.msra.mxu0 %v2188
    %2202 = vmatprep.subr.bf16.mxu0 0
    %2203 = vmatpush1.bf16.msra.mxu0 %v2189
    %2204 = vmatprep.subr.bf16.mxu0 0
    %2205 = vmatpush1.bf16.msra.mxu0 %v2190
    %2206 = vmatprep.subr.bf16.mxu0 0
    %2207 = vmatpush1.bf16.msra.mxu0 0
    %2208 = vmatprep.subr.bf16.mxu0 0
    %2209 = vmatpush1.bf16.msra.mxu0 0
    %2210 = vmatprep.subr.bf16.mxu0 0
    %2211 = vmatpush1.bf16.msra.mxu0 0
    %2212 = vmatprep.subr.bf16.mxu0 0
    %2213 = vmatpush1.bf16.msra.mxu0 0
    %2214 = vmatprep.subr.bf16.mxu0 0
    %2215 = vmatpush1.bf16.msra.mxu0 0
    %2216 = vmatprep.subr.bf16.mxu0 0
    %2217 = vmatpush1.bf16.msra.mxu0 0
    %2218 = vmatprep.subr.bf16.mxu0 0
    %2219 = vmatpush1.bf16.msra.mxu0 0
    %2220 = vmatprep.subr.bf16.mxu0 0
    %2221 = vmatpush1.bf16.msra.mxu0 0
    %2222 = vmatprep.subr.bf16.mxu0 0
    %2223 = vmatpush1.bf16.msra.mxu0 0
    %2224 = vmatprep.subr.bf16.mxu0 0
    %2225 = vmatpush1.bf16.msra.mxu0 0
    %2226 = vmatprep.subr.bf16.mxu0 0
    %2227 = vmatpush1.bf16.msra.mxu0 0
    %2228 = vmatprep.subr.bf16.mxu0 0
    %2229 = vmatpush1.bf16.msra.mxu0 0
    %2230 = vmatprep.mubr.bf16.mxu0 0
    %2231 = vmatmul.mubr.bf16.gmra.mrb[0].mxu0 %v2196
    %v2232 = vpop.f32.mrb[0].mxu0
    %v2233 = vadd.f32 %v2169, %v2232
    %v2234 = vpop.f32.mrb[0].mxu0
    %v2235 = vpop.f32.mrb[0].mxu0
    %v2236 = vadd.f32 %v2169, %v2235
    %v2237 = vpop.f32.mrb[0].mxu0
    %2238 = vdwg.mxu0
    %v2239 = vadd.f32 %v2233, %v2063
    %v2240 = vadd.f32 %v2236, %v2064
    %s2241 = scalar_lea.vmem %s14, 1
    %v2242 = vld [vmem:[%s2241] sm:$0x1]
    %s2243 = scalar_lea.vmem %s15, 1
    %v2244 = vld [vmem:[%s2243] sm:$0x1]
    %v2245 = vsel %vm71, %v2239, 0.0
    %2246 = vadd.xlane.f32.xlu0 %v2245
    %v2247 = vpop.xlane.xlu0 %2246
    %v2248 = vsel %vm71, %v2240, 0.0
    %2249 = vadd.xlane.f32.xlu0 %v2248
    %v2250 = vpop.xlane.xlu0 %2249
    %v2251 = vmul.f32 %v2247, %v78
    %v2252 = vmul.f32 %v2250, %v78
    %v2253 = vsub.f32 %v2239, %v2251
    %v2254 = vsub.f32 %v2240, %v2252
    %v2255 = vmul.f32 %v2253, %v2253
    %v2256 = vmul.f32 %v2254, %v2254
    %v2257 = vsel %vm71, %v2255, 0.0
    %2258 = vadd.xlane.f32.xlu0 %v2257
    %v2259 = vpop.xlane.xlu0 %2258
    %v2260 = vsel %vm71, %v2256, 0.0
    %2261 = vadd.xlane.f32.xlu0 %v2260
    %v2262 = vpop.xlane.xlu0 %2261
    %v2263 = vmul.f32 %v2259, %v78
    %v2264 = vmul.f32 %v2262, %v78
    %v2265 = vadd.f32 %v2263, 1e-12
    %v2266 = vadd.f32 %v2264, 1e-12
    %v2267 = vrsqrt.pop %v2265
    %v2268 = vrsqrt.pop %v2266
    %v2269 = vmul.f32 %v2253, %v2267
    %v2270 = vmul.f32 %v2254, %v2268
    %v2272 = vlaneseq
    %v2273 = vshrl.u32 %v2272, 7
    %v2274 = vsub.s32 0, %v2273
    %v2275 = vrot.slane %v2242, %v2274
    %v2277 = vmul.f32 %v2269, %v2275
    %v2278 = vmul.f32 %v2270, %v2275
    %v2280 = vlaneseq
    %v2281 = vshrl.u32 %v2280, 7
    %v2282 = vsub.s32 0, %v2281
    %v2283 = vrot.slane %v2244, %v2282
    %v2285 = vadd.f32 %v2277, %v2283
    %v2286 = vadd.f32 %v2278, %v2283
    %v2288 = vrot.slane %v2286, 7
    %vm2290 = vcmask 1040384
    %v2291 = vsel %vm2290, %v2285, %v2288
    %v2292 = vld [vmem:[%s16] sm:$0xf]
    %v2293 = vld [vmem:[%s16 + $0x4] sm:$0xf]
    %v2294 = vld [vmem:[%s16 + $0x8] sm:$0xf]
    %v2295 = vld [vmem:[%s16 + $0xc] sm:$0xf]
    %v2296 = vpack.c.bf16 %v2291, %v2291
    %v2297 = vld [vmem:[%s17] sm:$0x1]
    %v2299 = vlaneseq
    %v2300 = vshrl.u32 %v2299, 7
    %v2301 = vsub.s32 0, %v2300
    %v2302 = vrot.slane %v2297, %v2301
    %v2308 = vunpack.c.l.b16 %v2292
    %v2309 = vunpack.c.l.b16 %v2293
    %v2310 = vunpack.c.l.b16 %v2294
    %v2311 = vunpack.c.l.b16 %v2295
    %v2312 = vpack.c.b16 %v2309, %v2308
    %v2313 = vpack.c.b16 %v2311, %v2310
    %v2317 = vsel %vm71, %v2296, 0
    %2319 = vmatprep.subr.bf16.mxu0 0
    %2320 = vmatpush1.bf16.msra.mxu0 %v2312
    %2321 = vmatprep.subr.bf16.mxu0 0
    %2322 = vmatpush1.bf16.msra.mxu0 %v2313
    %2323 = vmatprep.subr.bf16.mxu0 0
    %2324 = vmatpush1.bf16.msra.mxu0 0
    %2325 = vmatprep.subr.bf16.mxu0 0
    %2326 = vmatpush1.bf16.msra.mxu0 0
    %2327 = vmatprep.subr.bf16.mxu0 0
    %2328 = vmatpush1.bf16.msra.mxu0 0
    %2329 = vmatprep.subr.bf16.mxu0 0
    %2330 = vmatpush1.bf16.msra.mxu0 0
    %2331 = vmatprep.subr.bf16.mxu0 0
    %2332 = vmatpush1.bf16.msra.mxu0 0
    %2333 = vmatprep.subr.bf16.mxu0 0
    %2334 = vmatpush1.bf16.msra.mxu0 0
    %2335 = vmatprep.subr.bf16.mxu0 0
    %2336 = vmatpush1.bf16.msra.mxu0 0
    %2337 = vmatprep.subr.bf16.mxu0 0
    %2338 = vmatpush1.bf16.msra.mxu0 0
    %2339 = vmatprep.subr.bf16.mxu0 0
    %2340 = vmatpush1.bf16.msra.mxu0 0
    %2341 = vmatprep.subr.bf16.mxu0 0
    %2342 = vmatpush1.bf16.msra.mxu0 0
    %2343 = vmatprep.subr.bf16.mxu0 0
    %2344 = vmatpush1.bf16.msra.mxu0 0
    %2345 = vmatprep.subr.bf16.mxu0 0
    %2346 = vmatpush1.bf16.msra.mxu0 0
    %2347 = vmatprep.subr.bf16.mxu0 0
    %2348 = vmatpush1.bf16.msra.mxu0 0
    %2349 = vmatprep.subr.bf16.mxu0 0
    %2350 = vmatpush1.bf16.msra.mxu0 0
    %2351 = vmatprep.mubr.bf16.mxu0 0
    %2352 = vmatmul.mubr.bf16.gmra.mrb[0].mxu0 %v2317
    %v2353 = vpop.f32.mrb[0].mxu0
    %v2354 = vadd.f32 %v2302, %v2353
    %v2355 = vpop.f32.mrb[0].mxu0
    %v2356 = vpop.f32.mrb[0].mxu0
    %v2357 = vpop.f32.mrb[0].mxu0
    %2358 = vdwg.mxu0
    %v2359 = vtanh.pop %v2354
    %v2360 = vld [vmem:[%s18] sm:$0xf]
    %v2361 = vld [vmem:[%s18 + $0x4] sm:$0xf]
    %v2362 = vld [vmem:[%s18 + $0x8] sm:$0xf]
    %v2363 = vld [vmem:[%s18 + $0xc] sm:$0xf]
    %v2364 = vpack.c.bf16 %v2359, %v2359
    %v2365 = vld [vmem:[%s19] sm:$0x1]
    %v2367 = vlaneseq
    %v2368 = vshrl.u32 %v2367, 7
    %v2369 = vsub.s32 0, %v2368
    %v2370 = vrot.slane %v2365, %v2369
    %v2376 = vunpack.c.l.b16 %v2360
    %v2377 = vunpack.c.l.b16 %v2361
    %v2378 = vunpack.c.l.b16 %v2362
    %v2379 = vunpack.c.l.b16 %v2363
    %v2380 = vpack.c.b16 %v2377, %v2376
    %v2381 = vpack.c.b16 %v2379, %v2378
    %v2385 = vsel %vm71, %v2364, 0
    %2387 = vmatprep.subr.bf16.mxu0 0
    %2388 = vmatpush1.bf16.msra.mxu0 %v2380
    %2389 = vmatprep.subr.bf16.mxu0 0
    %2390 = vmatpush1.bf16.msra.mxu0 %v2381
    %2391 = vmatprep.subr.bf16.mxu0 0
    %2392 = vmatpush1.bf16.msra.mxu0 0
    %2393 = vmatprep.subr.bf16.mxu0 0
    %2394 = vmatpush1.bf16.msra.mxu0 0
    %2395 = vmatprep.subr.bf16.mxu0 0
    %2396 = vmatpush1.bf16.msra.mxu0 0
    %2397 = vmatprep.subr.bf16.mxu0 0
    %2398 = vmatpush1.bf16.msra.mxu0 0
    %2399 = vmatprep.subr.bf16.mxu0 0
    %2400 = vmatpush1.bf16.msra.mxu0 0
    %2401 = vmatprep.subr.bf16.mxu0 0
    %2402 = vmatpush1.bf16.msra.mxu0 0
    %2403 = vmatprep.subr.bf16.mxu0 0
    %2404 = vmatpush1.bf16.msra.mxu0 0
    %2405 = vmatprep.subr.bf16.mxu0 0
    %2406 = vmatpush1.bf16.msra.mxu0 0
    %2407 = vmatprep.subr.bf16.mxu0 0
    %2408 = vmatpush1.bf16.msra.mxu0 0
    %2409 = vmatprep.subr.bf16.mxu0 0
    %2410 = vmatpush1.bf16.msra.mxu0 0
    %2411 = vmatprep.subr.bf16.mxu0 0
    %2412 = vmatpush1.bf16.msra.mxu0 0
    %2413 = vmatprep.subr.bf16.mxu0 0
    %2414 = vmatpush1.bf16.msra.mxu0 0
    %2415 = vmatprep.subr.bf16.mxu0 0
    %2416 = vmatpush1.bf16.msra.mxu0 0
    %2417 = vmatprep.subr.bf16.mxu0 0
    %2418 = vmatpush1.bf16.msra.mxu0 0
    %2419 = vmatprep.mubr.bf16.mxu0 0
    %2420 = vmatmul.mubr.bf16.gmra.mrb[0].mxu0 %v2385
    %v2421 = vpop.f32.mrb[0].mxu0
    %v2422 = vadd.f32 %v2370, %v2421
    %v2423 = vpop.f32.mrb[0].mxu0
    %v2424 = vpop.f32.mrb[0].mxu0
    %v2425 = vpop.f32.mrb[0].mxu0
    %2426 = vdwg.mxu0
    %2427 = vst [vmem:[#allocation2] sm:$0x3] %v2422
    // Predicated region
    $region82: #{phishing_classifier_forward.1} parent=1 // pred_check
      _
    $region83: #{phishing_classifier_forward.1} parent=1 // pred_check_branch
      %2429 = sbr.rel (0) target = $region85
    $region84: #{phishing_classifier_forward.1} parent=1 // pred_region
      %s2431 = ssub.s32 32, 32
      %2432 = vsyncadd [#allocation3], %s2431
      %s2434 = sshll.u32 [#allocation2], 4
      %s2435 = int_to_ptr.vmem [resolvable:$true] %s2434
      %2437 = dma.vmem_to_hbm [thread:$0]  %s2435, 32, %s20, [#allocation3]
    $region85: #{phishing_classifier_forward.1} parent=1 // pred_fallthru
      _
    // Predicated region
    $region86: #{phishing_classifier_forward.1} parent=1 // pred_check
      _
    $region87: #{phishing_classifier_forward.1} parent=1 // pred_check_branch
      %2439 = sbr.rel (0) target = $region89
    $region88: #{phishing_classifier_forward.1} parent=1 // pred_region
      %2440 = dma.done [#allocation3], 32
    $region89: #{phishing_classifier_forward.1} parent=1 // pred_fallthru
      _
    %2441 = vsyncpa [#allocation3], 1

</llo_original>
